<compile_context>
chip_gen: v7x
topology: tpu7x:2x2x1
jax: 0.10.0
libtpu: 0.0.40
codegen_flags: <defaults>
</compile_context>

<pallas_src>
import math
import jax
import jax.numpy as jnp
import numpy as np
from jax.experimental import pallas as pl
from jax.experimental.pallas import tpu as pltpu

# ---------------- small synthetic config (mirrors __init__ hyper-params) ----------------
N_CUR      = 16                      # current-frame proposals
BASE_NUM   = 8                       # cfg.MODEL.VID.RPN.REF_POST_NMS_TOP_N
NUM_REF    = 3                       # number of reference chunks
M_REF      = BASE_NUM * NUM_REF      # 24 reference rois
ADV_NUM    = 4                       # int(base_num * cfg.MODEL.VID.RDN.RATIO)
M_ADV      = NUM_REF * ADV_NUM       # 12 distilled reference rois
N_ALL      = N_CUR + M_REF + M_ADV   # rows fed through the shared fc0
FEAT_DIM   = 128                     # representation_size (1024 in real cfg)
GROUPS     = 8                       # attention groups (16 in real cfg)
DG         = FEAT_DIM // GROUPS
SCALE      = 1.0 / math.sqrt(float(DG))
EMBED_DIM  = 64                      # fixed by cal_position_embedding(feat_dim=64)
INPUT_SIZE = 64                      # output_channel * pooler_resolution**2
BASE_STAGE = 1
ADV_STAGE  = 1

_VMEM = pl.BlockSpec(memory_space=pltpu.MemorySpace.VMEM)


# ================================ fused Pallas kernel ================================
def _fused_rdn_kernel(xall_ref, lp0_ref, lp1_ref, lp2_ref,
                      fc0_wT_ref, fc0_b_ref, fc1_wT_ref, fc1_b_ref,
                      wqT_ref, bq_ref, wkT_ref, bk_ref, wvT_ref, bv_ref,
                      o_ref, attn_out):
    """Entire RDN test-path forward (base_stage=1, advanced_stage=1)."""

    def attn(roi, refv, logpos, idx, rows):
        # roi: (rows, f) f32   refv: (mref, f) f32   logpos: (g*rows, mref) f32
        roi_bf = roi.astype(jnp.bfloat16)
        ref_bf = refv.astype(jnp.bfloat16)

        # Q / K projections: two full-width bf16 MXU pushes (scale folded into Wq/bq).
        q = (jnp.dot(roi_bf, wqT_ref[idx], preferred_element_type=jnp.float32)
             + bq_ref[idx]).astype(jnp.bfloat16)                          # (rows, f)
        k = (jnp.dot(ref_bf, wkT_ref[idx], preferred_element_type=jnp.float32)
             + bk_ref[idx]).astype(jnp.bfloat16)                          # (mref, f)
        # hoisted value projection (associativity: (p@refv)@Wv_g^T == p@(refv@Wv_g^T))
        v = jnp.dot(ref_bf, wvT_ref[idx],
                    preferred_element_type=jnp.float32).astype(jnp.bfloat16)  # (mref, f)

        # per-group affinities stacked along sublanes -> one (g*rows, mref) tensor
        aff = jnp.concatenate(
            [jax.lax.dot_general(q[:, gi * DG:(gi + 1) * DG],
                                 k[:, gi * DG:(gi + 1) * DG],
                                 (((1,), (1,)), ((), ())),
                                 preferred_element_type=jnp.float32)
             for gi in range(GROUPS)], axis=0)                            # (g*rows, mref)

        # ONE batched softmax pass (max / exp / sum / reciprocal) for all groups, f32
        w = logpos + aff
        w = w - jnp.max(w, axis=1, keepdims=True)
        p = jnp.exp(w)
        p = (p * pl.reciprocal(jnp.sum(p, axis=1, keepdims=True),
                               approx=False)).astype(jnp.bfloat16)        # (g*rows, mref)

        # per-group value application written straight into the scratch columns
        for gi in range(GROUPS):
            attn_out[0:rows, gi * DG:(gi + 1) * DG] = jnp.dot(
                p[gi * rows:(gi + 1) * rows, :], v[:, gi * DG:(gi + 1) * DG],
                preferred_element_type=jnp.float32)
        return attn_out[0:rows, :] + bv_ref[idx]                          # (rows, f) f32

    # ---- fc0 on [x_pooled ; refs_pooled ; refs_pooled_adv]: ONE MXU push ----
    # (fuses the _forward_ref pre-compute and the advanced-row seed; row selection
    #  was done in the wrapper on the pooled features and commutes with row-wise fc0)
    y = jnp.dot(xall_ref[...], fc0_wT_ref[...], preferred_element_type=jnp.float32)
    y = jnp.maximum(y + fc0_b_ref[...], 0.0)                              # (N_ALL, f)
    x      = y[0:N_CUR, :]
    x_refs = y[N_CUR:N_CUR + M_REF, :]
    x_adv  = y[N_CUR + M_REF:N_ALL, :]

    # ---- base stage ----
    x = x + attn(x, x_refs, lp0_ref[...], 0, N_CUR)

    # ---- advanced stage: refine distilled reference features, then fc1+relu ----
    x_adv = x_adv + attn(x_adv, x_refs, lp1_ref[...], 1, M_ADV)
    x_adv = jnp.maximum(
        jnp.dot(x_adv.astype(jnp.bfloat16), fc1_wT_ref[...],
                preferred_element_type=jnp.float32) + fc1_b_ref[...], 0.0)

    # ---- final attention of current rois over the distilled references ----
    x = x + attn(x, x_adv, lp2_ref[...], 2, N_CUR)

    o_ref[...] = x                                                        # lane-dense store


# ======================= plain-JAX glue (position embedding) =======================
def extract_position_matrix(bbox, ref_bbox):
    xmin, ymin, xmax, ymax = jnp.split(bbox, 4, axis=1)
    rxmin, rymin, rxmax, rymax = jnp.split(ref_bbox, 4, axis=1)
    w_ref = rxmax - rxmin + 1.0
    h_ref = rymax - rymin + 1.0
    cx_ref = 0.5 * (rxmin + rxmax)
    cy_ref = 0.5 * (rymin + rymax)
    w = xmax - xmin + 1.0
    h = ymax - ymin + 1.0
    cx = 0.5 * (xmin + xmax)
    cy = 0.5 * (ymin + ymax)
    dx = jnp.log(jnp.abs((cx - cx_ref.T) / w) + 0.001)
    dy = jnp.log(jnp.abs((cy - cy_ref.T) / h) + 0.001)
    dw = jnp.log(w / w_ref.T)
    dh = jnp.log(h / h_ref.T)
    return jnp.stack([dx, dy, dw, dh], axis=2)                            # (N, M, 4)


def extract_position_embedding(position_mat, feat_dim=64, wave_length=1000.0):
    feat_range = jnp.arange(0, feat_dim // 8, dtype=jnp.float32)          # (8,)
    dim_mat = jnp.power(jnp.float32(wave_length), (8.0 / feat_dim) * feat_range)
    div_mat = (position_mat[..., None] * 100.0) / dim_mat                 # (N, M, 4, 8)
    emb = jnp.concatenate([jnp.sin(div_mat), jnp.cos(div_mat)], axis=3)   # (N, M, 4, 16)
    return emb.reshape(emb.shape[0], emb.shape[1], -1)                    # (N, M, 64)


def cal_position_embedding(rois1, rois2):
    # channels-last layout (N, M, 64); PyTorch returns (1, 64, N, M)
    return extract_position_embedding(extract_position_matrix(rois1, rois2), feat_dim=64)


def make_logpos(pe, wg, bg):
    """Wg 1x1 conv + relu + (+1e-6).log, produced directly in the (g*rows, refs)
    layout the batched in-kernel softmax consumes (one small XLA matmul)."""
    R, M, _ = pe.shape
    pos = jnp.einsum("rme,ge->grm", pe, wg) + bg[:, None, None]           # (g, R, M)
    return jnp.log(jnp.maximum(pos, 0.0) + 1e-6).reshape(GROUPS * R, M)


# ================================ param preparation ================================
def prepare_params(params):
    """One-time weight re-layout: transpose, stack stages, fold 1/sqrt(dg) into Wq,
    cast MXU operands to bf16 (biases / position weights stay f32)."""
    kp = {
        "fc0_wT": params["fc_w"][0].T.astype(jnp.bfloat16),
        "fc0_b":  params["fc_b"][0].reshape(1, -1),
        "fc1_wT": params["fc_w"][1].T.astype(jnp.bfloat16),
        "fc1_b":  params["fc_b"][1].reshape(1, -1),
    }
    wg_l, bg_l, wqT_l, bq_l, wkT_l, bk_l, wvT_l, bv_l = [], [], [], [], [], [], [], []
    for (wg, bg, wq, bq, wk, bk, wv, bv) in params["attn"]:
        wg_l.append(wg)                                                   # (g, e)  f32
        bg_l.append(bg)                                                   # (g,)    f32
        wqT_l.append((wq.T * SCALE).astype(jnp.bfloat16))                 # scale folded
        bq_l.append((bq * SCALE).reshape(1, -1))
        wkT_l.append(wk.T.astype(jnp.bfloat16))
        bk_l.append(bk.reshape(1, -1))
        wvT_l.append(wv.T.astype(jnp.bfloat16))
        bv_l.append(bv.reshape(1, -1))
    kp.update(wg=jnp.stack(wg_l), bg=jnp.stack(bg_l),
              wqT=jnp.stack(wqT_l), bq=jnp.stack(bq_l),
              wkT=jnp.stack(wkT_l), bk=jnp.stack(bk_l),
              wvT=jnp.stack(wvT_l), bv=jnp.stack(bv_l))
    return kp


# ================================ full forward (test path) ================================
def rdn_forward(x_pooled, refs_pooled, rois_cur, rois_ref, kp):
    n = x_pooled.shape[0]
    m = refs_pooled.shape[0]
    nf = m // BASE_NUM
    m_adv = nf * ADV_NUM

    # advanced-row selection done on the *pooled* rows (commutes with row-wise fc0)
    refs_pooled_adv = refs_pooled.reshape(nf, BASE_NUM, -1)[:, :ADV_NUM].reshape(m_adv, -1)
    xall = jnp.concatenate([x_pooled, refs_pooled, refs_pooled_adv],
                           axis=0).astype(jnp.bfloat16)                   # (N_ALL, in)

    # position embeddings + position weights -> log-position terms (softmax layout)
    pe = cal_position_embedding(rois_cur, rois_ref)                       # (n, m, 64)
    rois_ref_adv = rois_ref.reshape(nf, BASE_NUM, 4)[:, :ADV_NUM].reshape(m_adv, 4)
    pe2 = cal_position_embedding(rois_ref_adv, rois_ref)                  # (m_adv, m, 64)
    pe_adv = pe.reshape(n, nf, BASE_NUM, EMBED_DIM)[:, :, :ADV_NUM] \
               .reshape(n, m_adv, EMBED_DIM)                              # (n, m_adv, 64)

    lp0 = make_logpos(pe,     kp["wg"][0], kp["bg"][0])                   # (g*n,     m)
    lp1 = make_logpos(pe2,    kp["wg"][1], kp["bg"][1])                   # (g*m_adv, m)
    lp2 = make_logpos(pe_adv, kp["wg"][2], kp["bg"][2])                   # (g*n, m_adv)

    return pl.pallas_call(
        _fused_rdn_kernel,
        out_shape=jax.ShapeDtypeStruct((n, FEAT_DIM), jnp.float32),
        in_specs=[_VMEM] * 14,
        out_specs=_VMEM,
        scratch_shapes=[pltpu.VMEM((max(n, m_adv), FEAT_DIM), jnp.float32)],
        compiler_params=pltpu.CompilerParams(vmem_limit_bytes=32 * 1024 * 1024),
    )(xall, lp0, lp1, lp2,
      kp["fc0_wT"], kp["fc0_b"], kp["fc1_wT"], kp["fc1_b"],
      kp["wqT"], kp["bq"], kp["wkT"], kp["bk"], kp["wvT"], kp["bv"])


# ================================ pure-JAX reference ================================
def _linear_relu_ref(x, w, b):
    return jnp.maximum(x @ w.T + b, 0.0)


def _attention_ref(roi, refv, pe, p, groups=GROUPS):
    wg, bg, wq, bq, wk, bk, wv, bv = p
    n, f = roi.shape
    m = refv.shape[0]
    dg = f // groups
    pos = jnp.maximum(jnp.einsum("nme,ge->ngm", pe, wg) + bg[None, :, None], 0.0)
    q = (roi @ wq.T + bq).reshape(n, groups, dg).transpose(1, 0, 2)
    k = (refv @ wk.T + bk).reshape(m, groups, dg).transpose(1, 0, 2)
    aff = jnp.einsum("gnd,gmd->gnm", q, k) / math.sqrt(dg)
    w = jnp.log(pos + 1e-6) + aff.transpose(1, 0, 2)
    p_soft = jax.nn.softmax(w, axis=2)                       # (n, g, m)
    out_t = jnp.einsum("ngm,mf->ngf", p_soft, refv)          # (n, g, f)
    wv_g = wv.reshape(groups, dg, f)
    return jnp.einsum("ngf,gdf->ngd", out_t, wv_g).reshape(n, f) + bv


def rdn_forward_ref(x_pooled, refs_pooled, rois_cur, rois_ref, params):
    pe = cal_position_embedding(rois_cur, rois_ref)
    x_refs = _linear_relu_ref(refs_pooled, params["fc_w"][0], params["fc_b"][0])
    x = x_pooled
    for i in range(BASE_STAGE):
        x = _linear_relu_ref(x, params["fc_w"][i], params["fc_b"][i])
        x = x + _attention_ref(x, x_refs, pe, params["attn"][i])
    if ADV_STAGE > 0:
        n, m, e = pe.shape
        nf = m // BASE_NUM
        x_refs_adv = x_refs.reshape(nf, BASE_NUM, -1)[:, :ADV_NUM].reshape(nf * ADV_NUM, -1)
        rois_ref_adv = rois_ref.reshape(nf, BASE_NUM, 4)[:, :ADV_NUM].reshape(nf * ADV_NUM, 4)
        pe_adv = pe.reshape(n, nf, BASE_NUM, e)[:, :, :ADV_NUM].reshape(n, nf * ADV_NUM, e)
        pe2 = cal_position_embedding(rois_ref_adv, rois_ref)
        for i in range(ADV_STAGE):
            x_refs_adv = x_refs_adv + _attention_ref(x_refs_adv, x_refs, pe2,
                                                     params["attn"][i + BASE_STAGE])
            x_refs_adv = _linear_relu_ref(x_refs_adv,
                                          params["fc_w"][i + BASE_STAGE],
                                          params["fc_b"][i + BASE_STAGE])
        x = x + _attention_ref(x, x_refs_adv, pe_adv,
                               params["attn"][BASE_STAGE + ADV_STAGE])
    return x


# ================================ params & inputs ================================
def init_params(key):
    keys = iter(jax.random.split(key, 32))
    fc_w, fc_b, attn = [], [], []
    for i in range(BASE_STAGE + ADV_STAGE):
        din = INPUT_SIZE if i == 0 else FEAT_DIM
        fc_w.append(jax.random.normal(next(keys), (FEAT_DIM, din), jnp.float32) / math.sqrt(din))
        fc_b.append(jax.random.normal(next(keys), (FEAT_DIM,), jnp.float32) * 0.01)
    for i in range(BASE_STAGE + ADV_STAGE + 1):
        wg = jax.random.normal(next(keys), (GROUPS, EMBED_DIM), jnp.float32) * 0.01
        bg = jnp.zeros((GROUPS,), jnp.float32)
        wq = jax.random.normal(next(keys), (FEAT_DIM, FEAT_DIM), jnp.float32) / math.sqrt(FEAT_DIM)
        bq = jnp.zeros((FEAT_DIM,), jnp.float32)
        wk = jax.random.normal(next(keys), (FEAT_DIM, FEAT_DIM), jnp.float32) / math.sqrt(FEAT_DIM)
        bk = jnp.zeros((FEAT_DIM,), jnp.float32)
        wv = jax.random.normal(next(keys), (FEAT_DIM, FEAT_DIM), jnp.float32) * 0.01
        bv = jnp.zeros((FEAT_DIM,), jnp.float32)
        attn.append((wg, bg, wq, bq, wk, bk, wv, bv))
    return {"fc_w": fc_w, "fc_b": fc_b, "attn": attn}


def make_boxes(key, n):
    k1, k2 = jax.random.split(key)
    x1y1 = jax.random.uniform(k1, (n, 2), minval=0.0, maxval=50.0)
    wh = jax.random.uniform(k2, (n, 2), minval=4.0, maxval=60.0)
    return jnp.concatenate([x1y1, x1y1 + wh], axis=1)         # (n, 4): xmin, ymin, xmax, ymax


if __name__ == "__main__":
    key = jax.random.PRNGKey(0)
    kp_key, kx, kr, kb1, kb2 = jax.random.split(key, 5)
    params = init_params(kp_key)
    kparams = prepare_params(params)           # one-time weight re-layout / bf16 cast

    x_pooled = jax.random.normal(kx, (N_CUR, INPUT_SIZE), jnp.float32)      # pooled cur rois
    refs_pooled = jax.random.normal(kr, (M_REF, INPUT_SIZE), jnp.float32)   # pooled ref rois
    rois_cur = make_boxes(kb1, N_CUR)
    rois_ref = make_boxes(kb2, M_REF)

    fwd = jax.jit(rdn_forward)
    out = jax.block_until_ready(fwd(x_pooled, refs_pooled, rois_cur, rois_ref, kparams))

    ref = jax.block_until_ready(
        rdn_forward_ref(x_pooled, refs_pooled, rois_cur, rois_ref, params))

    assert out.shape == (N_CUR, FEAT_DIM) and out.dtype == jnp.float32
    np.testing.assert_allclose(np.asarray(out), np.asarray(ref), rtol=2e-2, atol=2e-2)
    print("KERNEL_OK")
</pallas_src>

<mosaic_0001>
module attributes {stable_mosaic.version = 11 : i64} {
  func.func @_fused_rdn_kernel(%arg0: memref<52x64xbf16, #tpu.memory_space<vmem>>, %arg1: memref<128x24xf32, #tpu.memory_space<vmem>>, %arg2: memref<96x24xf32, #tpu.memory_space<vmem>>, %arg3: memref<128x12xf32, #tpu.memory_space<vmem>>, %arg4: memref<64x128xbf16, #tpu.memory_space<vmem>>, %arg5: memref<1x128xf32, #tpu.memory_space<vmem>>, %arg6: memref<128x128xbf16, #tpu.memory_space<vmem>>, %arg7: memref<1x128xf32, #tpu.memory_space<vmem>>, %arg8: memref<3x128x128xbf16, #tpu.memory_space<vmem>>, %arg9: memref<3x1x128xf32, #tpu.memory_space<vmem>>, %arg10: memref<3x128x128xbf16, #tpu.memory_space<vmem>>, %arg11: memref<3x1x128xf32, #tpu.memory_space<vmem>>, %arg12: memref<3x128x128xbf16, #tpu.memory_space<vmem>>, %arg13: memref<3x1x128xf32, #tpu.memory_space<vmem>>, %arg14: memref<16x128xf32, #tpu.memory_space<vmem>>, %arg15: memref<16x128xf32, #tpu.memory_space<vmem>>) attributes {dimension_semantics = [], scalar_prefetch = 0 : i64, scratch_operands = 1 : i64, tpu.core_type = #tpu.core_type<tc>} {
    %c0 = arith.constant 0 : index
    %c0_0 = arith.constant 0 : index
    %0 = vector.load %arg0[%c0, %c0_0] : memref<52x64xbf16, #tpu.memory_space<vmem>>, vector<52x64xbf16>
    %c0_1 = arith.constant 0 : index
    %c0_2 = arith.constant 0 : index
    %1 = vector.load %arg4[%c0_1, %c0_2] : memref<64x128xbf16, #tpu.memory_space<vmem>>, vector<64x128xbf16>
    %cst = arith.constant dense<0.000000e+00> : vector<52x128xf32>
    %2 = tpu.matmul %0, %1, %cst {dimension_numbers = #tpu.dot_dimension_numbers<[1], [0], [0], [1], [0, 0, 1, 1], [], []>} : vector<52x64xbf16>, vector<64x128xbf16>, vector<52x128xf32> -> vector<52x128xf32>
    %c0_3 = arith.constant 0 : index
    %c0_4 = arith.constant 0 : index
    %3 = vector.load %arg5[%c0_3, %c0_4] : memref<1x128xf32, #tpu.memory_space<vmem>>, vector<1x128xf32>
    %4 = vector.broadcast %3 : vector<1x128xf32> to vector<52x128xf32>
    %5 = arith.addf %2, %4 : vector<52x128xf32>
    %cst_5 = arith.constant 0.000000e+00 : f32
    %6 = vector.broadcast %cst_5 : f32 to vector<52x128xf32>
    %7 = arith.maximumf %5, %6 : vector<52x128xf32>
    %8 = vector.extract_strided_slice %7 {offsets = [0, 0], sizes = [16, 128], strides = [1, 1]} : vector<52x128xf32> to vector<16x128xf32>
    %9 = vector.extract_strided_slice %7 {offsets = [16, 0], sizes = [24, 128], strides = [1, 1]} : vector<52x128xf32> to vector<24x128xf32>
    %10 = vector.extract_strided_slice %7 {offsets = [40, 0], sizes = [12, 128], strides = [1, 1]} : vector<52x128xf32> to vector<12x128xf32>
    %c0_6 = arith.constant 0 : index
    %c0_7 = arith.constant 0 : index
    %11 = vector.load %arg1[%c0_6, %c0_7] : memref<128x24xf32, #tpu.memory_space<vmem>>, vector<128x24xf32>
    %12 = arith.truncf %8 : vector<16x128xf32> to vector<16x128xbf16>
    %13 = arith.truncf %9 : vector<24x128xf32> to vector<24x128xbf16>
    %c0_8 = arith.constant 0 : index
    %c0_9 = arith.constant 0 : index
    %c0_10 = arith.constant 0 : index
    %14 = vector.load %arg8[%c0_8, %c0_9, %c0_10] : memref<3x128x128xbf16, #tpu.memory_space<vmem>>, vector<1x128x128xbf16>
    %15 = vector.shape_cast %14 : vector<1x128x128xbf16> to vector<128x128xbf16>
    %cst_11 = arith.constant dense<0.000000e+00> : vector<16x128xf32>
    %16 = tpu.matmul %12, %15, %cst_11 {dimension_numbers = #tpu.dot_dimension_numbers<[1], [0], [0], [1], [0, 0, 1, 1], [], []>} : vector<16x128xbf16>, vector<128x128xbf16>, vector<16x128xf32> -> vector<16x128xf32>
    %c0_12 = arith.constant 0 : index
    %c0_13 = arith.constant 0 : index
    %c0_14 = arith.constant 0 : index
    %17 = vector.load %arg9[%c0_12, %c0_13, %c0_14] : memref<3x1x128xf32, #tpu.memory_space<vmem>>, vector<1x1x128xf32>
    %18 = vector.shape_cast %17 : vector<1x1x128xf32> to vector<1x128xf32>
    %19 = vector.broadcast %18 : vector<1x128xf32> to vector<16x128xf32>
    %20 = arith.addf %16, %19 : vector<16x128xf32>
    %21 = arith.truncf %20 : vector<16x128xf32> to vector<16x128xbf16>
    %c0_15 = arith.constant 0 : index
    %c0_16 = arith.constant 0 : index
    %c0_17 = arith.constant 0 : index
    %22 = vector.load %arg10[%c0_15, %c0_16, %c0_17] : memref<3x128x128xbf16, #tpu.memory_space<vmem>>, vector<1x128x128xbf16>
    %23 = vector.shape_cast %22 : vector<1x128x128xbf16> to vector<128x128xbf16>
    %cst_18 = arith.constant dense<0.000000e+00> : vector<24x128xf32>
    %24 = tpu.matmul %13, %23, %cst_18 {dimension_numbers = #tpu.dot_dimension_numbers<[1], [0], [0], [1], [0, 0, 1, 1], [], []>} : vector<24x128xbf16>, vector<128x128xbf16>, vector<24x128xf32> -> vector<24x128xf32>
    %c0_19 = arith.constant 0 : index
    %c0_20 = arith.constant 0 : index
    %c0_21 = arith.constant 0 : index
    %25 = vector.load %arg11[%c0_19, %c0_20, %c0_21] : memref<3x1x128xf32, #tpu.memory_space<vmem>>, vector<1x1x128xf32>
    %26 = vector.shape_cast %25 : vector<1x1x128xf32> to vector<1x128xf32>
    %27 = vector.broadcast %26 : vector<1x128xf32> to vector<24x128xf32>
    %28 = arith.addf %24, %27 : vector<24x128xf32>
    %29 = arith.truncf %28 : vector<24x128xf32> to vector<24x128xbf16>
    %c0_22 = arith.constant 0 : index
    %c0_23 = arith.constant 0 : index
    %c0_24 = arith.constant 0 : index
    %30 = vector.load %arg12[%c0_22, %c0_23, %c0_24] : memref<3x128x128xbf16, #tpu.memory_space<vmem>>, vector<1x128x128xbf16>
    %31 = vector.shape_cast %30 : vector<1x128x128xbf16> to vector<128x128xbf16>
    %cst_25 = arith.constant dense<0.000000e+00> : vector<24x128xf32>
    %32 = tpu.matmul %13, %31, %cst_25 {dimension_numbers = #tpu.dot_dimension_numbers<[1], [0], [0], [1], [0, 0, 1, 1], [], []>} : vector<24x128xbf16>, vector<128x128xbf16>, vector<24x128xf32> -> vector<24x128xf32>
    %33 = arith.truncf %32 : vector<24x128xf32> to vector<24x128xbf16>
    %34 = vector.extract_strided_slice %21 {offsets = [0, 0], sizes = [16, 16], strides = [1, 1]} : vector<16x128xbf16> to vector<16x16xbf16>
    %35 = vector.extract_strided_slice %29 {offsets = [0, 0], sizes = [24, 16], strides = [1, 1]} : vector<24x128xbf16> to vector<24x16xbf16>
    %cst_26 = arith.constant dense<0.000000e+00> : vector<16x24xf32>
    %36 = tpu.matmul %34, %35, %cst_26 {dimension_numbers = #tpu.dot_dimension_numbers<[1], [1], [0], [0], [0, 0, 1, 0], [], []>} : vector<16x16xbf16>, vector<24x16xbf16>, vector<16x24xf32> -> vector<16x24xf32>
    %37 = vector.extract_strided_slice %21 {offsets = [0, 16], sizes = [16, 16], strides = [1, 1]} : vector<16x128xbf16> to vector<16x16xbf16>
    %38 = vector.extract_strided_slice %29 {offsets = [0, 16], sizes = [24, 16], strides = [1, 1]} : vector<24x128xbf16> to vector<24x16xbf16>
    %cst_27 = arith.constant dense<0.000000e+00> : vector<16x24xf32>
    %39 = tpu.matmul %37, %38, %cst_27 {dimension_numbers = #tpu.dot_dimension_numbers<[1], [1], [0], [0], [0, 0, 1, 0], [], []>} : vector<16x16xbf16>, vector<24x16xbf16>, vector<16x24xf32> -> vector<16x24xf32>
    %40 = vector.extract_strided_slice %21 {offsets = [0, 32], sizes = [16, 16], strides = [1, 1]} : vector<16x128xbf16> to vector<16x16xbf16>
    %41 = vector.extract_strided_slice %29 {offsets = [0, 32], sizes = [24, 16], strides = [1, 1]} : vector<24x128xbf16> to vector<24x16xbf16>
    %cst_28 = arith.constant dense<0.000000e+00> : vector<16x24xf32>
    %42 = tpu.matmul %40, %41, %cst_28 {dimension_numbers = #tpu.dot_dimension_numbers<[1], [1], [0], [0], [0, 0, 1, 0], [], []>} : vector<16x16xbf16>, vector<24x16xbf16>, vector<16x24xf32> -> vector<16x24xf32>
    %43 = vector.extract_strided_slice %21 {offsets = [0, 48], sizes = [16, 16], strides = [1, 1]} : vector<16x128xbf16> to vector<16x16xbf16>
    %44 = vector.extract_strided_slice %29 {offsets = [0, 48], sizes = [24, 16], strides = [1, 1]} : vector<24x128xbf16> to vector<24x16xbf16>
    %cst_29 = arith.constant dense<0.000000e+00> : vector<16x24xf32>
    %45 = tpu.matmul %43, %44, %cst_29 {dimension_numbers = #tpu.dot_dimension_numbers<[1], [1], [0], [0], [0, 0, 1, 0], [], []>} : vector<16x16xbf16>, vector<24x16xbf16>, vector<16x24xf32> -> vector<16x24xf32>
    %46 = vector.extract_strided_slice %21 {offsets = [0, 64], sizes = [16, 16], strides = [1, 1]} : vector<16x128xbf16> to vector<16x16xbf16>
    %47 = vector.extract_strided_slice %29 {offsets = [0, 64], sizes = [24, 16], strides = [1, 1]} : vector<24x128xbf16> to vector<24x16xbf16>
    %cst_30 = arith.constant dense<0.000000e+00> : vector<16x24xf32>
    %48 = tpu.matmul %46, %47, %cst_30 {dimension_numbers = #tpu.dot_dimension_numbers<[1], [1], [0], [0], [0, 0, 1, 0], [], []>} : vector<16x16xbf16>, vector<24x16xbf16>, vector<16x24xf32> -> vector<16x24xf32>
    %49 = vector.extract_strided_slice %21 {offsets = [0, 80], sizes = [16, 16], strides = [1, 1]} : vector<16x128xbf16> to vector<16x16xbf16>
    %50 = vector.extract_strided_slice %29 {offsets = [0, 80], sizes = [24, 16], strides = [1, 1]} : vector<24x128xbf16> to vector<24x16xbf16>
    %cst_31 = arith.constant dense<0.000000e+00> : vector<16x24xf32>
    %51 = tpu.matmul %49, %50, %cst_31 {dimension_numbers = #tpu.dot_dimension_numbers<[1], [1], [0], [0], [0, 0, 1, 0], [], []>} : vector<16x16xbf16>, vector<24x16xbf16>, vector<16x24xf32> -> vector<16x24xf32>
    %52 = vector.extract_strided_slice %21 {offsets = [0, 96], sizes = [16, 16], strides = [1, 1]} : vector<16x128xbf16> to vector<16x16xbf16>
    %53 = vector.extract_strided_slice %29 {offsets = [0, 96], sizes = [24, 16], strides = [1, 1]} : vector<24x128xbf16> to vector<24x16xbf16>
    %cst_32 = arith.constant dense<0.000000e+00> : vector<16x24xf32>
    %54 = tpu.matmul %52, %53, %cst_32 {dimension_numbers = #tpu.dot_dimension_numbers<[1], [1], [0], [0], [0, 0, 1, 0], [], []>} : vector<16x16xbf16>, vector<24x16xbf16>, vector<16x24xf32> -> vector<16x24xf32>
    %55 = vector.extract_strided_slice %21 {offsets = [0, 112], sizes = [16, 16], strides = [1, 1]} : vector<16x128xbf16> to vector<16x16xbf16>
    %56 = vector.extract_strided_slice %29 {offsets = [0, 112], sizes = [24, 16], strides = [1, 1]} : vector<24x128xbf16> to vector<24x16xbf16>
    %cst_33 = arith.constant dense<0.000000e+00> : vector<16x24xf32>
    %57 = tpu.matmul %55, %56, %cst_33 {dimension_numbers = #tpu.dot_dimension_numbers<[1], [1], [0], [0], [0, 0, 1, 0], [], []>} : vector<16x16xbf16>, vector<24x16xbf16>, vector<16x24xf32> -> vector<16x24xf32>
    %58 = tpu.concatenate %36, %39, %42, %45, %48, %51, %54, %57 in 0 : vector<16x24xf32>, vector<16x24xf32>, vector<16x24xf32>, vector<16x24xf32>, vector<16x24xf32>, vector<16x24xf32>, vector<16x24xf32>, vector<16x24xf32> -> vector<128x24xf32>
    %59 = arith.addf %11, %58 : vector<128x24xf32>
    %cst_34 = arith.constant dense<0xFF800000> : vector<128xf32>
    %60 = vector.multi_reduction <maximumf>, %59, %cst_34 [1] : vector<128x24xf32> to vector<128xf32>
    %61 = vector.shape_cast %60 : vector<128xf32> to vector<128x1xf32>
    %62 = vector.broadcast %61 : vector<128x1xf32> to vector<128x24xf32>
    %63 = arith.subf %59, %62 : vector<128x24xf32>
    %64 = math.exp %63 : vector<128x24xf32>
    %cst_35 = arith.constant dense<0.000000e+00> : vector<128xf32>
    %65 = vector.multi_reduction <add>, %64, %cst_35 [1] : vector<128x24xf32> to vector<128xf32>
    %66 = vector.shape_cast %65 : vector<128xf32> to vector<128x1xf32>
    %67 = tpu.reciprocal %66 : vector<128x1xf32> -> vector<128x1xf32>
    %68 = vector.broadcast %67 : vector<128x1xf32> to vector<128x24xf32>
    %69 = arith.mulf %64, %68 : vector<128x24xf32>
    %70 = arith.truncf %69 : vector<128x24xf32> to vector<128x24xbf16>
    %71 = vector.extract_strided_slice %70 {offsets = [0, 0], sizes = [16, 24], strides = [1, 1]} : vector<128x24xbf16> to vector<16x24xbf16>
    %72 = vector.extract_strided_slice %33 {offsets = [0, 0], sizes = [24, 16], strides = [1, 1]} : vector<24x128xbf16> to vector<24x16xbf16>
    %cst_36 = arith.constant dense<0.000000e+00> : vector<16x16xf32>
    %73 = tpu.matmul %71, %72, %cst_36 {dimension_numbers = #tpu.dot_dimension_numbers<[1], [0], [0], [1], [0, 0, 1, 1], [], []>} : vector<16x24xbf16>, vector<24x16xbf16>, vector<16x16xf32> -> vector<16x16xf32>
    %c0_37 = arith.constant 0 : index
    %c0_38 = arith.constant 0 : index
    %74 = vector.load %arg15[%c0_37, %c0_38] : memref<16x128xf32, #tpu.memory_space<vmem>>, vector<16x16xf32>
    tpu.vector_store %arg15[%c0_37, %c0_38], %73 {strides = array<i32>} : memref<16x128xf32, #tpu.memory_space<vmem>>, vector<16x16xf32>,
    %75 = vector.extract_strided_slice %70 {offsets = [16, 0], sizes = [16, 24], strides = [1, 1]} : vector<128x24xbf16> to vector<16x24xbf16>
    %76 = vector.extract_strided_slice %33 {offsets = [0, 16], sizes = [24, 16], strides = [1, 1]} : vector<24x128xbf16> to vector<24x16xbf16>
    %cst_39 = arith.constant dense<0.000000e+00> : vector<16x16xf32>
    %77 = tpu.matmul %75, %76, %cst_39 {dimension_numbers = #tpu.dot_dimension_numbers<[1], [0], [0], [1], [0, 0, 1, 1], [], []>} : vector<16x24xbf16>, vector<24x16xbf16>, vector<16x16xf32> -> vector<16x16xf32>
    %c0_40 = arith.constant 0 : index
    %c16 = arith.constant 16 : index
    %78 = vector.load %arg15[%c0_40, %c16] : memref<16x128xf32, #tpu.memory_space<vmem>>, vector<16x16xf32>
    tpu.vector_store %arg15[%c0_40, %c16], %77 {strides = array<i32>} : memref<16x128xf32, #tpu.memory_space<vmem>>, vector<16x16xf32>,
    %79 = vector.extract_strided_slice %70 {offsets = [32, 0], sizes = [16, 24], strides = [1, 1]} : vector<128x24xbf16> to vector<16x24xbf16>
    %80 = vector.extract_strided_slice %33 {offsets = [0, 32], sizes = [24, 16], strides = [1, 1]} : vector<24x128xbf16> to vector<24x16xbf16>
    %cst_41 = arith.constant dense<0.000000e+00> : vector<16x16xf32>
    %81 = tpu.matmul %79, %80, %cst_41 {dimension_numbers = #tpu.dot_dimension_numbers<[1], [0], [0], [1], [0, 0, 1, 1], [], []>} : vector<16x24xbf16>, vector<24x16xbf16>, vector<16x16xf32> -> vector<16x16xf32>
    %c0_42 = arith.constant 0 : index
    %c32 = arith.constant 32 : index
    %82 = vector.load %arg15[%c0_42, %c32] : memref<16x128xf32, #tpu.memory_space<vmem>>, vector<16x16xf32>
    tpu.vector_store %arg15[%c0_42, %c32], %81 {strides = array<i32>} : memref<16x128xf32, #tpu.memory_space<vmem>>, vector<16x16xf32>,
    %83 = vector.extract_strided_slice %70 {offsets = [48, 0], sizes = [16, 24], strides = [1, 1]} : vector<128x24xbf16> to vector<16x24xbf16>
    %84 = vector.extract_strided_slice %33 {offsets = [0, 48], sizes = [24, 16], strides = [1, 1]} : vector<24x128xbf16> to vector<24x16xbf16>
    %cst_43 = arith.constant dense<0.000000e+00> : vector<16x16xf32>
    %85 = tpu.matmul %83, %84, %cst_43 {dimension_numbers = #tpu.dot_dimension_numbers<[1], [0], [0], [1], [0, 0, 1, 1], [], []>} : vector<16x24xbf16>, vector<24x16xbf16>, vector<16x16xf32> -> vector<16x16xf32>
    %c0_44 = arith.constant 0 : index
    %c48 = arith.constant 48 : index
    %86 = vector.load %arg15[%c0_44, %c48] : memref<16x128xf32, #tpu.memory_space<vmem>>, vector<16x16xf32>
    tpu.vector_store %arg15[%c0_44, %c48], %85 {strides = array<i32>} : memref<16x128xf32, #tpu.memory_space<vmem>>, vector<16x16xf32>,
    %87 = vector.extract_strided_slice %70 {offsets = [64, 0], sizes = [16, 24], strides = [1, 1]} : vector<128x24xbf16> to vector<16x24xbf16>
    %88 = vector.extract_strided_slice %33 {offsets = [0, 64], sizes = [24, 16], strides = [1, 1]} : vector<24x128xbf16> to vector<24x16xbf16>
    %cst_45 = arith.constant dense<0.000000e+00> : vector<16x16xf32>
    %89 = tpu.matmul %87, %88, %cst_45 {dimension_numbers = #tpu.dot_dimension_numbers<[1], [0], [0], [1], [0, 0, 1, 1], [], []>} : vector<16x24xbf16>, vector<24x16xbf16>, vector<16x16xf32> -> vector<16x16xf32>
    %c0_46 = arith.constant 0 : index
    %c64 = arith.constant 64 : index
    %90 = vector.load %arg15[%c0_46, %c64] : memref<16x128xf32, #tpu.memory_space<vmem>>, vector<16x16xf32>
    tpu.vector_store %arg15[%c0_46, %c64], %89 {strides = array<i32>} : memref<16x128xf32, #tpu.memory_space<vmem>>, vector<16x16xf32>,
    %91 = vector.extract_strided_slice %70 {offsets = [80, 0], sizes = [16, 24], strides = [1, 1]} : vector<128x24xbf16> to vector<16x24xbf16>
    %92 = vector.extract_strided_slice %33 {offsets = [0, 80], sizes = [24, 16], strides = [1, 1]} : vector<24x128xbf16> to vector<24x16xbf16>
    %cst_47 = arith.constant dense<0.000000e+00> : vector<16x16xf32>
    %93 = tpu.matmul %91, %92, %cst_47 {dimension_numbers = #tpu.dot_dimension_numbers<[1], [0], [0], [1], [0, 0, 1, 1], [], []>} : vector<16x24xbf16>, vector<24x16xbf16>, vector<16x16xf32> -> vector<16x16xf32>
    %c0_48 = arith.constant 0 : index
    %c80 = arith.constant 80 : index
    %94 = vector.load %arg15[%c0_48, %c80] : memref<16x128xf32, #tpu.memory_space<vmem>>, vector<16x16xf32>
    tpu.vector_store %arg15[%c0_48, %c80], %93 {strides = array<i32>} : memref<16x128xf32, #tpu.memory_space<vmem>>, vector<16x16xf32>,
    %95 = vector.extract_strided_slice %70 {offsets = [96, 0], sizes = [16, 24], strides = [1, 1]} : vector<128x24xbf16> to vector<16x24xbf16>
    %96 = vector.extract_strided_slice %33 {offsets = [0, 96], sizes = [24, 16], strides = [1, 1]} : vector<24x128xbf16> to vector<24x16xbf16>
    %cst_49 = arith.constant dense<0.000000e+00> : vector<16x16xf32>
    %97 = tpu.matmul %95, %96, %cst_49 {dimension_numbers = #tpu.dot_dimension_numbers<[1], [0], [0], [1], [0, 0, 1, 1], [], []>} : vector<16x24xbf16>, vector<24x16xbf16>, vector<16x16xf32> -> vector<16x16xf32>
    %c0_50 = arith.constant 0 : index
    %c96 = arith.constant 96 : index
    %98 = vector.load %arg15[%c0_50, %c96] : memref<16x128xf32, #tpu.memory_space<vmem>>, vector<16x16xf32>
    tpu.vector_store %arg15[%c0_50, %c96], %97 {strides = array<i32>} : memref<16x128xf32, #tpu.memory_space<vmem>>, vector<16x16xf32>,
    %99 = vector.extract_strided_slice %70 {offsets = [112, 0], sizes = [16, 24], strides = [1, 1]} : vector<128x24xbf16> to vector<16x24xbf16>
    %100 = vector.extract_strided_slice %33 {offsets = [0, 112], sizes = [24, 16], strides = [1, 1]} : vector<24x128xbf16> to vector<24x16xbf16>
    %cst_51 = arith.constant dense<0.000000e+00> : vector<16x16xf32>
    %101 = tpu.matmul %99, %100, %cst_51 {dimension_numbers = #tpu.dot_dimension_numbers<[1], [0], [0], [1], [0, 0, 1, 1], [], []>} : vector<16x24xbf16>, vector<24x16xbf16>, vector<16x16xf32> -> vector<16x16xf32>
    %c0_52 = arith.constant 0 : index
    %c112 = arith.constant 112 : index
    %102 = vector.load %arg15[%c0_52, %c112] : memref<16x128xf32, #tpu.memory_space<vmem>>, vector<16x16xf32>
    tpu.vector_store %arg15[%c0_52, %c112], %101 {strides = array<i32>} : memref<16x128xf32, #tpu.memory_space<vmem>>, vector<16x16xf32>,
    %c0_53 = arith.constant 0 : index
    %c0_54 = arith.constant 0 : index
    %103 = vector.load %arg15[%c0_53, %c0_54] : memref<16x128xf32, #tpu.memory_space<vmem>>, vector<16x128xf32>
    %c0_55 = arith.constant 0 : index
    %c0_56 = arith.constant 0 : index
    %c0_57 = arith.constant 0 : index
    %104 = vector.load %arg13[%c0_55, %c0_56, %c0_57] : memref<3x1x128xf32, #tpu.memory_space<vmem>>, vector<1x1x128xf32>
    %105 = vector.shape_cast %104 : vector<1x1x128xf32> to vector<1x128xf32>
    %106 = vector.broadcast %105 : vector<1x128xf32> to vector<16x128xf32>
    %107 = arith.addf %103, %106 : vector<16x128xf32>
    %108 = arith.addf %8, %107 : vector<16x128xf32>
    %c0_58 = arith.constant 0 : index
    %c0_59 = arith.constant 0 : index
    %109 = vector.load %arg2[%c0_58, %c0_59] : memref<96x24xf32, #tpu.memory_space<vmem>>, vector<96x24xf32>
    %110 = arith.truncf %10 : vector<12x128xf32> to vector<12x128xbf16>
    %111 = arith.truncf %9 : vector<24x128xf32> to vector<24x128xbf16>
    %c1 = arith.constant 1 : index
    %c0_60 = arith.constant 0 : index
    %c0_61 = arith.constant 0 : index
    %112 = vector.load %arg8[%c1, %c0_60, %c0_61] : memref<3x128x128xbf16, #tpu.memory_space<vmem>>, vector<1x128x128xbf16>
    %113 = vector.shape_cast %112 : vector<1x128x128xbf16> to vector<128x128xbf16>
    %cst_62 = arith.constant dense<0.000000e+00> : vector<12x128xf32>
    %114 = tpu.matmul %110, %113, %cst_62 {dimension_numbers = #tpu.dot_dimension_numbers<[1], [0], [0], [1], [0, 0, 1, 1], [], []>} : vector<12x128xbf16>, vector<128x128xbf16>, vector<12x128xf32> -> vector<12x128xf32>
    %c1_63 = arith.constant 1 : index
    %c0_64 = arith.constant 0 : index
    %c0_65 = arith.constant 0 : index
    %115 = vector.load %arg9[%c1_63, %c0_64, %c0_65] : memref<3x1x128xf32, #tpu.memory_space<vmem>>, vector<1x1x128xf32>
    %116 = vector.shape_cast %115 : vector<1x1x128xf32> to vector<1x128xf32>
    %117 = vector.broadcast %116 : vector<1x128xf32> to vector<12x128xf32>
    %118 = arith.addf %114, %117 : vector<12x128xf32>
    %119 = arith.truncf %118 : vector<12x128xf32> to vector<12x128xbf16>
    %c1_66 = arith.constant 1 : index
    %c0_67 = arith.constant 0 : index
    %c0_68 = arith.constant 0 : index
    %120 = vector.load %arg10[%c1_66, %c0_67, %c0_68] : memref<3x128x128xbf16, #tpu.memory_space<vmem>>, vector<1x128x128xbf16>
    %121 = vector.shape_cast %120 : vector<1x128x128xbf16> to vector<128x128xbf16>
    %cst_69 = arith.constant dense<0.000000e+00> : vector<24x128xf32>
    %122 = tpu.matmul %111, %121, %cst_69 {dimension_numbers = #tpu.dot_dimension_numbers<[1], [0], [0], [1], [0, 0, 1, 1], [], []>} : vector<24x128xbf16>, vector<128x128xbf16>, vector<24x128xf32> -> vector<24x128xf32>
    %c1_70 = arith.constant 1 : index
    %c0_71 = arith.constant 0 : index
    %c0_72 = arith.constant 0 : index
    %123 = vector.load %arg11[%c1_70, %c0_71, %c0_72] : memref<3x1x128xf32, #tpu.memory_space<vmem>>, vector<1x1x128xf32>
    %124 = vector.shape_cast %123 : vector<1x1x128xf32> to vector<1x128xf32>
    %125 = vector.broadcast %124 : vector<1x128xf32> to vector<24x128xf32>
    %126 = arith.addf %122, %125 : vector<24x128xf32>
    %127 = arith.truncf %126 : vector<24x128xf32> to vector<24x128xbf16>
    %c1_73 = arith.constant 1 : index
    %c0_74 = arith.constant 0 : index
    %c0_75 = arith.constant 0 : index
    %128 = vector.load %arg12[%c1_73, %c0_74, %c0_75] : memref<3x128x128xbf16, #tpu.memory_space<vmem>>, vector<1x128x128xbf16>
    %129 = vector.shape_cast %128 : vector<1x128x128xbf16> to vector<128x128xbf16>
    %cst_76 = arith.constant dense<0.000000e+00> : vector<24x128xf32>
    %130 = tpu.matmul %111, %129, %cst_76 {dimension_numbers = #tpu.dot_dimension_numbers<[1], [0], [0], [1], [0, 0, 1, 1], [], []>} : vector<24x128xbf16>, vector<128x128xbf16>, vector<24x128xf32> -> vector<24x128xf32>
    %131 = arith.truncf %130 : vector<24x128xf32> to vector<24x128xbf16>
    %132 = vector.extract_strided_slice %119 {offsets = [0, 0], sizes = [12, 16], strides = [1, 1]} : vector<12x128xbf16> to vector<12x16xbf16>
    %133 = vector.extract_strided_slice %127 {offsets = [0, 0], sizes = [24, 16], strides = [1, 1]} : vector<24x128xbf16> to vector<24x16xbf16>
    %cst_77 = arith.constant dense<0.000000e+00> : vector<12x24xf32>
    %134 = tpu.matmul %132, %133, %cst_77 {dimension_numbers = #tpu.dot_dimension_numbers<[1], [1], [0], [0], [0, 0, 1, 0], [], []>} : vector<12x16xbf16>, vector<24x16xbf16>, vector<12x24xf32> -> vector<12x24xf32>
    %135 = vector.extract_strided_slice %119 {offsets = [0, 16], sizes = [12, 16], strides = [1, 1]} : vector<12x128xbf16> to vector<12x16xbf16>
    %136 = vector.extract_strided_slice %127 {offsets = [0, 16], sizes = [24, 16], strides = [1, 1]} : vector<24x128xbf16> to vector<24x16xbf16>
    %cst_78 = arith.constant dense<0.000000e+00> : vector<12x24xf32>
    %137 = tpu.matmul %135, %136, %cst_78 {dimension_numbers = #tpu.dot_dimension_numbers<[1], [1], [0], [0], [0, 0, 1, 0], [], []>} : vector<12x16xbf16>, vector<24x16xbf16>, vector<12x24xf32> -> vector<12x24xf32>
    %138 = vector.extract_strided_slice %119 {offsets = [0, 32], sizes = [12, 16], strides = [1, 1]} : vector<12x128xbf16> to vector<12x16xbf16>
    %139 = vector.extract_strided_slice %127 {offsets = [0, 32], sizes = [24, 16], strides = [1, 1]} : vector<24x128xbf16> to vector<24x16xbf16>
    %cst_79 = arith.constant dense<0.000000e+00> : vector<12x24xf32>
    %140 = tpu.matmul %138, %139, %cst_79 {dimension_numbers = #tpu.dot_dimension_numbers<[1], [1], [0], [0], [0, 0, 1, 0], [], []>} : vector<12x16xbf16>, vector<24x16xbf16>, vector<12x24xf32> -> vector<12x24xf32>
    %141 = vector.extract_strided_slice %119 {offsets = [0, 48], sizes = [12, 16], strides = [1, 1]} : vector<12x128xbf16> to vector<12x16xbf16>
    %142 = vector.extract_strided_slice %127 {offsets = [0, 48], sizes = [24, 16], strides = [1, 1]} : vector<24x128xbf16> to vector<24x16xbf16>
    %cst_80 = arith.constant dense<0.000000e+00> : vector<12x24xf32>
    %143 = tpu.matmul %141, %142, %cst_80 {dimension_numbers = #tpu.dot_dimension_numbers<[1], [1], [0], [0], [0, 0, 1, 0], [], []>} : vector<12x16xbf16>, vector<24x16xbf16>, vector<12x24xf32> -> vector<12x24xf32>
    %144 = vector.extract_strided_slice %119 {offsets = [0, 64], sizes = [12, 16], strides = [1, 1]} : vector<12x128xbf16> to vector<12x16xbf16>
    %145 = vector.extract_strided_slice %127 {offsets = [0, 64], sizes = [24, 16], strides = [1, 1]} : vector<24x128xbf16> to vector<24x16xbf16>
    %cst_81 = arith.constant dense<0.000000e+00> : vector<12x24xf32>
    %146 = tpu.matmul %144, %145, %cst_81 {dimension_numbers = #tpu.dot_dimension_numbers<[1], [1], [0], [0], [0, 0, 1, 0], [], []>} : vector<12x16xbf16>, vector<24x16xbf16>, vector<12x24xf32> -> vector<12x24xf32>
    %147 = vector.extract_strided_slice %119 {offsets = [0, 80], sizes = [12, 16], strides = [1, 1]} : vector<12x128xbf16> to vector<12x16xbf16>
    %148 = vector.extract_strided_slice %127 {offsets = [0, 80], sizes = [24, 16], strides = [1, 1]} : vector<24x128xbf16> to vector<24x16xbf16>
    %cst_82 = arith.constant dense<0.000000e+00> : vector<12x24xf32>
    %149 = tpu.matmul %147, %148, %cst_82 {dimension_numbers = #tpu.dot_dimension_numbers<[1], [1], [0], [0], [0, 0, 1, 0], [], []>} : vector<12x16xbf16>, vector<24x16xbf16>, vector<12x24xf32> -> vector<12x24xf32>
    %150 = vector.extract_strided_slice %119 {offsets = [0, 96], sizes = [12, 16], strides = [1, 1]} : vector<12x128xbf16> to vector<12x16xbf16>
    %151 = vector.extract_strided_slice %127 {offsets = [0, 96], sizes = [24, 16], strides = [1, 1]} : vector<24x128xbf16> to vector<24x16xbf16>
    %cst_83 = arith.constant dense<0.000000e+00> : vector<12x24xf32>
    %152 = tpu.matmul %150, %151, %cst_83 {dimension_numbers = #tpu.dot_dimension_numbers<[1], [1], [0], [0], [0, 0, 1, 0], [], []>} : vector<12x16xbf16>, vector<24x16xbf16>, vector<12x24xf32> -> vector<12x24xf32>
    %153 = vector.extract_strided_slice %119 {offsets = [0, 112], sizes = [12, 16], strides = [1, 1]} : vector<12x128xbf16> to vector<12x16xbf16>
    %154 = vector.extract_strided_slice %127 {offsets = [0, 112], sizes = [24, 16], strides = [1, 1]} : vector<24x128xbf16> to vector<24x16xbf16>
    %cst_84 = arith.constant dense<0.000000e+00> : vector<12x24xf32>
    %155 = tpu.matmul %153, %154, %cst_84 {dimension_numbers = #tpu.dot_dimension_numbers<[1], [1], [0], [0], [0, 0, 1, 0], [], []>} : vector<12x16xbf16>, vector<24x16xbf16>, vector<12x24xf32> -> vector<12x24xf32>
    %156 = tpu.concatenate %134, %137, %140, %143, %146, %149, %152, %155 in 0 : vector<12x24xf32>, vector<12x24xf32>, vector<12x24xf32>, vector<12x24xf32>, vector<12x24xf32>, vector<12x24xf32>, vector<12x24xf32>, vector<12x24xf32> -> vector<96x24xf32>
    %157 = arith.addf %109, %156 : vector<96x24xf32>
    %cst_85 = arith.constant dense<0xFF800000> : vector<96xf32>
    %158 = vector.multi_reduction <maximumf>, %157, %cst_85 [1] : vector<96x24xf32> to vector<96xf32>
    %159 = vector.shape_cast %158 : vector<96xf32> to vector<96x1xf32>
    %160 = vector.broadcast %159 : vector<96x1xf32> to vector<96x24xf32>
    %161 = arith.subf %157, %160 : vector<96x24xf32>
    %162 = math.exp %161 : vector<96x24xf32>
    %cst_86 = arith.constant dense<0.000000e+00> : vector<96xf32>
    %163 = vector.multi_reduction <add>, %162, %cst_86 [1] : vector<96x24xf32> to vector<96xf32>
    %164 = vector.shape_cast %163 : vector<96xf32> to vector<96x1xf32>
    %165 = tpu.reciprocal %164 : vector<96x1xf32> -> vector<96x1xf32>
    %166 = vector.broadcast %165 : vector<96x1xf32> to vector<96x24xf32>
    %167 = arith.mulf %162, %166 : vector<96x24xf32>
    %168 = arith.truncf %167 : vector<96x24xf32> to vector<96x24xbf16>
    %169 = vector.extract_strided_slice %168 {offsets = [0, 0], sizes = [12, 24], strides = [1, 1]} : vector<96x24xbf16> to vector<12x24xbf16>
    %170 = vector.extract_strided_slice %131 {offsets = [0, 0], sizes = [24, 16], strides = [1, 1]} : vector<24x128xbf16> to vector<24x16xbf16>
    %cst_87 = arith.constant dense<0.000000e+00> : vector<12x16xf32>
    %171 = tpu.matmul %169, %170, %cst_87 {dimension_numbers = #tpu.dot_dimension_numbers<[1], [0], [0], [1], [0, 0, 1, 1], [], []>} : vector<12x24xbf16>, vector<24x16xbf16>, vector<12x16xf32> -> vector<12x16xf32>
    %c0_88 = arith.constant 0 : index
    %c0_89 = arith.constant 0 : index
    %172 = vector.load %arg15[%c0_88, %c0_89] : memref<16x128xf32, #tpu.memory_space<vmem>>, vector<12x16xf32>
    tpu.vector_store %arg15[%c0_88, %c0_89], %171 {strides = array<i32>} : memref<16x128xf32, #tpu.memory_space<vmem>>, vector<12x16xf32>,
    %173 = vector.extract_strided_slice %168 {offsets = [12, 0], sizes = [12, 24], strides = [1, 1]} : vector<96x24xbf16> to vector<12x24xbf16>
    %174 = vector.extract_strided_slice %131 {offsets = [0, 16], sizes = [24, 16], strides = [1, 1]} : vector<24x128xbf16> to vector<24x16xbf16>
    %cst_90 = arith.constant dense<0.000000e+00> : vector<12x16xf32>
    %175 = tpu.matmul %173, %174, %cst_90 {dimension_numbers = #tpu.dot_dimension_numbers<[1], [0], [0], [1], [0, 0, 1, 1], [], []>} : vector<12x24xbf16>, vector<24x16xbf16>, vector<12x16xf32> -> vector<12x16xf32>
    %c0_91 = arith.constant 0 : index
    %c16_92 = arith.constant 16 : index
    %176 = vector.load %arg15[%c0_91, %c16_92] : memref<16x128xf32, #tpu.memory_space<vmem>>, vector<12x16xf32>
    tpu.vector_store %arg15[%c0_91, %c16_92], %175 {strides = array<i32>} : memref<16x128xf32, #tpu.memory_space<vmem>>, vector<12x16xf32>,
    %177 = vector.extract_strided_slice %168 {offsets = [24, 0], sizes = [12, 24], strides = [1, 1]} : vector<96x24xbf16> to vector<12x24xbf16>
    %178 = vector.extract_strided_slice %131 {offsets = [0, 32], sizes = [24, 16], strides = [1, 1]} : vector<24x128xbf16> to vector<24x16xbf16>
    %cst_93 = arith.constant dense<0.000000e+00> : vector<12x16xf32>
    %179 = tpu.matmul %177, %178, %cst_93 {dimension_numbers = #tpu.dot_dimension_numbers<[1], [0], [0], [1], [0, 0, 1, 1], [], []>} : vector<12x24xbf16>, vector<24x16xbf16>, vector<12x16xf32> -> vector<12x16xf32>
    %c0_94 = arith.constant 0 : index
    %c32_95 = arith.constant 32 : index
    %180 = vector.load %arg15[%c0_94, %c32_95] : memref<16x128xf32, #tpu.memory_space<vmem>>, vector<12x16xf32>
    tpu.vector_store %arg15[%c0_94, %c32_95], %179 {strides = array<i32>} : memref<16x128xf32, #tpu.memory_space<vmem>>, vector<12x16xf32>,
    %181 = vector.extract_strided_slice %168 {offsets = [36, 0], sizes = [12, 24], strides = [1, 1]} : vector<96x24xbf16> to vector<12x24xbf16>
    %182 = vector.extract_strided_slice %131 {offsets = [0, 48], sizes = [24, 16], strides = [1, 1]} : vector<24x128xbf16> to vector<24x16xbf16>
    %cst_96 = arith.constant dense<0.000000e+00> : vector<12x16xf32>
    %183 = tpu.matmul %181, %182, %cst_96 {dimension_numbers = #tpu.dot_dimension_numbers<[1], [0], [0], [1], [0, 0, 1, 1], [], []>} : vector<12x24xbf16>, vector<24x16xbf16>, vector<12x16xf32> -> vector<12x16xf32>
    %c0_97 = arith.constant 0 : index
    %c48_98 = arith.constant 48 : index
    %184 = vector.load %arg15[%c0_97, %c48_98] : memref<16x128xf32, #tpu.memory_space<vmem>>, vector<12x16xf32>
    tpu.vector_store %arg15[%c0_97, %c48_98], %183 {strides = array<i32>} : memref<16x128xf32, #tpu.memory_space<vmem>>, vector<12x16xf32>,
    %185 = vector.extract_strided_slice %168 {offsets = [48, 0], sizes = [12, 24], strides = [1, 1]} : vector<96x24xbf16> to vector<12x24xbf16>
    %186 = vector.extract_strided_slice %131 {offsets = [0, 64], sizes = [24, 16], strides = [1, 1]} : vector<24x128xbf16> to vector<24x16xbf16>
    %cst_99 = arith.constant dense<0.000000e+00> : vector<12x16xf32>
    %187 = tpu.matmul %185, %186, %cst_99 {dimension_numbers = #tpu.dot_dimension_numbers<[1], [0], [0], [1], [0, 0, 1, 1], [], []>} : vector<12x24xbf16>, vector<24x16xbf16>, vector<12x16xf32> -> vector<12x16xf32>
    %c0_100 = arith.constant 0 : index
    %c64_101 = arith.constant 64 : index
    %188 = vector.load %arg15[%c0_100, %c64_101] : memref<16x128xf32, #tpu.memory_space<vmem>>, vector<12x16xf32>
    tpu.vector_store %arg15[%c0_100, %c64_101], %187 {strides = array<i32>} : memref<16x128xf32, #tpu.memory_space<vmem>>, vector<12x16xf32>,
    %189 = vector.extract_strided_slice %168 {offsets = [60, 0], sizes = [12, 24], strides = [1, 1]} : vector<96x24xbf16> to vector<12x24xbf16>
    %190 = vector.extract_strided_slice %131 {offsets = [0, 80], sizes = [24, 16], strides = [1, 1]} : vector<24x128xbf16> to vector<24x16xbf16>
    %cst_102 = arith.constant dense<0.000000e+00> : vector<12x16xf32>
    %191 = tpu.matmul %189, %190, %cst_102 {dimension_numbers = #tpu.dot_dimension_numbers<[1], [0], [0], [1], [0, 0, 1, 1], [], []>} : vector<12x24xbf16>, vector<24x16xbf16>, vector<12x16xf32> -> vector<12x16xf32>
    %c0_103 = arith.constant 0 : index
    %c80_104 = arith.constant 80 : index
    %192 = vector.load %arg15[%c0_103, %c80_104] : memref<16x128xf32, #tpu.memory_space<vmem>>, vector<12x16xf32>
    tpu.vector_store %arg15[%c0_103, %c80_104], %191 {strides = array<i32>} : memref<16x128xf32, #tpu.memory_space<vmem>>, vector<12x16xf32>,
    %193 = vector.extract_strided_slice %168 {offsets = [72, 0], sizes = [12, 24], strides = [1, 1]} : vector<96x24xbf16> to vector<12x24xbf16>
    %194 = vector.extract_strided_slice %131 {offsets = [0, 96], sizes = [24, 16], strides = [1, 1]} : vector<24x128xbf16> to vector<24x16xbf16>
    %cst_105 = arith.constant dense<0.000000e+00> : vector<12x16xf32>
    %195 = tpu.matmul %193, %194, %cst_105 {dimension_numbers = #tpu.dot_dimension_numbers<[1], [0], [0], [1], [0, 0, 1, 1], [], []>} : vector<12x24xbf16>, vector<24x16xbf16>, vector<12x16xf32> -> vector<12x16xf32>
    %c0_106 = arith.constant 0 : index
    %c96_107 = arith.constant 96 : index
    %196 = vector.load %arg15[%c0_106, %c96_107] : memref<16x128xf32, #tpu.memory_space<vmem>>, vector<12x16xf32>
    tpu.vector_store %arg15[%c0_106, %c96_107], %195 {strides = array<i32>} : memref<16x128xf32, #tpu.memory_space<vmem>>, vector<12x16xf32>,
    %197 = vector.extract_strided_slice %168 {offsets = [84, 0], sizes = [12, 24], strides = [1, 1]} : vector<96x24xbf16> to vector<12x24xbf16>
    %198 = vector.extract_strided_slice %131 {offsets = [0, 112], sizes = [24, 16], strides = [1, 1]} : vector<24x128xbf16> to vector<24x16xbf16>
    %cst_108 = arith.constant dense<0.000000e+00> : vector<12x16xf32>
    %199 = tpu.matmul %197, %198, %cst_108 {dimension_numbers = #tpu.dot_dimension_numbers<[1], [0], [0], [1], [0, 0, 1, 1], [], []>} : vector<12x24xbf16>, vector<24x16xbf16>, vector<12x16xf32> -> vector<12x16xf32>
    %c0_109 = arith.constant 0 : index
    %c112_110 = arith.constant 112 : index
    %200 = vector.load %arg15[%c0_109, %c112_110] : memref<16x128xf32, #tpu.memory_space<vmem>>, vector<12x16xf32>
    tpu.vector_store %arg15[%c0_109, %c112_110], %199 {strides = array<i32>} : memref<16x128xf32, #tpu.memory_space<vmem>>, vector<12x16xf32>,
    %c0_111 = arith.constant 0 : index
    %c0_112 = arith.constant 0 : index
    %201 = vector.load %arg15[%c0_111, %c0_112] : memref<16x128xf32, #tpu.memory_space<vmem>>, vector<12x128xf32>
    %c1_113 = arith.constant 1 : index
    %c0_114 = arith.constant 0 : index
    %c0_115 = arith.constant 0 : index
    %202 = vector.load %arg13[%c1_113, %c0_114, %c0_115] : memref<3x1x128xf32, #tpu.memory_space<vmem>>, vector<1x1x128xf32>
    %203 = vector.shape_cast %202 : vector<1x1x128xf32> to vector<1x128xf32>
    %204 = vector.broadcast %203 : vector<1x128xf32> to vector<12x128xf32>
    %205 = arith.addf %201, %204 : vector<12x128xf32>
    %206 = arith.addf %10, %205 : vector<12x128xf32>
    %207 = arith.truncf %206 : vector<12x128xf32> to vector<12x128xbf16>
    %c0_116 = arith.constant 0 : index
    %c0_117 = arith.constant 0 : index
    %208 = vector.load %arg6[%c0_116, %c0_117] : memref<128x128xbf16, #tpu.memory_space<vmem>>, vector<128x128xbf16>
    %cst_118 = arith.constant dense<0.000000e+00> : vector<12x128xf32>
    %209 = tpu.matmul %207, %208, %cst_118 {dimension_numbers = #tpu.dot_dimension_numbers<[1], [0], [0], [1], [0, 0, 1, 1], [], []>} : vector<12x128xbf16>, vector<128x128xbf16>, vector<12x128xf32> -> vector<12x128xf32>
    %c0_119 = arith.constant 0 : index
    %c0_120 = arith.constant 0 : index
    %210 = vector.load %arg7[%c0_119, %c0_120] : memref<1x128xf32, #tpu.memory_space<vmem>>, vector<1x128xf32>
    %211 = vector.broadcast %210 : vector<1x128xf32> to vector<12x128xf32>
    %212 = arith.addf %209, %211 : vector<12x128xf32>
    %cst_121 = arith.constant 0.000000e+00 : f32
    %213 = vector.broadcast %cst_121 : f32 to vector<12x128xf32>
    %214 = arith.maximumf %212, %213 : vector<12x128xf32>
    %c0_122 = arith.constant 0 : index
    %c0_123 = arith.constant 0 : index
    %215 = vector.load %arg3[%c0_122, %c0_123] : memref<128x12xf32, #tpu.memory_space<vmem>>, vector<128x12xf32>
    %216 = arith.truncf %108 : vector<16x128xf32> to vector<16x128xbf16>
    %217 = arith.truncf %214 : vector<12x128xf32> to vector<12x128xbf16>
    %c2 = arith.constant 2 : index
    %c0_124 = arith.constant 0 : index
    %c0_125 = arith.constant 0 : index
    %218 = vector.load %arg8[%c2, %c0_124, %c0_125] : memref<3x128x128xbf16, #tpu.memory_space<vmem>>, vector<1x128x128xbf16>
    %219 = vector.shape_cast %218 : vector<1x128x128xbf16> to vector<128x128xbf16>
    %cst_126 = arith.constant dense<0.000000e+00> : vector<16x128xf32>
    %220 = tpu.matmul %216, %219, %cst_126 {dimension_numbers = #tpu.dot_dimension_numbers<[1], [0], [0], [1], [0, 0, 1, 1], [], []>} : vector<16x128xbf16>, vector<128x128xbf16>, vector<16x128xf32> -> vector<16x128xf32>
    %c2_127 = arith.constant 2 : index
    %c0_128 = arith.constant 0 : index
    %c0_129 = arith.constant 0 : index
    %221 = vector.load %arg9[%c2_127, %c0_128, %c0_129] : memref<3x1x128xf32, #tpu.memory_space<vmem>>, vector<1x1x128xf32>
    %222 = vector.shape_cast %221 : vector<1x1x128xf32> to vector<1x128xf32>
    %223 = vector.broadcast %222 : vector<1x128xf32> to vector<16x128xf32>
    %224 = arith.addf %220, %223 : vector<16x128xf32>
    %225 = arith.truncf %224 : vector<16x128xf32> to vector<16x128xbf16>
    %c2_130 = arith.constant 2 : index
    %c0_131 = arith.constant 0 : index
    %c0_132 = arith.constant 0 : index
    %226 = vector.load %arg10[%c2_130, %c0_131, %c0_132] : memref<3x128x128xbf16, #tpu.memory_space<vmem>>, vector<1x128x128xbf16>
    %227 = vector.shape_cast %226 : vector<1x128x128xbf16> to vector<128x128xbf16>
    %cst_133 = arith.constant dense<0.000000e+00> : vector<12x128xf32>
    %228 = tpu.matmul %217, %227, %cst_133 {dimension_numbers = #tpu.dot_dimension_numbers<[1], [0], [0], [1], [0, 0, 1, 1], [], []>} : vector<12x128xbf16>, vector<128x128xbf16>, vector<12x128xf32> -> vector<12x128xf32>
    %c2_134 = arith.constant 2 : index
    %c0_135 = arith.constant 0 : index
    %c0_136 = arith.constant 0 : index
    %229 = vector.load %arg11[%c2_134, %c0_135, %c0_136] : memref<3x1x128xf32, #tpu.memory_space<vmem>>, vector<1x1x128xf32>
    %230 = vector.shape_cast %229 : vector<1x1x128xf32> to vector<1x128xf32>
    %231 = vector.broadcast %230 : vector<1x128xf32> to vector<12x128xf32>
    %232 = arith.addf %228, %231 : vector<12x128xf32>
    %233 = arith.truncf %232 : vector<12x128xf32> to vector<12x128xbf16>
    %c2_137 = arith.constant 2 : index
    %c0_138 = arith.constant 0 : index
    %c0_139 = arith.constant 0 : index
    %234 = vector.load %arg12[%c2_137, %c0_138, %c0_139] : memref<3x128x128xbf16, #tpu.memory_space<vmem>>, vector<1x128x128xbf16>
    %235 = vector.shape_cast %234 : vector<1x128x128xbf16> to vector<128x128xbf16>
    %cst_140 = arith.constant dense<0.000000e+00> : vector<12x128xf32>
    %236 = tpu.matmul %217, %235, %cst_140 {dimension_numbers = #tpu.dot_dimension_numbers<[1], [0], [0], [1], [0, 0, 1, 1], [], []>} : vector<12x128xbf16>, vector<128x128xbf16>, vector<12x128xf32> -> vector<12x128xf32>
    %237 = arith.truncf %236 : vector<12x128xf32> to vector<12x128xbf16>
    %238 = vector.extract_strided_slice %225 {offsets = [0, 0], sizes = [16, 16], strides = [1, 1]} : vector<16x128xbf16> to vector<16x16xbf16>
    %239 = vector.extract_strided_slice %233 {offsets = [0, 0], sizes = [12, 16], strides = [1, 1]} : vector<12x128xbf16> to vector<12x16xbf16>
    %cst_141 = arith.constant dense<0.000000e+00> : vector<16x12xf32>
    %240 = tpu.matmul %238, %239, %cst_141 {dimension_numbers = #tpu.dot_dimension_numbers<[1], [1], [0], [0], [0, 0, 1, 0], [], []>} : vector<16x16xbf16>, vector<12x16xbf16>, vector<16x12xf32> -> vector<16x12xf32>
    %241 = vector.extract_strided_slice %225 {offsets = [0, 16], sizes = [16, 16], strides = [1, 1]} : vector<16x128xbf16> to vector<16x16xbf16>
    %242 = vector.extract_strided_slice %233 {offsets = [0, 16], sizes = [12, 16], strides = [1, 1]} : vector<12x128xbf16> to vector<12x16xbf16>
    %cst_142 = arith.constant dense<0.000000e+00> : vector<16x12xf32>
    %243 = tpu.matmul %241, %242, %cst_142 {dimension_numbers = #tpu.dot_dimension_numbers<[1], [1], [0], [0], [0, 0, 1, 0], [], []>} : vector<16x16xbf16>, vector<12x16xbf16>, vector<16x12xf32> -> vector<16x12xf32>
    %244 = vector.extract_strided_slice %225 {offsets = [0, 32], sizes = [16, 16], strides = [1, 1]} : vector<16x128xbf16> to vector<16x16xbf16>
    %245 = vector.extract_strided_slice %233 {offsets = [0, 32], sizes = [12, 16], strides = [1, 1]} : vector<12x128xbf16> to vector<12x16xbf16>
    %cst_143 = arith.constant dense<0.000000e+00> : vector<16x12xf32>
    %246 = tpu.matmul %244, %245, %cst_143 {dimension_numbers = #tpu.dot_dimension_numbers<[1], [1], [0], [0], [0, 0, 1, 0], [], []>} : vector<16x16xbf16>, vector<12x16xbf16>, vector<16x12xf32> -> vector<16x12xf32>
    %247 = vector.extract_strided_slice %225 {offsets = [0, 48], sizes = [16, 16], strides = [1, 1]} : vector<16x128xbf16> to vector<16x16xbf16>
    %248 = vector.extract_strided_slice %233 {offsets = [0, 48], sizes = [12, 16], strides = [1, 1]} : vector<12x128xbf16> to vector<12x16xbf16>
    %cst_144 = arith.constant dense<0.000000e+00> : vector<16x12xf32>
    %249 = tpu.matmul %247, %248, %cst_144 {dimension_numbers = #tpu.dot_dimension_numbers<[1], [1], [0], [0], [0, 0, 1, 0], [], []>} : vector<16x16xbf16>, vector<12x16xbf16>, vector<16x12xf32> -> vector<16x12xf32>
    %250 = vector.extract_strided_slice %225 {offsets = [0, 64], sizes = [16, 16], strides = [1, 1]} : vector<16x128xbf16> to vector<16x16xbf16>
    %251 = vector.extract_strided_slice %233 {offsets = [0, 64], sizes = [12, 16], strides = [1, 1]} : vector<12x128xbf16> to vector<12x16xbf16>
    %cst_145 = arith.constant dense<0.000000e+00> : vector<16x12xf32>
    %252 = tpu.matmul %250, %251, %cst_145 {dimension_numbers = #tpu.dot_dimension_numbers<[1], [1], [0], [0], [0, 0, 1, 0], [], []>} : vector<16x16xbf16>, vector<12x16xbf16>, vector<16x12xf32> -> vector<16x12xf32>
    %253 = vector.extract_strided_slice %225 {offsets = [0, 80], sizes = [16, 16], strides = [1, 1]} : vector<16x128xbf16> to vector<16x16xbf16>
    %254 = vector.extract_strided_slice %233 {offsets = [0, 80], sizes = [12, 16], strides = [1, 1]} : vector<12x128xbf16> to vector<12x16xbf16>
    %cst_146 = arith.constant dense<0.000000e+00> : vector<16x12xf32>
    %255 = tpu.matmul %253, %254, %cst_146 {dimension_numbers = #tpu.dot_dimension_numbers<[1], [1], [0], [0], [0, 0, 1, 0], [], []>} : vector<16x16xbf16>, vector<12x16xbf16>, vector<16x12xf32> -> vector<16x12xf32>
    %256 = vector.extract_strided_slice %225 {offsets = [0, 96], sizes = [16, 16], strides = [1, 1]} : vector<16x128xbf16> to vector<16x16xbf16>
    %257 = vector.extract_strided_slice %233 {offsets = [0, 96], sizes = [12, 16], strides = [1, 1]} : vector<12x128xbf16> to vector<12x16xbf16>
    %cst_147 = arith.constant dense<0.000000e+00> : vector<16x12xf32>
    %258 = tpu.matmul %256, %257, %cst_147 {dimension_numbers = #tpu.dot_dimension_numbers<[1], [1], [0], [0], [0, 0, 1, 0], [], []>} : vector<16x16xbf16>, vector<12x16xbf16>, vector<16x12xf32> -> vector<16x12xf32>
    %259 = vector.extract_strided_slice %225 {offsets = [0, 112], sizes = [16, 16], strides = [1, 1]} : vector<16x128xbf16> to vector<16x16xbf16>
    %260 = vector.extract_strided_slice %233 {offsets = [0, 112], sizes = [12, 16], strides = [1, 1]} : vector<12x128xbf16> to vector<12x16xbf16>
    %cst_148 = arith.constant dense<0.000000e+00> : vector<16x12xf32>
    %261 = tpu.matmul %259, %260, %cst_148 {dimension_numbers = #tpu.dot_dimension_numbers<[1], [1], [0], [0], [0, 0, 1, 0], [], []>} : vector<16x16xbf16>, vector<12x16xbf16>, vector<16x12xf32> -> vector<16x12xf32>
    %262 = tpu.concatenate %240, %243, %246, %249, %252, %255, %258, %261 in 0 : vector<16x12xf32>, vector<16x12xf32>, vector<16x12xf32>, vector<16x12xf32>, vector<16x12xf32>, vector<16x12xf32>, vector<16x12xf32>, vector<16x12xf32> -> vector<128x12xf32>
    %263 = arith.addf %215, %262 : vector<128x12xf32>
    %cst_149 = arith.constant dense<0xFF800000> : vector<128xf32>
    %264 = vector.multi_reduction <maximumf>, %263, %cst_149 [1] : vector<128x12xf32> to vector<128xf32>
    %265 = vector.shape_cast %264 : vector<128xf32> to vector<128x1xf32>
    %266 = vector.broadcast %265 : vector<128x1xf32> to vector<128x12xf32>
    %267 = arith.subf %263, %266 : vector<128x12xf32>
    %268 = math.exp %267 : vector<128x12xf32>
    %cst_150 = arith.constant dense<0.000000e+00> : vector<128xf32>
    %269 = vector.multi_reduction <add>, %268, %cst_150 [1] : vector<128x12xf32> to vector<128xf32>
    %270 = vector.shape_cast %269 : vector<128xf32> to vector<128x1xf32>
    %271 = tpu.reciprocal %270 : vector<128x1xf32> -> vector<128x1xf32>
    %272 = vector.broadcast %271 : vector<128x1xf32> to vector<128x12xf32>
    %273 = arith.mulf %268, %272 : vector<128x12xf32>
    %274 = arith.truncf %273 : vector<128x12xf32> to vector<128x12xbf16>
    %275 = vector.extract_strided_slice %274 {offsets = [0, 0], sizes = [16, 12], strides = [1, 1]} : vector<128x12xbf16> to vector<16x12xbf16>
    %276 = vector.extract_strided_slice %237 {offsets = [0, 0], sizes = [12, 16], strides = [1, 1]} : vector<12x128xbf16> to vector<12x16xbf16>
    %cst_151 = arith.constant dense<0.000000e+00> : vector<16x16xf32>
    %277 = tpu.matmul %275, %276, %cst_151 {dimension_numbers = #tpu.dot_dimension_numbers<[1], [0], [0], [1], [0, 0, 1, 1], [], []>} : vector<16x12xbf16>, vector<12x16xbf16>, vector<16x16xf32> -> vector<16x16xf32>
    %c0_152 = arith.constant 0 : index
    %c0_153 = arith.constant 0 : index
    %278 = vector.load %arg15[%c0_152, %c0_153] : memref<16x128xf32, #tpu.memory_space<vmem>>, vector<16x16xf32>
    tpu.vector_store %arg15[%c0_152, %c0_153], %277 {strides = array<i32>} : memref<16x128xf32, #tpu.memory_space<vmem>>, vector<16x16xf32>,
    %279 = vector.extract_strided_slice %274 {offsets = [16, 0], sizes = [16, 12], strides = [1, 1]} : vector<128x12xbf16> to vector<16x12xbf16>
    %280 = vector.extract_strided_slice %237 {offsets = [0, 16], sizes = [12, 16], strides = [1, 1]} : vector<12x128xbf16> to vector<12x16xbf16>
    %cst_154 = arith.constant dense<0.000000e+00> : vector<16x16xf32>
    %281 = tpu.matmul %279, %280, %cst_154 {dimension_numbers = #tpu.dot_dimension_numbers<[1], [0], [0], [1], [0, 0, 1, 1], [], []>} : vector<16x12xbf16>, vector<12x16xbf16>, vector<16x16xf32> -> vector<16x16xf32>
    %c0_155 = arith.constant 0 : index
    %c16_156 = arith.constant 16 : index
    %282 = vector.load %arg15[%c0_155, %c16_156] : memref<16x128xf32, #tpu.memory_space<vmem>>, vector<16x16xf32>
    tpu.vector_store %arg15[%c0_155, %c16_156], %281 {strides = array<i32>} : memref<16x128xf32, #tpu.memory_space<vmem>>, vector<16x16xf32>,
    %283 = vector.extract_strided_slice %274 {offsets = [32, 0], sizes = [16, 12], strides = [1, 1]} : vector<128x12xbf16> to vector<16x12xbf16>
    %284 = vector.extract_strided_slice %237 {offsets = [0, 32], sizes = [12, 16], strides = [1, 1]} : vector<12x128xbf16> to vector<12x16xbf16>
    %cst_157 = arith.constant dense<0.000000e+00> : vector<16x16xf32>
    %285 = tpu.matmul %283, %284, %cst_157 {dimension_numbers = #tpu.dot_dimension_numbers<[1], [0], [0], [1], [0, 0, 1, 1], [], []>} : vector<16x12xbf16>, vector<12x16xbf16>, vector<16x16xf32> -> vector<16x16xf32>
    %c0_158 = arith.constant 0 : index
    %c32_159 = arith.constant 32 : index
    %286 = vector.load %arg15[%c0_158, %c32_159] : memref<16x128xf32, #tpu.memory_space<vmem>>, vector<16x16xf32>
    tpu.vector_store %arg15[%c0_158, %c32_159], %285 {strides = array<i32>} : memref<16x128xf32, #tpu.memory_space<vmem>>, vector<16x16xf32>,
    %287 = vector.extract_strided_slice %274 {offsets = [48, 0], sizes = [16, 12], strides = [1, 1]} : vector<128x12xbf16> to vector<16x12xbf16>
    %288 = vector.extract_strided_slice %237 {offsets = [0, 48], sizes = [12, 16], strides = [1, 1]} : vector<12x128xbf16> to vector<12x16xbf16>
    %cst_160 = arith.constant dense<0.000000e+00> : vector<16x16xf32>
    %289 = tpu.matmul %287, %288, %cst_160 {dimension_numbers = #tpu.dot_dimension_numbers<[1], [0], [0], [1], [0, 0, 1, 1], [], []>} : vector<16x12xbf16>, vector<12x16xbf16>, vector<16x16xf32> -> vector<16x16xf32>
    %c0_161 = arith.constant 0 : index
    %c48_162 = arith.constant 48 : index
    %290 = vector.load %arg15[%c0_161, %c48_162] : memref<16x128xf32, #tpu.memory_space<vmem>>, vector<16x16xf32>
    tpu.vector_store %arg15[%c0_161, %c48_162], %289 {strides = array<i32>} : memref<16x128xf32, #tpu.memory_space<vmem>>, vector<16x16xf32>,
    %291 = vector.extract_strided_slice %274 {offsets = [64, 0], sizes = [16, 12], strides = [1, 1]} : vector<128x12xbf16> to vector<16x12xbf16>
    %292 = vector.extract_strided_slice %237 {offsets = [0, 64], sizes = [12, 16], strides = [1, 1]} : vector<12x128xbf16> to vector<12x16xbf16>
    %cst_163 = arith.constant dense<0.000000e+00> : vector<16x16xf32>
    %293 = tpu.matmul %291, %292, %cst_163 {dimension_numbers = #tpu.dot_dimension_numbers<[1], [0], [0], [1], [0, 0, 1, 1], [], []>} : vector<16x12xbf16>, vector<12x16xbf16>, vector<16x16xf32> -> vector<16x16xf32>
    %c0_164 = arith.constant 0 : index
    %c64_165 = arith.constant 64 : index
    %294 = vector.load %arg15[%c0_164, %c64_165] : memref<16x128xf32, #tpu.memory_space<vmem>>, vector<16x16xf32>
    tpu.vector_store %arg15[%c0_164, %c64_165], %293 {strides = array<i32>} : memref<16x128xf32, #tpu.memory_space<vmem>>, vector<16x16xf32>,
    %295 = vector.extract_strided_slice %274 {offsets = [80, 0], sizes = [16, 12], strides = [1, 1]} : vector<128x12xbf16> to vector<16x12xbf16>
    %296 = vector.extract_strided_slice %237 {offsets = [0, 80], sizes = [12, 16], strides = [1, 1]} : vector<12x128xbf16> to vector<12x16xbf16>
    %cst_166 = arith.constant dense<0.000000e+00> : vector<16x16xf32>
    %297 = tpu.matmul %295, %296, %cst_166 {dimension_numbers = #tpu.dot_dimension_numbers<[1], [0], [0], [1], [0, 0, 1, 1], [], []>} : vector<16x12xbf16>, vector<12x16xbf16>, vector<16x16xf32> -> vector<16x16xf32>
    %c0_167 = arith.constant 0 : index
    %c80_168 = arith.constant 80 : index
    %298 = vector.load %arg15[%c0_167, %c80_168] : memref<16x128xf32, #tpu.memory_space<vmem>>, vector<16x16xf32>
    tpu.vector_store %arg15[%c0_167, %c80_168], %297 {strides = array<i32>} : memref<16x128xf32, #tpu.memory_space<vmem>>, vector<16x16xf32>,
    %299 = vector.extract_strided_slice %274 {offsets = [96, 0], sizes = [16, 12], strides = [1, 1]} : vector<128x12xbf16> to vector<16x12xbf16>
    %300 = vector.extract_strided_slice %237 {offsets = [0, 96], sizes = [12, 16], strides = [1, 1]} : vector<12x128xbf16> to vector<12x16xbf16>
    %cst_169 = arith.constant dense<0.000000e+00> : vector<16x16xf32>
    %301 = tpu.matmul %299, %300, %cst_169 {dimension_numbers = #tpu.dot_dimension_numbers<[1], [0], [0], [1], [0, 0, 1, 1], [], []>} : vector<16x12xbf16>, vector<12x16xbf16>, vector<16x16xf32> -> vector<16x16xf32>
    %c0_170 = arith.constant 0 : index
    %c96_171 = arith.constant 96 : index
    %302 = vector.load %arg15[%c0_170, %c96_171] : memref<16x128xf32, #tpu.memory_space<vmem>>, vector<16x16xf32>
    tpu.vector_store %arg15[%c0_170, %c96_171], %301 {strides = array<i32>} : memref<16x128xf32, #tpu.memory_space<vmem>>, vector<16x16xf32>,
    %303 = vector.extract_strided_slice %274 {offsets = [112, 0], sizes = [16, 12], strides = [1, 1]} : vector<128x12xbf16> to vector<16x12xbf16>
    %304 = vector.extract_strided_slice %237 {offsets = [0, 112], sizes = [12, 16], strides = [1, 1]} : vector<12x128xbf16> to vector<12x16xbf16>
    %cst_172 = arith.constant dense<0.000000e+00> : vector<16x16xf32>
    %305 = tpu.matmul %303, %304, %cst_172 {dimension_numbers = #tpu.dot_dimension_numbers<[1], [0], [0], [1], [0, 0, 1, 1], [], []>} : vector<16x12xbf16>, vector<12x16xbf16>, vector<16x16xf32> -> vector<16x16xf32>
    %c0_173 = arith.constant 0 : index
    %c112_174 = arith.constant 112 : index
    %306 = vector.load %arg15[%c0_173, %c112_174] : memref<16x128xf32, #tpu.memory_space<vmem>>, vector<16x16xf32>
    tpu.vector_store %arg15[%c0_173, %c112_174], %305 {strides = array<i32>} : memref<16x128xf32, #tpu.memory_space<vmem>>, vector<16x16xf32>,
    %c0_175 = arith.constant 0 : index
    %c0_176 = arith.constant 0 : index
    %307 = vector.load %arg15[%c0_175, %c0_176] : memref<16x128xf32, #tpu.memory_space<vmem>>, vector<16x128xf32>
    %c2_177 = arith.constant 2 : index
    %c0_178 = arith.constant 0 : index
    %c0_179 = arith.constant 0 : index
    %308 = vector.load %arg13[%c2_177, %c0_178, %c0_179] : memref<3x1x128xf32, #tpu.memory_space<vmem>>, vector<1x1x128xf32>
    %309 = vector.shape_cast %308 : vector<1x1x128xf32> to vector<1x128xf32>
    %310 = vector.broadcast %309 : vector<1x128xf32> to vector<16x128xf32>
    %311 = arith.addf %307, %310 : vector<16x128xf32>
    %312 = arith.addf %108, %311 : vector<16x128xf32>
    %c0_180 = arith.constant 0 : index
    %c0_181 = arith.constant 0 : index
    %313 = vector.load %arg14[%c0_180, %c0_181] : memref<16x128xf32, #tpu.memory_space<vmem>>, vector<16x128xf32>
    tpu.vector_store %arg14[%c0_180, %c0_181], %312 {strides = array<i32>} : memref<16x128xf32, #tpu.memory_space<vmem>>, vector<16x128xf32>,
    return
  }
}

</mosaic_0001>

<llo_original>
// kernel: rdn_forward.1
$region0: #{rdn_forward.1}
  #allocation0 [shape = 'u32[]', space=smem, size = 0x4, offset = 0x4, fixed_abs, tag = 'smem constant byte address 0x4 - core index']
  #allocation1 [shape = 'u32[144,128]{1,0:T(1,128)}', space=vmem, size = 0x12000, scoped, tag = 'internal scratch']
  #allocation2 [shape = 'f32[16,128]{1,0:T(8,128)}', space=vmem, size = 0x2000, scoped, tag = 'scratch operand']
  %s0 = inlined_call_operand.vmem [shape: bf16[52,64], index: 0, kind: input, shape index: {}]
  %s1 = inlined_call_operand.vmem [shape: f32[128,24], index: 1, kind: input, shape index: {}]
  %s2 = inlined_call_operand.vmem [shape: f32[96,24], index: 2, kind: input, shape index: {}]
  %s3 = inlined_call_operand.vmem [shape: f32[128,12], index: 3, kind: input, shape index: {}]
  %s4 = inlined_call_operand.vmem [shape: bf16[64,128], index: 4, kind: input, shape index: {}]
  %s5 = inlined_call_operand.vmem [shape: f32[1,128], index: 5, kind: input, shape index: {}]
  %s6 = inlined_call_operand.vmem [shape: bf16[128,128], index: 6, kind: input, shape index: {}]
  %s7 = inlined_call_operand.vmem [shape: f32[1,128], index: 7, kind: input, shape index: {}]
  %s8 = inlined_call_operand.vmem [shape: bf16[3,128,128], index: 8, kind: input, shape index: {}]
  %s9 = inlined_call_operand.vmem [shape: f32[3,1,128], index: 9, kind: input, shape index: {}]
  %s10 = inlined_call_operand.vmem [shape: bf16[3,128,128], index: 10, kind: input, shape index: {}]
  %s11 = inlined_call_operand.vmem [shape: f32[3,1,128], index: 11, kind: input, shape index: {}]
  %s12 = inlined_call_operand.vmem [shape: bf16[3,128,128], index: 12, kind: input, shape index: {}]
  %s13 = inlined_call_operand.vmem [shape: f32[3,1,128], index: 13, kind: input, shape index: {}]
  %s14 = inlined_call_operand.hbm [shape: f32[16,128], index: 14, kind: output, shape index: {}]
  %s15 = sld [smem:[#allocation0]]
  $region66: #{rdn_forward.1} parent=0
    _
  %s17 = ssub.s32 1, %s15
  %s18 = scalar_select 0, %s17, %s15
  $region1: #{rdn_forward.1} parent=0
    #allocation3 [shape = 'u8[8192]{0}', space=vmem, size = 0x2000, scoped, tag = 'output window, operand 0, single buffered']
    #allocation4 [shape = 's32[1]{0}', space=sflag, size = 0x4, scoped, tag = 'scoped memory for rdn_forward.1']
    %19 = vsyncpa [#allocation4], 0
    // Predicated region
    $region2: #{rdn_forward.1} parent=1 // pred_check
      _
    $region3: #{rdn_forward.1} parent=1 // pred_check_branch
      %21 = sbr.rel (0) target = $region5
    $region4: #{rdn_forward.1} parent=1 // pred_region
      _
    $region5: #{rdn_forward.1} parent=1 // pred_fallthru
      _
    // Predicated region
    $region6: #{rdn_forward.1} parent=1 // pred_check
      _
    $region7: #{rdn_forward.1} parent=1 // pred_check_branch
      %23 = sbr.rel (0) target = $region9
    $region8: #{rdn_forward.1} parent=1 // pred_region
      _
    $region9: #{rdn_forward.1} parent=1 // pred_fallthru
      _
    // Predicated region
    $region10: #{rdn_forward.1} parent=1 // pred_check
      _
    $region11: #{rdn_forward.1} parent=1 // pred_check_branch
      %25 = sbr.rel (0) target = $region13
    $region12: #{rdn_forward.1} parent=1 // pred_region
      _
    $region13: #{rdn_forward.1} parent=1 // pred_fallthru
      _
    // Predicated region
    $region14: #{rdn_forward.1} parent=1 // pred_check
      _
    $region15: #{rdn_forward.1} parent=1 // pred_check_branch
      %27 = sbr.rel (0) target = $region17
    $region16: #{rdn_forward.1} parent=1 // pred_region
      _
    $region17: #{rdn_forward.1} parent=1 // pred_fallthru
      _
    // Predicated region
    $region18: #{rdn_forward.1} parent=1 // pred_check
      _
    $region19: #{rdn_forward.1} parent=1 // pred_check_branch
      %29 = sbr.rel (0) target = $region21
    $region20: #{rdn_forward.1} parent=1 // pred_region
      _
    $region21: #{rdn_forward.1} parent=1 // pred_fallthru
      _
    // Predicated region
    $region22: #{rdn_forward.1} parent=1 // pred_check
      _
    $region23: #{rdn_forward.1} parent=1 // pred_check_branch
      %31 = sbr.rel (0) target = $region25
    $region24: #{rdn_forward.1} parent=1 // pred_region
      _
    $region25: #{rdn_forward.1} parent=1 // pred_fallthru
      _
    // Predicated region
    $region26: #{rdn_forward.1} parent=1 // pred_check
      _
    $region27: #{rdn_forward.1} parent=1 // pred_check_branch
      %33 = sbr.rel (0) target = $region29
    $region28: #{rdn_forward.1} parent=1 // pred_region
      _
    $region29: #{rdn_forward.1} parent=1 // pred_fallthru
      _
    // Predicated region
    $region30: #{rdn_forward.1} parent=1 // pred_check
      _
    $region31: #{rdn_forward.1} parent=1 // pred_check_branch
      %35 = sbr.rel (0) target = $region33
    $region32: #{rdn_forward.1} parent=1 // pred_region
      _
    $region33: #{rdn_forward.1} parent=1 // pred_fallthru
      _
    // Predicated region
    $region34: #{rdn_forward.1} parent=1 // pred_check
      _
    $region35: #{rdn_forward.1} parent=1 // pred_check_branch
      %37 = sbr.rel (0) target = $region37
    $region36: #{rdn_forward.1} parent=1 // pred_region
      _
    $region37: #{rdn_forward.1} parent=1 // pred_fallthru
      _
    // Predicated region
    $region38: #{rdn_forward.1} parent=1 // pred_check
      _
    $region39: #{rdn_forward.1} parent=1 // pred_check_branch
      %39 = sbr.rel (0) target = $region41
    $region40: #{rdn_forward.1} parent=1 // pred_region
      _
    $region41: #{rdn_forward.1} parent=1 // pred_fallthru
      _
    // Predicated region
    $region42: #{rdn_forward.1} parent=1 // pred_check
      _
    $region43: #{rdn_forward.1} parent=1 // pred_check_branch
      %41 = sbr.rel (0) target = $region45
    $region44: #{rdn_forward.1} parent=1 // pred_region
      _
    $region45: #{rdn_forward.1} parent=1 // pred_fallthru
      _
    // Predicated region
    $region46: #{rdn_forward.1} parent=1 // pred_check
      _
    $region47: #{rdn_forward.1} parent=1 // pred_check_branch
      %43 = sbr.rel (0) target = $region49
    $region48: #{rdn_forward.1} parent=1 // pred_region
      _
    $region49: #{rdn_forward.1} parent=1 // pred_fallthru
      _
    // Predicated region
    $region50: #{rdn_forward.1} parent=1 // pred_check
      _
    $region51: #{rdn_forward.1} parent=1 // pred_check_branch
      %45 = sbr.rel (0) target = $region53
    $region52: #{rdn_forward.1} parent=1 // pred_region
      _
    $region53: #{rdn_forward.1} parent=1 // pred_fallthru
      _
    // Predicated region
    $region54: #{rdn_forward.1} parent=1 // pred_check
      _
    $region55: #{rdn_forward.1} parent=1 // pred_check_branch
      %47 = sbr.rel (0) target = $region57
    $region56: #{rdn_forward.1} parent=1 // pred_region
      _
    $region57: #{rdn_forward.1} parent=1 // pred_fallthru
      _
    %v49 = vld [vmem:[%s0] sm:$0xf]
    %v50 = vld [vmem:[%s0 + $0x4] sm:$0xf]
    %v51 = vld [vmem:[%s0 + $0x8] sm:$0xf]
    %v52 = vld [vmem:[%s0 + $0xc] sm:$0xf]
    %v53 = vld [vmem:[%s0 + $0x10] sm:$0xf]
    %v54 = vld [vmem:[%s0 + $0x14] sm:$0xf]
    %v55 = vld [vmem:[%s0 + $0x18] sm:$0x3]
    %v56 = vld [vmem:[%s4] sm:$0xf]
    %v57 = vld [vmem:[%s4 + $0x4] sm:$0xf]
    %v58 = vld [vmem:[%s4 + $0x8] sm:$0xf]
    %v59 = vld [vmem:[%s4 + $0xc] sm:$0xf]
    %v60 = vld [vmem:[%s4 + $0x10] sm:$0xf]
    %v61 = vld [vmem:[%s4 + $0x14] sm:$0xf]
    %v62 = vld [vmem:[%s4 + $0x18] sm:$0xf]
    %v63 = vld [vmem:[%s4 + $0x1c] sm:$0xf]
    %v64 = vld [vmem:[%s5] sm:$0x1]
    %v66 = vlaneseq
    %v67 = vshrl.u32 %v66, 7
    %v68 = vsub.s32 0, %v67
    %v69 = vrot.slane %v64, %v68
    %v78 = vunpack.c.l.b16 %v49
    %v79 = vunpack.c.l.b16 %v50
    %v80 = vunpack.c.l.b16 %v51
    %v81 = vunpack.c.l.b16 %v52
    %v82 = vunpack.c.l.b16 %v53
    %v83 = vunpack.c.l.b16 %v54
    %v84 = vunpack.c.l.b16 %v55
    %v85 = vpack.c.b16 %v79, %v78
    %v86 = vpack.c.b16 %v81, %v80
    %v87 = vpack.c.b16 %v83, %v82
    %v88 = vpack.c.b16 %v84, %v84
    %v97 = vunpack.c.l.b16 %v56
    %v98 = vunpack.c.l.b16 %v57
    %v99 = vunpack.c.l.b16 %v58
    %v100 = vunpack.c.l.b16 %v59
    %v101 = vunpack.c.l.b16 %v60
    %v102 = vunpack.c.l.b16 %v61
    %v103 = vunpack.c.l.b16 %v62
    %v104 = vunpack.c.l.b16 %v63
    %v105 = vpack.c.b16 %v98, %v97
    %v106 = vpack.c.b16 %v100, %v99
    %v107 = vpack.c.b16 %v102, %v101
    %v108 = vpack.c.b16 %v104, %v103
    %vm113 = vcmask 523264
    %v115 = vsel %vm113, %v85, 0
    %v118 = vsel %vm113, %v86, 0
    %v121 = vsel %vm113, %v87, 0
    %v124 = vsel %vm113, %v88, 0
    %126 = vmatprep.subr.bf16.mxu0 0
    %127 = vmatpush1.bf16.msra.mxu0 %v105
    %128 = vmatprep.subr.bf16.mxu0 0
    %129 = vmatpush1.bf16.msra.mxu0 %v106
    %130 = vmatprep.subr.bf16.mxu0 0
    %131 = vmatpush1.bf16.msra.mxu0 %v107
    %132 = vmatprep.subr.bf16.mxu0 0
    %133 = vmatpush1.bf16.msra.mxu0 %v108
    %134 = vmatprep.subr.bf16.mxu0 0
    %135 = vmatpush1.bf16.msra.mxu0 0
    %136 = vmatprep.subr.bf16.mxu0 0
    %137 = vmatpush1.bf16.msra.mxu0 0
    %138 = vmatprep.subr.bf16.mxu0 0
    %139 = vmatpush1.bf16.msra.mxu0 0
    %140 = vmatprep.subr.bf16.mxu0 0
    %141 = vmatpush1.bf16.msra.mxu0 0
    %142 = vmatprep.subr.bf16.mxu0 0
    %143 = vmatpush1.bf16.msra.mxu0 0
    %144 = vmatprep.subr.bf16.mxu0 0
    %145 = vmatpush1.bf16.msra.mxu0 0
    %146 = vmatprep.subr.bf16.mxu0 0
    %147 = vmatpush1.bf16.msra.mxu0 0
    %148 = vmatprep.subr.bf16.mxu0 0
    %149 = vmatpush1.bf16.msra.mxu0 0
    %150 = vmatprep.subr.bf16.mxu0 0
    %151 = vmatpush1.bf16.msra.mxu0 0
    %152 = vmatprep.subr.bf16.mxu0 0
    %153 = vmatpush1.bf16.msra.mxu0 0
    %154 = vmatprep.subr.bf16.mxu0 0
    %155 = vmatpush1.bf16.msra.mxu0 0
    %156 = vmatprep.subr.bf16.mxu0 0
    %157 = vmatpush1.bf16.msra.mxu0 0
    %158 = vmatprep.mubr.bf16.mxu0 0
    %159 = vmatmul.mubr.bf16.gmra.mrb[0].mxu0 %v115
    %v160 = vpop.f32.mrb[0].mxu0
    %v161 = vadd.f32 %v69, %v160
    %v162 = vpop.f32.mrb[0].mxu0
    %v163 = vpop.f32.mrb[0].mxu0
    %v164 = vadd.f32 %v69, %v163
    %v165 = vpop.f32.mrb[0].mxu0
    %166 = vmatprep.mubr.bf16.mxu0 0
    %167 = vmatmul.mubr.bf16.gmra.mrb[0].mxu0 %v118
    %v168 = vpop.f32.mrb[0].mxu0
    %v169 = vadd.f32 %v69, %v168
    %v170 = vpop.f32.mrb[0].mxu0
    %v171 = vpop.f32.mrb[0].mxu0
    %v172 = vadd.f32 %v69, %v171
    %v173 = vpop.f32.mrb[0].mxu0
    %174 = vmatprep.mubr.bf16.mxu0 0
    %175 = vmatmul.mubr.bf16.gmra.mrb[0].mxu0 %v121
    %v176 = vpop.f32.mrb[0].mxu0
    %v177 = vadd.f32 %v69, %v176
    %v178 = vpop.f32.mrb[0].mxu0
    %v179 = vpop.f32.mrb[0].mxu0
    %v180 = vadd.f32 %v69, %v179
    %v181 = vpop.f32.mrb[0].mxu0
    %182 = vmatprep.mubr.bf16.mxu0 0
    %183 = vmatmul.mubr.bf16.gmra.mrb[0].mxu0 %v124
    %v184 = vpop.f32.mrb[0].mxu0
    %v185 = vadd.f32 %v69, %v184
    %v186 = vpop.f32.mrb[0].mxu0
    %v187 = vpop.f32.mrb[0].mxu0
    %v188 = vpop.f32.mrb[0].mxu0
    %189 = vdwg.mxu0
    %v190 = vmax.f32 %v161, 0.0
    %v191 = vmax.f32 %v164, 0.0
    %v192 = vmax.f32 %v169, 0.0
    %v193 = vmax.f32 %v172, 0.0
    %v194 = vmax.f32 %v177, 0.0
    %v195 = vmax.f32 %v180, 0.0
    %v196 = vmax.f32 %v185, 0.0
    %v197 = vld [vmem:[%s1] sm:$0xff]
    %v198 = vld [vmem:[%s1 + $0x8] sm:$0xff]
    %v199 = vld [vmem:[%s1 + $0x10] sm:$0xff]
    %v200 = vld [vmem:[%s1 + $0x18] sm:$0xff]
    %v201 = vld [vmem:[%s1 + $0x20] sm:$0xff]
    %v202 = vld [vmem:[%s1 + $0x28] sm:$0xff]
    %v203 = vld [vmem:[%s1 + $0x30] sm:$0xff]
    %v204 = vld [vmem:[%s1 + $0x38] sm:$0xff]
    %v205 = vld [vmem:[%s1 + $0x40] sm:$0xff]
    %v206 = vld [vmem:[%s1 + $0x48] sm:$0xff]
    %v207 = vld [vmem:[%s1 + $0x50] sm:$0xff]
    %v208 = vld [vmem:[%s1 + $0x58] sm:$0xff]
    %v209 = vld [vmem:[%s1 + $0x60] sm:$0xff]
    %v210 = vld [vmem:[%s1 + $0x68] sm:$0xff]
    %v211 = vld [vmem:[%s1 + $0x70] sm:$0xff]
    %v212 = vld [vmem:[%s1 + $0x78] sm:$0xff]
    %v213 = vpack.c.bf16 %v191, %v190
    %v214 = vpack.c.bf16 %v193, %v192
    %v215 = vpack.c.bf16 %v194, %v194
    %v216 = vld [vmem:[%s8] sm:$0xf]
    %v217 = vld [vmem:[%s8 + $0x4] sm:$0xf]
    %v218 = vld [vmem:[%s8 + $0x8] sm:$0xf]
    %v219 = vld [vmem:[%s8 + $0xc] sm:$0xf]
    %v220 = vld [vmem:[%s8 + $0x10] sm:$0xf]
    %v221 = vld [vmem:[%s8 + $0x14] sm:$0xf]
    %v222 = vld [vmem:[%s8 + $0x18] sm:$0xf]
    %v223 = vld [vmem:[%s8 + $0x1c] sm:$0xf]
    %v224 = vld [vmem:[%s8 + $0x20] sm:$0xf]
    %v225 = vld [vmem:[%s8 + $0x24] sm:$0xf]
    %v226 = vld [vmem:[%s8 + $0x28] sm:$0xf]
    %v227 = vld [vmem:[%s8 + $0x2c] sm:$0xf]
    %v228 = vld [vmem:[%s8 + $0x30] sm:$0xf]
    %v229 = vld [vmem:[%s8 + $0x34] sm:$0xf]
    %v230 = vld [vmem:[%s8 + $0x38] sm:$0xf]
    %v231 = vld [vmem:[%s8 + $0x3c] sm:$0xf]
    %v232 = vld [vmem:[%s9] sm:$0x1]
    %v234 = vlaneseq
    %v235 = vshrl.u32 %v234, 7
    %v236 = vsub.s32 0, %v235
    %v237 = vrot.slane %v232, %v236
    %v255 = vunpack.c.l.b16 %v216
    %v256 = vunpack.c.l.b16 %v217
    %v257 = vunpack.c.l.b16 %v218
    %v258 = vunpack.c.l.b16 %v219
    %v259 = vunpack.c.l.b16 %v220
    %v260 = vunpack.c.l.b16 %v221
    %v261 = vunpack.c.l.b16 %v222
    %v262 = vunpack.c.l.b16 %v223
    %v263 = vunpack.c.l.b16 %v224
    %v264 = vunpack.c.l.b16 %v225
    %v265 = vunpack.c.l.b16 %v226
    %v266 = vunpack.c.l.b16 %v227
    %v267 = vunpack.c.l.b16 %v228
    %v268 = vunpack.c.l.b16 %v229
    %v269 = vunpack.c.l.b16 %v230
    %v270 = vunpack.c.l.b16 %v231
    %v271 = vpack.c.b16 %v256, %v255
    %v272 = vpack.c.b16 %v258, %v257
    %v273 = vpack.c.b16 %v260, %v259
    %v274 = vpack.c.b16 %v262, %v261
    %v275 = vpack.c.b16 %v264, %v263
    %v276 = vpack.c.b16 %v266, %v265
    %v277 = vpack.c.b16 %v268, %v267
    %v278 = vpack.c.b16 %v270, %v269
    %287 = vmatprep.subr.bf16.mxu0 0
    %288 = vmatpush1.bf16.msra.mxu0 %v271
    %289 = vmatprep.subr.bf16.mxu0 0
    %290 = vmatpush1.bf16.msra.mxu0 %v272
    %291 = vmatprep.subr.bf16.mxu0 0
    %292 = vmatpush1.bf16.msra.mxu0 %v273
    %293 = vmatprep.subr.bf16.mxu0 0
    %294 = vmatpush1.bf16.msra.mxu0 %v274
    %295 = vmatprep.subr.bf16.mxu0 0
    %296 = vmatpush1.bf16.msra.mxu0 %v275
    %297 = vmatprep.subr.bf16.mxu0 0
    %298 = vmatpush1.bf16.msra.mxu0 %v276
    %299 = vmatprep.subr.bf16.mxu0 0
    %300 = vmatpush1.bf16.msra.mxu0 %v277
    %301 = vmatprep.subr.bf16.mxu0 0
    %302 = vmatpush1.bf16.msra.mxu0 %v278
    %303 = vmatprep.subr.bf16.mxu0 0
    %304 = vmatpush1.bf16.msra.mxu0 0
    %305 = vmatprep.subr.bf16.mxu0 0
    %306 = vmatpush1.bf16.msra.mxu0 0
    %307 = vmatprep.subr.bf16.mxu0 0
    %308 = vmatpush1.bf16.msra.mxu0 0
    %309 = vmatprep.subr.bf16.mxu0 0
    %310 = vmatpush1.bf16.msra.mxu0 0
    %311 = vmatprep.subr.bf16.mxu0 0
    %312 = vmatpush1.bf16.msra.mxu0 0
    %313 = vmatprep.subr.bf16.mxu0 0
    %314 = vmatpush1.bf16.msra.mxu0 0
    %315 = vmatprep.subr.bf16.mxu0 0
    %316 = vmatpush1.bf16.msra.mxu0 0
    %317 = vmatprep.subr.bf16.mxu0 0
    %318 = vmatpush1.bf16.msra.mxu0 0
    %319 = vmatprep.mubr.bf16.mxu0 0
    %320 = vmatmul.mubr.bf16.gmra.mrb[0].mxu0 %v213
    %v321 = vpop.f32.mrb[0].mxu0
    %v322 = vadd.f32 %v237, %v321
    %v323 = vpop.f32.mrb[0].mxu0
    %v324 = vpop.f32.mrb[0].mxu0
    %v325 = vadd.f32 %v237, %v324
    %v326 = vpop.f32.mrb[0].mxu0
    %327 = vdwg.mxu0
    %v328 = vpack.c.bf16 %v325, %v322
    %v329 = vld [vmem:[%s10] sm:$0xf]
    %v330 = vld [vmem:[%s10 + $0x4] sm:$0xf]
    %v331 = vld [vmem:[%s10 + $0x8] sm:$0xf]
    %v332 = vld [vmem:[%s10 + $0xc] sm:$0xf]
    %v333 = vld [vmem:[%s10 + $0x10] sm:$0xf]
    %v334 = vld [vmem:[%s10 + $0x14] sm:$0xf]
    %v335 = vld [vmem:[%s10 + $0x18] sm:$0xf]
    %v336 = vld [vmem:[%s10 + $0x1c] sm:$0xf]
    %v337 = vld [vmem:[%s10 + $0x20] sm:$0xf]
    %v338 = vld [vmem:[%s10 + $0x24] sm:$0xf]
    %v339 = vld [vmem:[%s10 + $0x28] sm:$0xf]
    %v340 = vld [vmem:[%s10 + $0x2c] sm:$0xf]
    %v341 = vld [vmem:[%s10 + $0x30] sm:$0xf]
    %v342 = vld [vmem:[%s10 + $0x34] sm:$0xf]
    %v343 = vld [vmem:[%s10 + $0x38] sm:$0xf]
    %v344 = vld [vmem:[%s10 + $0x3c] sm:$0xf]
    %v345 = vld [vmem:[%s11] sm:$0x1]
    %v347 = vlaneseq
    %v348 = vshrl.u32 %v347, 7
    %v349 = vsub.s32 0, %v348
    %v350 = vrot.slane %v345, %v349
    %v368 = vunpack.c.l.b16 %v329
    %v369 = vunpack.c.l.b16 %v330
    %v370 = vunpack.c.l.b16 %v331
    %v371 = vunpack.c.l.b16 %v332
    %v372 = vunpack.c.l.b16 %v333
    %v373 = vunpack.c.l.b16 %v334
    %v374 = vunpack.c.l.b16 %v335
    %v375 = vunpack.c.l.b16 %v336
    %v376 = vunpack.c.l.b16 %v337
    %v377 = vunpack.c.l.b16 %v338
    %v378 = vunpack.c.l.b16 %v339
    %v379 = vunpack.c.l.b16 %v340
    %v380 = vunpack.c.l.b16 %v341
    %v381 = vunpack.c.l.b16 %v342
    %v382 = vunpack.c.l.b16 %v343
    %v383 = vunpack.c.l.b16 %v344
    %v384 = vpack.c.b16 %v369, %v368
    %v385 = vpack.c.b16 %v371, %v370
    %v386 = vpack.c.b16 %v373, %v372
    %v387 = vpack.c.b16 %v375, %v374
    %v388 = vpack.c.b16 %v377, %v376
    %v389 = vpack.c.b16 %v379, %v378
    %v390 = vpack.c.b16 %v381, %v380
    %v391 = vpack.c.b16 %v383, %v382
    %400 = vmatprep.subr.bf16.mxu0 0
    %401 = vmatpush1.bf16.msra.mxu0 %v384
    %402 = vmatprep.subr.bf16.mxu0 0
    %403 = vmatpush1.bf16.msra.mxu0 %v385
    %404 = vmatprep.subr.bf16.mxu0 0
    %405 = vmatpush1.bf16.msra.mxu0 %v386
    %406 = vmatprep.subr.bf16.mxu0 0
    %407 = vmatpush1.bf16.msra.mxu0 %v387
    %408 = vmatprep.subr.bf16.mxu0 0
    %409 = vmatpush1.bf16.msra.mxu0 %v388
    %410 = vmatprep.subr.bf16.mxu0 0
    %411 = vmatpush1.bf16.msra.mxu0 %v389
    %412 = vmatprep.subr.bf16.mxu0 0
    %413 = vmatpush1.bf16.msra.mxu0 %v390
    %414 = vmatprep.subr.bf16.mxu0 0
    %415 = vmatpush1.bf16.msra.mxu0 %v391
    %416 = vmatprep.subr.bf16.mxu0 0
    %417 = vmatpush1.bf16.msra.mxu0 0
    %418 = vmatprep.subr.bf16.mxu0 0
    %419 = vmatpush1.bf16.msra.mxu0 0
    %420 = vmatprep.subr.bf16.mxu0 0
    %421 = vmatpush1.bf16.msra.mxu0 0
    %422 = vmatprep.subr.bf16.mxu0 0
    %423 = vmatpush1.bf16.msra.mxu0 0
    %424 = vmatprep.subr.bf16.mxu0 0
    %425 = vmatpush1.bf16.msra.mxu0 0
    %426 = vmatprep.subr.bf16.mxu0 0
    %427 = vmatpush1.bf16.msra.mxu0 0
    %428 = vmatprep.subr.bf16.mxu0 0
    %429 = vmatpush1.bf16.msra.mxu0 0
    %430 = vmatprep.subr.bf16.mxu0 0
    %431 = vmatpush1.bf16.msra.mxu0 0
    %432 = vmatprep.mubr.bf16.mxu0 0
    %433 = vmatmul.mubr.bf16.gmra.mrb[0].mxu0 %v214
    %v434 = vpop.f32.mrb[0].mxu0
    %v435 = vadd.f32 %v350, %v434
    %v436 = vpop.f32.mrb[0].mxu0
    %v437 = vpop.f32.mrb[0].mxu0
    %v438 = vadd.f32 %v350, %v437
    %v439 = vpop.f32.mrb[0].mxu0
    %440 = vmatprep.mubr.bf16.mxu0 0
    %441 = vmatmul.mubr.bf16.gmra.mrb[0].mxu0 %v215
    %v442 = vpop.f32.mrb[0].mxu0
    %v443 = vadd.f32 %v350, %v442
    %v444 = vpop.f32.mrb[0].mxu0
    %v445 = vpop.f32.mrb[0].mxu0
    %v446 = vpop.f32.mrb[0].mxu0
    %447 = vdwg.mxu0
    %v448 = vpack.c.bf16 %v438, %v435
    %v449 = vpack.c.bf16 %v443, %v443
    %v450 = vld [vmem:[%s12] sm:$0xf]
    %v451 = vld [vmem:[%s12 + $0x4] sm:$0xf]
    %v452 = vld [vmem:[%s12 + $0x8] sm:$0xf]
    %v453 = vld [vmem:[%s12 + $0xc] sm:$0xf]
    %v454 = vld [vmem:[%s12 + $0x10] sm:$0xf]
    %v455 = vld [vmem:[%s12 + $0x14] sm:$0xf]
    %v456 = vld [vmem:[%s12 + $0x18] sm:$0xf]
    %v457 = vld [vmem:[%s12 + $0x1c] sm:$0xf]
    %v458 = vld [vmem:[%s12 + $0x20] sm:$0xf]
    %v459 = vld [vmem:[%s12 + $0x24] sm:$0xf]
    %v460 = vld [vmem:[%s12 + $0x28] sm:$0xf]
    %v461 = vld [vmem:[%s12 + $0x2c] sm:$0xf]
    %v462 = vld [vmem:[%s12 + $0x30] sm:$0xf]
    %v463 = vld [vmem:[%s12 + $0x34] sm:$0xf]
    %v464 = vld [vmem:[%s12 + $0x38] sm:$0xf]
    %v465 = vld [vmem:[%s12 + $0x3c] sm:$0xf]
    %v482 = vunpack.c.l.b16 %v450
    %v483 = vunpack.c.l.b16 %v451
    %v484 = vunpack.c.l.b16 %v452
    %v485 = vunpack.c.l.b16 %v453
    %v486 = vunpack.c.l.b16 %v454
    %v487 = vunpack.c.l.b16 %v455
    %v488 = vunpack.c.l.b16 %v456
    %v489 = vunpack.c.l.b16 %v457
    %v490 = vunpack.c.l.b16 %v458
    %v491 = vunpack.c.l.b16 %v459
    %v492 = vunpack.c.l.b16 %v460
    %v493 = vunpack.c.l.b16 %v461
    %v494 = vunpack.c.l.b16 %v462
    %v495 = vunpack.c.l.b16 %v463
    %v496 = vunpack.c.l.b16 %v464
    %v497 = vunpack.c.l.b16 %v465
    %v498 = vpack.c.b16 %v483, %v482
    %v499 = vpack.c.b16 %v485, %v484
    %v500 = vpack.c.b16 %v487, %v486
    %v501 = vpack.c.b16 %v489, %v488
    %v502 = vpack.c.b16 %v491, %v490
    %v503 = vpack.c.b16 %v493, %v492
    %v504 = vpack.c.b16 %v495, %v494
    %v505 = vpack.c.b16 %v497, %v496
    %514 = vmatprep.subr.bf16.mxu0 0
    %515 = vmatpush1.bf16.msra.mxu0 %v498
    %516 = vmatprep.subr.bf16.mxu0 0
    %517 = vmatpush1.bf16.msra.mxu0 %v499
    %518 = vmatprep.subr.bf16.mxu0 0
    %519 = vmatpush1.bf16.msra.mxu0 %v500
    %520 = vmatprep.subr.bf16.mxu0 0
    %521 = vmatpush1.bf16.msra.mxu0 %v501
    %522 = vmatprep.subr.bf16.mxu0 0
    %523 = vmatpush1.bf16.msra.mxu0 %v502
    %524 = vmatprep.subr.bf16.mxu0 0
    %525 = vmatpush1.bf16.msra.mxu0 %v503
    %526 = vmatprep.subr.bf16.mxu0 0
    %527 = vmatpush1.bf16.msra.mxu0 %v504
    %528 = vmatprep.subr.bf16.mxu0 0
    %529 = vmatpush1.bf16.msra.mxu0 %v505
    %530 = vmatprep.subr.bf16.mxu0 0
    %531 = vmatpush1.bf16.msra.mxu0 0
    %532 = vmatprep.subr.bf16.mxu0 0
    %533 = vmatpush1.bf16.msra.mxu0 0
    %534 = vmatprep.subr.bf16.mxu0 0
    %535 = vmatpush1.bf16.msra.mxu0 0
    %536 = vmatprep.subr.bf16.mxu0 0
    %537 = vmatpush1.bf16.msra.mxu0 0
    %538 = vmatprep.subr.bf16.mxu0 0
    %539 = vmatpush1.bf16.msra.mxu0 0
    %540 = vmatprep.subr.bf16.mxu0 0
    %541 = vmatpush1.bf16.msra.mxu0 0
    %542 = vmatprep.subr.bf16.mxu0 0
    %543 = vmatpush1.bf16.msra.mxu0 0
    %544 = vmatprep.subr.bf16.mxu0 0
    %545 = vmatpush1.bf16.msra.mxu0 0
    %546 = vmatprep.mubr.bf16.mxu0 0
    %547 = vmatmul.mubr.bf16.gmra.mrb[0].mxu0 %v214
    %v548 = vpop.f32.mrb[0].mxu0
    %v549 = vadd.f32 0.0, %v548
    %v550 = vpop.f32.mrb[0].mxu0
    %v551 = vpop.f32.mrb[0].mxu0
    %v552 = vadd.f32 0.0, %v551
    %v553 = vpop.f32.mrb[0].mxu0
    %554 = vmatprep.mubr.bf16.mxu0 0
    %555 = vmatmul.mubr.bf16.gmra.mrb[0].mxu0 %v215
    %v556 = vpop.f32.mrb[0].mxu0
    %v557 = vadd.f32 0.0, %v556
    %v558 = vpop.f32.mrb[0].mxu0
    %v559 = vpop.f32.mrb[0].mxu0
    %v560 = vpop.f32.mrb[0].mxu0
    %561 = vdwg.mxu0
    %v562 = vpack.c.bf16 %v552, %v549
    %v563 = vpack.c.bf16 %v557, %v557
    %vm564 = vcmask 130048
    %v566 = vsel %vm564, %v328, 0
    %v569 = vsel %vm564, %v448, 0
    %v572 = vsel %vm564, %v449, 0
    %574 = vmatprep.subr.bf16.mxu0 0
    %575 = vmatpush1.bf16.xpose.msra.mxu0 %v569
    %576 = vmatprep.subr.bf16.mxu0 0
    %577 = vmatpush1.bf16.xpose.msra.mxu0 %v572
    %578 = vmatprep.subr.bf16.mxu0 0
    %579 = vmatpush1.bf16.xpose.msra.mxu0 0
    %580 = vmatprep.subr.bf16.mxu0 0
    %581 = vmatpush1.bf16.xpose.msra.mxu0 0
    %582 = vmatprep.subr.bf16.mxu0 0
    %583 = vmatpush1.bf16.xpose.msra.mxu0 0
    %584 = vmatprep.subr.bf16.mxu0 0
    %585 = vmatpush1.bf16.xpose.msra.mxu0 0
    %586 = vmatprep.subr.bf16.mxu0 0
    %587 = vmatpush1.bf16.xpose.msra.mxu0 0
    %588 = vmatprep.subr.bf16.mxu0 0
    %589 = vmatpush1.bf16.xpose.msra.mxu0 0
    %590 = vmatprep.subr.bf16.mxu0 0
    %591 = vmatpush1.bf16.xpose.msra.mxu0 0
    %592 = vmatprep.subr.bf16.mxu0 0
    %593 = vmatpush1.bf16.xpose.msra.mxu0 0
    %594 = vmatprep.subr.bf16.mxu0 0
    %595 = vmatpush1.bf16.xpose.msra.mxu0 0
    %596 = vmatprep.subr.bf16.mxu0 0
    %597 = vmatpush1.bf16.xpose.msra.mxu0 0
    %598 = vmatprep.subr.bf16.mxu0 0
    %599 = vmatpush1.bf16.xpose.msra.mxu0 0
    %600 = vmatprep.subr.bf16.mxu0 0
    %601 = vmatpush1.bf16.xpose.msra.mxu0 0
    %602 = vmatprep.subr.bf16.mxu0 0
    %603 = vmatpush1.bf16.xpose.msra.mxu0 0
    %604 = vmatprep.subr.bf16.mxu0 0
    %605 = vmatpush1.bf16.xpose.msra.mxu0 0
    %606 = vmatprep.mubr.bf16.mxu0 0
    %607 = vmatmul.mubr.bf16.gmra.mrb[0].mxu0 %v566
    %v608 = vpop.f32.mrb[0].mxu0
    %v609 = vadd.f32 0.0, %v608
    %v610 = vpop.f32.mrb[0].mxu0
    %v611 = vpop.f32.mrb[0].mxu0
    %v612 = vadd.f32 0.0, %v611
    %v613 = vpop.f32.mrb[0].mxu0
    %614 = vdwg.mxu0
    %616 = vrot.lane.b32.xlu0 %v328, 112
    %v617 = vpop.permute.xlu0 %616
    %620 = vrot.lane.b32.xlu0 %v448, 112
    %v621 = vpop.permute.xlu0 %620
    %622 = vrot.lane.b32.xlu0 %v449, 112
    %v623 = vpop.permute.xlu0 %622
    %v625 = vsel %vm564, %v617, 0
    %v628 = vsel %vm564, %v621, 0
    %v631 = vsel %vm564, %v623, 0
    %633 = vmatprep.subr.bf16.mxu0 0
    %634 = vmatpush1.bf16.xpose.msra.mxu0 %v628
    %635 = vmatprep.subr.bf16.mxu0 0
    %636 = vmatpush1.bf16.xpose.msra.mxu0 %v631
    %637 = vmatprep.subr.bf16.mxu0 0
    %638 = vmatpush1.bf16.xpose.msra.mxu0 0
    %639 = vmatprep.subr.bf16.mxu0 0
    %640 = vmatpush1.bf16.xpose.msra.mxu0 0
    %641 = vmatprep.subr.bf16.mxu0 0
    %642 = vmatpush1.bf16.xpose.msra.mxu0 0
    %643 = vmatprep.subr.bf16.mxu0 0
    %644 = vmatpush1.bf16.xpose.msra.mxu0 0
    %645 = vmatprep.subr.bf16.mxu0 0
    %646 = vmatpush1.bf16.xpose.msra.mxu0 0
    %647 = vmatprep.subr.bf16.mxu0 0
    %648 = vmatpush1.bf16.xpose.msra.mxu0 0
    %649 = vmatprep.subr.bf16.mxu0 0
    %650 = vmatpush1.bf16.xpose.msra.mxu0 0
    %651 = vmatprep.subr.bf16.mxu0 0
    %652 = vmatpush1.bf16.xpose.msra.mxu0 0
    %653 = vmatprep.subr.bf16.mxu0 0
    %654 = vmatpush1.bf16.xpose.msra.mxu0 0
    %655 = vmatprep.subr.bf16.mxu0 0
    %656 = vmatpush1.bf16.xpose.msra.mxu0 0
    %657 = vmatprep.subr.bf16.mxu0 0
    %658 = vmatpush1.bf16.xpose.msra.mxu0 0
    %659 = vmatprep.subr.bf16.mxu0 0
    %660 = vmatpush1.bf16.xpose.msra.mxu0 0
    %661 = vmatprep.subr.bf16.mxu0 0
    %662 = vmatpush1.bf16.xpose.msra.mxu0 0
    %663 = vmatprep.subr.bf16.mxu0 0
    %664 = vmatpush1.bf16.xpose.msra.mxu0 0
    %665 = vmatprep.mubr.bf16.mxu0 0
    %666 = vmatmul.mubr.bf16.gmra.mrb[0].mxu0 %v625
    %v667 = vpop.f32.mrb[0].mxu0
    %v668 = vadd.f32 0.0, %v667
    %v669 = vpop.f32.mrb[0].mxu0
    %v670 = vpop.f32.mrb[0].mxu0
    %v671 = vadd.f32 0.0, %v670
    %v672 = vpop.f32.mrb[0].mxu0
    %673 = vdwg.mxu0
    %674 = vrot.lane.b32.xlu0 %v328, 96
    %v675 = vpop.permute.xlu0 %674
    %676 = vrot.lane.b32.xlu0 %v448, 96
    %v677 = vpop.permute.xlu0 %676
    %678 = vrot.lane.b32.xlu0 %v449, 96
    %v679 = vpop.permute.xlu0 %678
    %v681 = vsel %vm564, %v675, 0
    %v684 = vsel %vm564, %v677, 0
    %v687 = vsel %vm564, %v679, 0
    %689 = vmatprep.subr.bf16.mxu0 0
    %690 = vmatpush1.bf16.xpose.msra.mxu0 %v684
    %691 = vmatprep.subr.bf16.mxu0 0
    %692 = vmatpush1.bf16.xpose.msra.mxu0 %v687
    %693 = vmatprep.subr.bf16.mxu0 0
    %694 = vmatpush1.bf16.xpose.msra.mxu0 0
    %695 = vmatprep.subr.bf16.mxu0 0
    %696 = vmatpush1.bf16.xpose.msra.mxu0 0
    %697 = vmatprep.subr.bf16.mxu0 0
    %698 = vmatpush1.bf16.xpose.msra.mxu0 0
    %699 = vmatprep.subr.bf16.mxu0 0
    %700 = vmatpush1.bf16.xpose.msra.mxu0 0
    %701 = vmatprep.subr.bf16.mxu0 0
    %702 = vmatpush1.bf16.xpose.msra.mxu0 0
    %703 = vmatprep.subr.bf16.mxu0 0
    %704 = vmatpush1.bf16.xpose.msra.mxu0 0
    %705 = vmatprep.subr.bf16.mxu0 0
    %706 = vmatpush1.bf16.xpose.msra.mxu0 0
    %707 = vmatprep.subr.bf16.mxu0 0
    %708 = vmatpush1.bf16.xpose.msra.mxu0 0
    %709 = vmatprep.subr.bf16.mxu0 0
    %710 = vmatpush1.bf16.xpose.msra.mxu0 0
    %711 = vmatprep.subr.bf16.mxu0 0
    %712 = vmatpush1.bf16.xpose.msra.mxu0 0
    %713 = vmatprep.subr.bf16.mxu0 0
    %714 = vmatpush1.bf16.xpose.msra.mxu0 0
    %715 = vmatprep.subr.bf16.mxu0 0
    %716 = vmatpush1.bf16.xpose.msra.mxu0 0
    %717 = vmatprep.subr.bf16.mxu0 0
    %718 = vmatpush1.bf16.xpose.msra.mxu0 0
    %719 = vmatprep.subr.bf16.mxu0 0
    %720 = vmatpush1.bf16.xpose.msra.mxu0 0
    %721 = vmatprep.mubr.bf16.mxu0 0
    %722 = vmatmul.mubr.bf16.gmra.mrb[0].mxu0 %v681
    %v723 = vpop.f32.mrb[0].mxu0
    %v724 = vadd.f32 0.0, %v723
    %v725 = vpop.f32.mrb[0].mxu0
    %v726 = vpop.f32.mrb[0].mxu0
    %v727 = vadd.f32 0.0, %v726
    %v728 = vpop.f32.mrb[0].mxu0
    %729 = vdwg.mxu0
    %730 = vrot.lane.b32.xlu0 %v328, 80
    %v731 = vpop.permute.xlu0 %730
    %732 = vrot.lane.b32.xlu0 %v448, 80
    %v733 = vpop.permute.xlu0 %732
    %734 = vrot.lane.b32.xlu0 %v449, 80
    %v735 = vpop.permute.xlu0 %734
    %v737 = vsel %vm564, %v731, 0
    %v740 = vsel %vm564, %v733, 0
    %v743 = vsel %vm564, %v735, 0
    %745 = vmatprep.subr.bf16.mxu0 0
    %746 = vmatpush1.bf16.xpose.msra.mxu0 %v740
    %747 = vmatprep.subr.bf16.mxu0 0
    %748 = vmatpush1.bf16.xpose.msra.mxu0 %v743
    %749 = vmatprep.subr.bf16.mxu0 0
    %750 = vmatpush1.bf16.xpose.msra.mxu0 0
    %751 = vmatprep.subr.bf16.mxu0 0
    %752 = vmatpush1.bf16.xpose.msra.mxu0 0
    %753 = vmatprep.subr.bf16.mxu0 0
    %754 = vmatpush1.bf16.xpose.msra.mxu0 0
    %755 = vmatprep.subr.bf16.mxu0 0
    %756 = vmatpush1.bf16.xpose.msra.mxu0 0
    %757 = vmatprep.subr.bf16.mxu0 0
    %758 = vmatpush1.bf16.xpose.msra.mxu0 0
    %759 = vmatprep.subr.bf16.mxu0 0
    %760 = vmatpush1.bf16.xpose.msra.mxu0 0
    %761 = vmatprep.subr.bf16.mxu0 0
    %762 = vmatpush1.bf16.xpose.msra.mxu0 0
    %763 = vmatprep.subr.bf16.mxu0 0
    %764 = vmatpush1.bf16.xpose.msra.mxu0 0
    %765 = vmatprep.subr.bf16.mxu0 0
    %766 = vmatpush1.bf16.xpose.msra.mxu0 0
    %767 = vmatprep.subr.bf16.mxu0 0
    %768 = vmatpush1.bf16.xpose.msra.mxu0 0
    %769 = vmatprep.subr.bf16.mxu0 0
    %770 = vmatpush1.bf16.xpose.msra.mxu0 0
    %771 = vmatprep.subr.bf16.mxu0 0
    %772 = vmatpush1.bf16.xpose.msra.mxu0 0
    %773 = vmatprep.subr.bf16.mxu0 0
    %774 = vmatpush1.bf16.xpose.msra.mxu0 0
    %775 = vmatprep.subr.bf16.mxu0 0
    %776 = vmatpush1.bf16.xpose.msra.mxu0 0
    %777 = vmatprep.mubr.bf16.mxu0 0
    %778 = vmatmul.mubr.bf16.gmra.mrb[0].mxu0 %v737
    %v779 = vpop.f32.mrb[0].mxu0
    %v780 = vadd.f32 0.0, %v779
    %v781 = vpop.f32.mrb[0].mxu0
    %v782 = vpop.f32.mrb[0].mxu0
    %v783 = vadd.f32 0.0, %v782
    %v784 = vpop.f32.mrb[0].mxu0
    %785 = vdwg.mxu0
    %786 = vrot.lane.b32.xlu0 %v328, 64
    %v787 = vpop.permute.xlu0 %786
    %788 = vrot.lane.b32.xlu0 %v448, 64
    %v789 = vpop.permute.xlu0 %788
    %790 = vrot.lane.b32.xlu0 %v449, 64
    %v791 = vpop.permute.xlu0 %790
    %v793 = vsel %vm564, %v787, 0
    %v796 = vsel %vm564, %v789, 0
    %v799 = vsel %vm564, %v791, 0
    %801 = vmatprep.subr.bf16.mxu0 0
    %802 = vmatpush1.bf16.xpose.msra.mxu0 %v796
    %803 = vmatprep.subr.bf16.mxu0 0
    %804 = vmatpush1.bf16.xpose.msra.mxu0 %v799
    %805 = vmatprep.subr.bf16.mxu0 0
    %806 = vmatpush1.bf16.xpose.msra.mxu0 0
    %807 = vmatprep.subr.bf16.mxu0 0
    %808 = vmatpush1.bf16.xpose.msra.mxu0 0
    %809 = vmatprep.subr.bf16.mxu0 0
    %810 = vmatpush1.bf16.xpose.msra.mxu0 0
    %811 = vmatprep.subr.bf16.mxu0 0
    %812 = vmatpush1.bf16.xpose.msra.mxu0 0
    %813 = vmatprep.subr.bf16.mxu0 0
    %814 = vmatpush1.bf16.xpose.msra.mxu0 0
    %815 = vmatprep.subr.bf16.mxu0 0
    %816 = vmatpush1.bf16.xpose.msra.mxu0 0
    %817 = vmatprep.subr.bf16.mxu0 0
    %818 = vmatpush1.bf16.xpose.msra.mxu0 0
    %819 = vmatprep.subr.bf16.mxu0 0
    %820 = vmatpush1.bf16.xpose.msra.mxu0 0
    %821 = vmatprep.subr.bf16.mxu0 0
    %822 = vmatpush1.bf16.xpose.msra.mxu0 0
    %823 = vmatprep.subr.bf16.mxu0 0
    %824 = vmatpush1.bf16.xpose.msra.mxu0 0
    %825 = vmatprep.subr.bf16.mxu0 0
    %826 = vmatpush1.bf16.xpose.msra.mxu0 0
    %827 = vmatprep.subr.bf16.mxu0 0
    %828 = vmatpush1.bf16.xpose.msra.mxu0 0
    %829 = vmatprep.subr.bf16.mxu0 0
    %830 = vmatpush1.bf16.xpose.msra.mxu0 0
    %831 = vmatprep.subr.bf16.mxu0 0
    %832 = vmatpush1.bf16.xpose.msra.mxu0 0
    %833 = vmatprep.mubr.bf16.mxu0 0
    %834 = vmatmul.mubr.bf16.gmra.mrb[0].mxu0 %v793
    %v835 = vpop.f32.mrb[0].mxu0
    %v836 = vadd.f32 0.0, %v835
    %v837 = vpop.f32.mrb[0].mxu0
    %v838 = vpop.f32.mrb[0].mxu0
    %v839 = vadd.f32 0.0, %v838
    %v840 = vpop.f32.mrb[0].mxu0
    %841 = vdwg.mxu0
    %842 = vrot.lane.b32.xlu0 %v328, 48
    %v843 = vpop.permute.xlu0 %842
    %844 = vrot.lane.b32.xlu0 %v448, 48
    %v845 = vpop.permute.xlu0 %844
    %846 = vrot.lane.b32.xlu0 %v449, 48
    %v847 = vpop.permute.xlu0 %846
    %v849 = vsel %vm564, %v843, 0
    %v852 = vsel %vm564, %v845, 0
    %v855 = vsel %vm564, %v847, 0
    %857 = vmatprep.subr.bf16.mxu0 0
    %858 = vmatpush1.bf16.xpose.msra.mxu0 %v852
    %859 = vmatprep.subr.bf16.mxu0 0
    %860 = vmatpush1.bf16.xpose.msra.mxu0 %v855
    %861 = vmatprep.subr.bf16.mxu0 0
    %862 = vmatpush1.bf16.xpose.msra.mxu0 0
    %863 = vmatprep.subr.bf16.mxu0 0
    %864 = vmatpush1.bf16.xpose.msra.mxu0 0
    %865 = vmatprep.subr.bf16.mxu0 0
    %866 = vmatpush1.bf16.xpose.msra.mxu0 0
    %867 = vmatprep.subr.bf16.mxu0 0
    %868 = vmatpush1.bf16.xpose.msra.mxu0 0
    %869 = vmatprep.subr.bf16.mxu0 0
    %870 = vmatpush1.bf16.xpose.msra.mxu0 0
    %871 = vmatprep.subr.bf16.mxu0 0
    %872 = vmatpush1.bf16.xpose.msra.mxu0 0
    %873 = vmatprep.subr.bf16.mxu0 0
    %874 = vmatpush1.bf16.xpose.msra.mxu0 0
    %875 = vmatprep.subr.bf16.mxu0 0
    %876 = vmatpush1.bf16.xpose.msra.mxu0 0
    %877 = vmatprep.subr.bf16.mxu0 0
    %878 = vmatpush1.bf16.xpose.msra.mxu0 0
    %879 = vmatprep.subr.bf16.mxu0 0
    %880 = vmatpush1.bf16.xpose.msra.mxu0 0
    %881 = vmatprep.subr.bf16.mxu0 0
    %882 = vmatpush1.bf16.xpose.msra.mxu0 0
    %883 = vmatprep.subr.bf16.mxu0 0
    %884 = vmatpush1.bf16.xpose.msra.mxu0 0
    %885 = vmatprep.subr.bf16.mxu0 0
    %886 = vmatpush1.bf16.xpose.msra.mxu0 0
    %887 = vmatprep.subr.bf16.mxu0 0
    %888 = vmatpush1.bf16.xpose.msra.mxu0 0
    %889 = vmatprep.mubr.bf16.mxu0 0
    %890 = vmatmul.mubr.bf16.gmra.mrb[0].mxu0 %v849
    %v891 = vpop.f32.mrb[0].mxu0
    %v892 = vadd.f32 0.0, %v891
    %v893 = vpop.f32.mrb[0].mxu0
    %v894 = vpop.f32.mrb[0].mxu0
    %v895 = vadd.f32 0.0, %v894
    %v896 = vpop.f32.mrb[0].mxu0
    %897 = vdwg.mxu0
    %898 = vrot.lane.b32.xlu0 %v328, 32
    %v899 = vpop.permute.xlu0 %898
    %900 = vrot.lane.b32.xlu0 %v448, 32
    %v901 = vpop.permute.xlu0 %900
    %902 = vrot.lane.b32.xlu0 %v449, 32
    %v903 = vpop.permute.xlu0 %902
    %v905 = vsel %vm564, %v899, 0
    %v908 = vsel %vm564, %v901, 0
    %v911 = vsel %vm564, %v903, 0
    %913 = vmatprep.subr.bf16.mxu0 0
    %914 = vmatpush1.bf16.xpose.msra.mxu0 %v908
    %915 = vmatprep.subr.bf16.mxu0 0
    %916 = vmatpush1.bf16.xpose.msra.mxu0 %v911
    %917 = vmatprep.subr.bf16.mxu0 0
    %918 = vmatpush1.bf16.xpose.msra.mxu0 0
    %919 = vmatprep.subr.bf16.mxu0 0
    %920 = vmatpush1.bf16.xpose.msra.mxu0 0
    %921 = vmatprep.subr.bf16.mxu0 0
    %922 = vmatpush1.bf16.xpose.msra.mxu0 0
    %923 = vmatprep.subr.bf16.mxu0 0
    %924 = vmatpush1.bf16.xpose.msra.mxu0 0
    %925 = vmatprep.subr.bf16.mxu0 0
    %926 = vmatpush1.bf16.xpose.msra.mxu0 0
    %927 = vmatprep.subr.bf16.mxu0 0
    %928 = vmatpush1.bf16.xpose.msra.mxu0 0
    %929 = vmatprep.subr.bf16.mxu0 0
    %930 = vmatpush1.bf16.xpose.msra.mxu0 0
    %931 = vmatprep.subr.bf16.mxu0 0
    %932 = vmatpush1.bf16.xpose.msra.mxu0 0
    %933 = vmatprep.subr.bf16.mxu0 0
    %934 = vmatpush1.bf16.xpose.msra.mxu0 0
    %935 = vmatprep.subr.bf16.mxu0 0
    %936 = vmatpush1.bf16.xpose.msra.mxu0 0
    %937 = vmatprep.subr.bf16.mxu0 0
    %938 = vmatpush1.bf16.xpose.msra.mxu0 0
    %939 = vmatprep.subr.bf16.mxu0 0
    %940 = vmatpush1.bf16.xpose.msra.mxu0 0
    %941 = vmatprep.subr.bf16.mxu0 0
    %942 = vmatpush1.bf16.xpose.msra.mxu0 0
    %943 = vmatprep.subr.bf16.mxu0 0
    %944 = vmatpush1.bf16.xpose.msra.mxu0 0
    %945 = vmatprep.mubr.bf16.mxu0 0
    %946 = vmatmul.mubr.bf16.gmra.mrb[0].mxu0 %v905
    %v947 = vpop.f32.mrb[0].mxu0
    %v948 = vadd.f32 0.0, %v947
    %v949 = vpop.f32.mrb[0].mxu0
    %v950 = vpop.f32.mrb[0].mxu0
    %v951 = vadd.f32 0.0, %v950
    %v952 = vpop.f32.mrb[0].mxu0
    %953 = vdwg.mxu0
    %954 = vrot.lane.b32.xlu0 %v328, 16
    %v955 = vpop.permute.xlu0 %954
    %956 = vrot.lane.b32.xlu0 %v448, 16
    %v957 = vpop.permute.xlu0 %956
    %958 = vrot.lane.b32.xlu0 %v449, 16
    %v959 = vpop.permute.xlu0 %958
    %v961 = vsel %vm564, %v955, 0
    %v964 = vsel %vm564, %v957, 0
    %v967 = vsel %vm564, %v959, 0
    %969 = vmatprep.subr.bf16.mxu0 0
    %970 = vmatpush1.bf16.xpose.msra.mxu0 %v964
    %971 = vmatprep.subr.bf16.mxu0 0
    %972 = vmatpush1.bf16.xpose.msra.mxu0 %v967
    %973 = vmatprep.subr.bf16.mxu0 0
    %974 = vmatpush1.bf16.xpose.msra.mxu0 0
    %975 = vmatprep.subr.bf16.mxu0 0
    %976 = vmatpush1.bf16.xpose.msra.mxu0 0
    %977 = vmatprep.subr.bf16.mxu0 0
    %978 = vmatpush1.bf16.xpose.msra.mxu0 0
    %979 = vmatprep.subr.bf16.mxu0 0
    %980 = vmatpush1.bf16.xpose.msra.mxu0 0
    %981 = vmatprep.subr.bf16.mxu0 0
    %982 = vmatpush1.bf16.xpose.msra.mxu0 0
    %983 = vmatprep.subr.bf16.mxu0 0
    %984 = vmatpush1.bf16.xpose.msra.mxu0 0
    %985 = vmatprep.subr.bf16.mxu0 0
    %986 = vmatpush1.bf16.xpose.msra.mxu0 0
    %987 = vmatprep.subr.bf16.mxu0 0
    %988 = vmatpush1.bf16.xpose.msra.mxu0 0
    %989 = vmatprep.subr.bf16.mxu0 0
    %990 = vmatpush1.bf16.xpose.msra.mxu0 0
    %991 = vmatprep.subr.bf16.mxu0 0
    %992 = vmatpush1.bf16.xpose.msra.mxu0 0
    %993 = vmatprep.subr.bf16.mxu0 0
    %994 = vmatpush1.bf16.xpose.msra.mxu0 0
    %995 = vmatprep.subr.bf16.mxu0 0
    %996 = vmatpush1.bf16.xpose.msra.mxu0 0
    %997 = vmatprep.subr.bf16.mxu0 0
    %998 = vmatpush1.bf16.xpose.msra.mxu0 0
    %999 = vmatprep.subr.bf16.mxu0 0
    %1000 = vmatpush1.bf16.xpose.msra.mxu0 0
    %1001 = vmatprep.mubr.bf16.mxu0 0
    %1002 = vmatmul.mubr.bf16.gmra.mrb[0].mxu0 %v961
    %v1003 = vpop.f32.mrb[0].mxu0
    %v1004 = vadd.f32 0.0, %v1003
    %v1005 = vpop.f32.mrb[0].mxu0
    %v1006 = vpop.f32.mrb[0].mxu0
    %v1007 = vadd.f32 0.0, %v1006
    %v1008 = vpop.f32.mrb[0].mxu0
    %1009 = vdwg.mxu0
    %v1010 = vadd.f32 %v197, %v609
    %v1011 = vadd.f32 %v198, %v612
    %v1012 = vadd.f32 %v199, %v668
    %v1013 = vadd.f32 %v200, %v671
    %v1014 = vadd.f32 %v201, %v724
    %v1015 = vadd.f32 %v202, %v727
    %v1016 = vadd.f32 %v203, %v780
    %v1017 = vadd.f32 %v204, %v783
    %v1018 = vadd.f32 %v205, %v836
    %v1019 = vadd.f32 %v206, %v839
    %v1020 = vadd.f32 %v207, %v892
    %v1021 = vadd.f32 %v208, %v895
    %v1022 = vadd.f32 %v209, %v948
    %v1023 = vadd.f32 %v210, %v951
    %v1024 = vadd.f32 %v211, %v1004
    %v1025 = vadd.f32 %v212, %v1007
    %vm1026 = vcmask 195584
    %v1027 = vsel %vm1026, %v1010, -inf
    %1028 = vmax.xlane.f32.xlu0 %v1027
    %v1029 = vpop.xlane.xlu0 %1028
    %v1030 = vsel %vm1026, %v1011, -inf
    %1031 = vmax.xlane.f32.xlu0 %v1030
    %v1032 = vpop.xlane.xlu0 %1031
    %v1033 = vsel %vm1026, %v1012, -inf
    %1034 = vmax.xlane.f32.xlu0 %v1033
    %v1035 = vpop.xlane.xlu0 %1034
    %v1036 = vsel %vm1026, %v1013, -inf
    %1037 = vmax.xlane.f32.xlu0 %v1036
    %v1038 = vpop.xlane.xlu0 %1037
    %v1039 = vsel %vm1026, %v1014, -inf
    %1040 = vmax.xlane.f32.xlu0 %v1039
    %v1041 = vpop.xlane.xlu0 %1040
    %v1042 = vsel %vm1026, %v1015, -inf
    %1043 = vmax.xlane.f32.xlu0 %v1042
    %v1044 = vpop.xlane.xlu0 %1043
    %v1045 = vsel %vm1026, %v1016, -inf
    %1046 = vmax.xlane.f32.xlu0 %v1045
    %v1047 = vpop.xlane.xlu0 %1046
    %v1048 = vsel %vm1026, %v1017, -inf
    %1049 = vmax.xlane.f32.xlu0 %v1048
    %v1050 = vpop.xlane.xlu0 %1049
    %v1051 = vsel %vm1026, %v1018, -inf
    %1052 = vmax.xlane.f32.xlu0 %v1051
    %v1053 = vpop.xlane.xlu0 %1052
    %v1054 = vsel %vm1026, %v1019, -inf
    %1055 = vmax.xlane.f32.xlu0 %v1054
    %v1056 = vpop.xlane.xlu0 %1055
    %v1057 = vsel %vm1026, %v1020, -inf
    %1058 = vmax.xlane.f32.xlu0 %v1057
    %v1059 = vpop.xlane.xlu0 %1058
    %v1060 = vsel %vm1026, %v1021, -inf
    %1061 = vmax.xlane.f32.xlu0 %v1060
    %v1062 = vpop.xlane.xlu0 %1061
    %v1063 = vsel %vm1026, %v1022, -inf
    %1064 = vmax.xlane.f32.xlu0 %v1063
    %v1065 = vpop.xlane.xlu0 %1064
    %v1066 = vsel %vm1026, %v1023, -inf
    %1067 = vmax.xlane.f32.xlu0 %v1066
    %v1068 = vpop.xlane.xlu0 %1067
    %v1069 = vsel %vm1026, %v1024, -inf
    %1070 = vmax.xlane.f32.xlu0 %v1069
    %v1071 = vpop.xlane.xlu0 %1070
    %v1072 = vsel %vm1026, %v1025, -inf
    %1073 = vmax.xlane.f32.xlu0 %v1072
    %v1074 = vpop.xlane.xlu0 %1073
    %v1075 = vsub.f32 %v1010, %v1029
    %v1076 = vsub.f32 %v1011, %v1032
    %v1077 = vsub.f32 %v1012, %v1035
    %v1078 = vsub.f32 %v1013, %v1038
    %v1079 = vsub.f32 %v1014, %v1041
    %v1080 = vsub.f32 %v1015, %v1044
    %v1081 = vsub.f32 %v1016, %v1047
    %v1082 = vsub.f32 %v1017, %v1050
    %v1083 = vsub.f32 %v1018, %v1053
    %v1084 = vsub.f32 %v1019, %v1056
    %v1085 = vsub.f32 %v1020, %v1059
    %v1086 = vsub.f32 %v1021, %v1062
    %v1087 = vsub.f32 %v1022, %v1065
    %v1088 = vsub.f32 %v1023, %v1068
    %v1089 = vsub.f32 %v1024, %v1071
    %v1090 = vsub.f32 %v1025, %v1074
    %v1091 = vmul.f32 %v1075, 1.442695
    %v1092 = vpow.pop %v1091
    %v1093 = vmul.f32 %v1076, 1.442695
    %v1094 = vpow.pop %v1093
    %v1095 = vmul.f32 %v1077, 1.442695
    %v1096 = vpow.pop %v1095
    %v1097 = vmul.f32 %v1078, 1.442695
    %v1098 = vpow.pop %v1097
    %v1099 = vmul.f32 %v1079, 1.442695
    %v1100 = vpow.pop %v1099
    %v1101 = vmul.f32 %v1080, 1.442695
    %v1102 = vpow.pop %v1101
    %v1103 = vmul.f32 %v1081, 1.442695
    %v1104 = vpow.pop %v1103
    %v1105 = vmul.f32 %v1082, 1.442695
    %v1106 = vpow.pop %v1105
    %v1107 = vmul.f32 %v1083, 1.442695
    %v1108 = vpow.pop %v1107
    %v1109 = vmul.f32 %v1084, 1.442695
    %v1110 = vpow.pop %v1109
    %v1111 = vmul.f32 %v1085, 1.442695
    %v1112 = vpow.pop %v1111
    %v1113 = vmul.f32 %v1086, 1.442695
    %v1114 = vpow.pop %v1113
    %v1115 = vmul.f32 %v1087, 1.442695
    %v1116 = vpow.pop %v1115
    %v1117 = vmul.f32 %v1088, 1.442695
    %v1118 = vpow.pop %v1117
    %v1119 = vmul.f32 %v1089, 1.442695
    %v1120 = vpow.pop %v1119
    %v1121 = vmul.f32 %v1090, 1.442695
    %v1122 = vpow.pop %v1121
    %v1123 = vsel %vm1026, %v1092, 0.0
    %1124 = vadd.xlane.f32.xlu0 %v1123
    %v1125 = vpop.xlane.xlu0 %1124
    %v1126 = vsel %vm1026, %v1094, 0.0
    %1127 = vadd.xlane.f32.xlu0 %v1126
    %v1128 = vpop.xlane.xlu0 %1127
    %v1129 = vsel %vm1026, %v1096, 0.0
    %1130 = vadd.xlane.f32.xlu0 %v1129
    %v1131 = vpop.xlane.xlu0 %1130
    %v1132 = vsel %vm1026, %v1098, 0.0
    %1133 = vadd.xlane.f32.xlu0 %v1132
    %v1134 = vpop.xlane.xlu0 %1133
    %v1135 = vsel %vm1026, %v1100, 0.0
    %1136 = vadd.xlane.f32.xlu0 %v1135
    %v1137 = vpop.xlane.xlu0 %1136
    %v1138 = vsel %vm1026, %v1102, 0.0
    %1139 = vadd.xlane.f32.xlu0 %v1138
    %v1140 = vpop.xlane.xlu0 %1139
    %v1141 = vsel %vm1026, %v1104, 0.0
    %1142 = vadd.xlane.f32.xlu0 %v1141
    %v1143 = vpop.xlane.xlu0 %1142
    %v1144 = vsel %vm1026, %v1106, 0.0
    %1145 = vadd.xlane.f32.xlu0 %v1144
    %v1146 = vpop.xlane.xlu0 %1145
    %v1147 = vsel %vm1026, %v1108, 0.0
    %1148 = vadd.xlane.f32.xlu0 %v1147
    %v1149 = vpop.xlane.xlu0 %1148
    %v1150 = vsel %vm1026, %v1110, 0.0
    %1151 = vadd.xlane.f32.xlu0 %v1150
    %v1152 = vpop.xlane.xlu0 %1151
    %v1153 = vsel %vm1026, %v1112, 0.0
    %1154 = vadd.xlane.f32.xlu0 %v1153
    %v1155 = vpop.xlane.xlu0 %1154
    %v1156 = vsel %vm1026, %v1114, 0.0
    %1157 = vadd.xlane.f32.xlu0 %v1156
    %v1158 = vpop.xlane.xlu0 %1157
    %v1159 = vsel %vm1026, %v1116, 0.0
    %1160 = vadd.xlane.f32.xlu0 %v1159
    %v1161 = vpop.xlane.xlu0 %1160
    %v1162 = vsel %vm1026, %v1118, 0.0
    %1163 = vadd.xlane.f32.xlu0 %v1162
    %v1164 = vpop.xlane.xlu0 %1163
    %v1165 = vsel %vm1026, %v1120, 0.0
    %1166 = vadd.xlane.f32.xlu0 %v1165
    %v1167 = vpop.xlane.xlu0 %1166
    %v1168 = vsel %vm1026, %v1122, 0.0
    %1169 = vadd.xlane.f32.xlu0 %v1168
    %v1170 = vpop.xlane.xlu0 %1169
    %v1171 = vrcp.pop %v1125
    %v1172 = vrcp.pop %v1128
    %v1173 = vrcp.pop %v1131
    %v1174 = vrcp.pop %v1134
    %v1175 = vrcp.pop %v1137
    %v1176 = vrcp.pop %v1140
    %v1177 = vrcp.pop %v1143
    %v1178 = vrcp.pop %v1146
    %v1179 = vrcp.pop %v1149
    %v1180 = vrcp.pop %v1152
    %v1181 = vrcp.pop %v1155
    %v1182 = vrcp.pop %v1158
    %v1183 = vrcp.pop %v1161
    %v1184 = vrcp.pop %v1164
    %v1185 = vrcp.pop %v1167
    %v1186 = vrcp.pop %v1170
    %v1187 = vmul.f32 %v1092, %v1171
    %v1188 = vmul.f32 %v1094, %v1172
    %v1189 = vmul.f32 %v1096, %v1173
    %v1190 = vmul.f32 %v1098, %v1174
    %v1191 = vmul.f32 %v1100, %v1175
    %v1192 = vmul.f32 %v1102, %v1176
    %v1193 = vmul.f32 %v1104, %v1177
    %v1194 = vmul.f32 %v1106, %v1178
    %v1195 = vmul.f32 %v1108, %v1179
    %v1196 = vmul.f32 %v1110, %v1180
    %v1197 = vmul.f32 %v1112, %v1181
    %v1198 = vmul.f32 %v1114, %v1182
    %v1199 = vmul.f32 %v1116, %v1183
    %v1200 = vmul.f32 %v1118, %v1184
    %v1201 = vmul.f32 %v1120, %v1185
    %v1202 = vmul.f32 %v1122, %v1186
    %v1203 = vpack.c.bf16 %v1188, %v1187
    %v1204 = vpack.c.bf16 %v1190, %v1189
    %v1205 = vpack.c.bf16 %v1192, %v1191
    %v1206 = vpack.c.bf16 %v1194, %v1193
    %v1207 = vpack.c.bf16 %v1196, %v1195
    %v1208 = vpack.c.bf16 %v1198, %v1197
    %v1209 = vpack.c.bf16 %v1200, %v1199
    %v1210 = vpack.c.bf16 %v1202, %v1201
    %v1212 = vsel %vm1026, %v1203, 0
    %vm1214 = vcmask 1043456
    %v1216 = vsel %vm1214, %v563, 0
    %1218 = vmatprep.subr.bf16.mxu0 0
    %1219 = vmatpush1.bf16.msra.mxu0 %v562
    %1220 = vmatprep.subr.bf16.mxu0 0
    %1221 = vmatpush1.bf16.msra.mxu0 %v1216
    %1222 = vmatprep.subr.bf16.mxu0 0
    %1223 = vmatpush1.bf16.msra.mxu0 0
    %1224 = vmatprep.subr.bf16.mxu0 0
    %1225 = vmatpush1.bf16.msra.mxu0 0
    %1226 = vmatprep.subr.bf16.mxu0 0
    %1227 = vmatpush1.bf16.msra.mxu0 0
    %1228 = vmatprep.subr.bf16.mxu0 0
    %1229 = vmatpush1.bf16.msra.mxu0 0
    %1230 = vmatprep.subr.bf16.mxu0 0
    %1231 = vmatpush1.bf16.msra.mxu0 0
    %1232 = vmatprep.subr.bf16.mxu0 0
    %1233 = vmatpush1.bf16.msra.mxu0 0
    %1234 = vmatprep.subr.bf16.mxu0 0
    %1235 = vmatpush1.bf16.msra.mxu0 0
    %1236 = vmatprep.subr.bf16.mxu0 0
    %1237 = vmatpush1.bf16.msra.mxu0 0
    %1238 = vmatprep.subr.bf16.mxu0 0
    %1239 = vmatpush1.bf16.msra.mxu0 0
    %1240 = vmatprep.subr.bf16.mxu0 0
    %1241 = vmatpush1.bf16.msra.mxu0 0
    %1242 = vmatprep.subr.bf16.mxu0 0
    %1243 = vmatpush1.bf16.msra.mxu0 0
    %1244 = vmatprep.subr.bf16.mxu0 0
    %1245 = vmatpush1.bf16.msra.mxu0 0
    %1246 = vmatprep.subr.bf16.mxu0 0
    %1247 = vmatpush1.bf16.msra.mxu0 0
    %1248 = vmatprep.subr.bf16.mxu0 0
    %1249 = vmatpush1.bf16.msra.mxu0 0
    %1250 = vmatprep.mubr.bf16.mxu0 0
    %1251 = vmatmul.mubr.bf16.gmra.mrb[0].mxu0 %v1212
    %v1252 = vpop.f32.mrb[0].mxu0
    %v1253 = vadd.f32 0.0, %v1252
    %v1254 = vpop.f32.mrb[0].mxu0
    %v1255 = vpop.f32.mrb[0].mxu0
    %v1256 = vadd.f32 0.0, %v1255
    %v1257 = vpop.f32.mrb[0].mxu0
    %1258 = vdwg.mxu0
    %1259 = vst.msk [vmem:[#allocation2] sm:$0xff] %vm564, %v1253
    %1260 = vst.msk [vmem:[#allocation2 + $0x8] sm:$0xff] %vm564, %v1256
    %1263 = vrot.lane.b32.xlu0 %v562, 112
    %v1264 = vpop.permute.xlu0 %1263
    %1265 = vrot.lane.b32.xlu0 %v563, 112
    %v1266 = vpop.permute.xlu0 %1265
    %v1269 = vsel %vm1026, %v1204, 0
    %v1272 = vsel %vm1214, %v1266, 0
    %1274 = vmatprep.subr.bf16.mxu0 0
    %1275 = vmatpush1.bf16.msra.mxu0 %v1264
    %1276 = vmatprep.subr.bf16.mxu0 0
    %1277 = vmatpush1.bf16.msra.mxu0 %v1272
    %1278 = vmatprep.subr.bf16.mxu0 0
    %1279 = vmatpush1.bf16.msra.mxu0 0
    %1280 = vmatprep.subr.bf16.mxu0 0
    %1281 = vmatpush1.bf16.msra.mxu0 0
    %1282 = vmatprep.subr.bf16.mxu0 0
    %1283 = vmatpush1.bf16.msra.mxu0 0
    %1284 = vmatprep.subr.bf16.mxu0 0
    %1285 = vmatpush1.bf16.msra.mxu0 0
    %1286 = vmatprep.subr.bf16.mxu0 0
    %1287 = vmatpush1.bf16.msra.mxu0 0
    %1288 = vmatprep.subr.bf16.mxu0 0
    %1289 = vmatpush1.bf16.msra.mxu0 0
    %1290 = vmatprep.subr.bf16.mxu0 0
    %1291 = vmatpush1.bf16.msra.mxu0 0
    %1292 = vmatprep.subr.bf16.mxu0 0
    %1293 = vmatpush1.bf16.msra.mxu0 0
    %1294 = vmatprep.subr.bf16.mxu0 0
    %1295 = vmatpush1.bf16.msra.mxu0 0
    %1296 = vmatprep.subr.bf16.mxu0 0
    %1297 = vmatpush1.bf16.msra.mxu0 0
    %1298 = vmatprep.subr.bf16.mxu0 0
    %1299 = vmatpush1.bf16.msra.mxu0 0
    %1300 = vmatprep.subr.bf16.mxu0 0
    %1301 = vmatpush1.bf16.msra.mxu0 0
    %1302 = vmatprep.subr.bf16.mxu0 0
    %1303 = vmatpush1.bf16.msra.mxu0 0
    %1304 = vmatprep.subr.bf16.mxu0 0
    %1305 = vmatpush1.bf16.msra.mxu0 0
    %1306 = vmatprep.mubr.bf16.mxu0 0
    %1307 = vmatmul.mubr.bf16.gmra.mrb[0].mxu0 %v1269
    %v1308 = vpop.f32.mrb[0].mxu0
    %v1309 = vadd.f32 0.0, %v1308
    %v1310 = vpop.f32.mrb[0].mxu0
    %v1311 = vpop.f32.mrb[0].mxu0
    %v1312 = vadd.f32 0.0, %v1311
    %v1313 = vpop.f32.mrb[0].mxu0
    %1314 = vdwg.mxu0
    %1317 = vrot.lane.b32.xlu0 %v1309, 16
    %v1318 = vpop.permute.xlu0 %1317
    %1319 = vrot.lane.b32.xlu0 %v1312, 16
    %v1320 = vpop.permute.xlu0 %1319
    %vm1323 = vcmask 261248
    %1324 = vst.msk [vmem:[#allocation2] sm:$0xff] %vm1323, %v1318
    %1325 = vst.msk [vmem:[#allocation2 + $0x8] sm:$0xff] %vm1323, %v1320
    %1326 = vrot.lane.b32.xlu0 %v562, 96
    %v1327 = vpop.permute.xlu0 %1326
    %1328 = vrot.lane.b32.xlu0 %v563, 96
    %v1329 = vpop.permute.xlu0 %1328
    %v1332 = vsel %vm1026, %v1205, 0
    %v1335 = vsel %vm1214, %v1329, 0
    %1337 = vmatprep.subr.bf16.mxu0 0
    %1338 = vmatpush1.bf16.msra.mxu0 %v1327
    %1339 = vmatprep.subr.bf16.mxu0 0
    %1340 = vmatpush1.bf16.msra.mxu0 %v1335
    %1341 = vmatprep.subr.bf16.mxu0 0
    %1342 = vmatpush1.bf16.msra.mxu0 0
    %1343 = vmatprep.subr.bf16.mxu0 0
    %1344 = vmatpush1.bf16.msra.mxu0 0
    %1345 = vmatprep.subr.bf16.mxu0 0
    %1346 = vmatpush1.bf16.msra.mxu0 0
    %1347 = vmatprep.subr.bf16.mxu0 0
    %1348 = vmatpush1.bf16.msra.mxu0 0
    %1349 = vmatprep.subr.bf16.mxu0 0
    %1350 = vmatpush1.bf16.msra.mxu0 0
    %1351 = vmatprep.subr.bf16.mxu0 0
    %1352 = vmatpush1.bf16.msra.mxu0 0
    %1353 = vmatprep.subr.bf16.mxu0 0
    %1354 = vmatpush1.bf16.msra.mxu0 0
    %1355 = vmatprep.subr.bf16.mxu0 0
    %1356 = vmatpush1.bf16.msra.mxu0 0
    %1357 = vmatprep.subr.bf16.mxu0 0
    %1358 = vmatpush1.bf16.msra.mxu0 0
    %1359 = vmatprep.subr.bf16.mxu0 0
    %1360 = vmatpush1.bf16.msra.mxu0 0
    %1361 = vmatprep.subr.bf16.mxu0 0
    %1362 = vmatpush1.bf16.msra.mxu0 0
    %1363 = vmatprep.subr.bf16.mxu0 0
    %1364 = vmatpush1.bf16.msra.mxu0 0
    %1365 = vmatprep.subr.bf16.mxu0 0
    %1366 = vmatpush1.bf16.msra.mxu0 0
    %1367 = vmatprep.subr.bf16.mxu0 0
    %1368 = vmatpush1.bf16.msra.mxu0 0
    %1369 = vmatprep.mubr.bf16.mxu0 0
    %1370 = vmatmul.mubr.bf16.gmra.mrb[0].mxu0 %v1332
    %v1371 = vpop.f32.mrb[0].mxu0
    %v1372 = vadd.f32 0.0, %v1371
    %v1373 = vpop.f32.mrb[0].mxu0
    %v1374 = vpop.f32.mrb[0].mxu0
    %v1375 = vadd.f32 0.0, %v1374
    %v1376 = vpop.f32.mrb[0].mxu0
    %1377 = vdwg.mxu0
    %1380 = vrot.lane.b32.xlu0 %v1372, 32
    %v1381 = vpop.permute.xlu0 %1380
    %1382 = vrot.lane.b32.xlu0 %v1375, 32
    %v1383 = vpop.permute.xlu0 %1382
    %vm1386 = vcmask 392448
    %1387 = vst.msk [vmem:[#allocation2] sm:$0xff] %vm1386, %v1381
    %1388 = vst.msk [vmem:[#allocation2 + $0x8] sm:$0xff] %vm1386, %v1383
    %1389 = vrot.lane.b32.xlu0 %v562, 80
    %v1390 = vpop.permute.xlu0 %1389
    %1391 = vrot.lane.b32.xlu0 %v563, 80
    %v1392 = vpop.permute.xlu0 %1391
    %v1395 = vsel %vm1026, %v1206, 0
    %v1398 = vsel %vm1214, %v1392, 0
    %1400 = vmatprep.subr.bf16.mxu0 0
    %1401 = vmatpush1.bf16.msra.mxu0 %v1390
    %1402 = vmatprep.subr.bf16.mxu0 0
    %1403 = vmatpush1.bf16.msra.mxu0 %v1398
    %1404 = vmatprep.subr.bf16.mxu0 0
    %1405 = vmatpush1.bf16.msra.mxu0 0
    %1406 = vmatprep.subr.bf16.mxu0 0
    %1407 = vmatpush1.bf16.msra.mxu0 0
    %1408 = vmatprep.subr.bf16.mxu0 0
    %1409 = vmatpush1.bf16.msra.mxu0 0
    %1410 = vmatprep.subr.bf16.mxu0 0
    %1411 = vmatpush1.bf16.msra.mxu0 0
    %1412 = vmatprep.subr.bf16.mxu0 0
    %1413 = vmatpush1.bf16.msra.mxu0 0
    %1414 = vmatprep.subr.bf16.mxu0 0
    %1415 = vmatpush1.bf16.msra.mxu0 0
    %1416 = vmatprep.subr.bf16.mxu0 0
    %1417 = vmatpush1.bf16.msra.mxu0 0
    %1418 = vmatprep.subr.bf16.mxu0 0
    %1419 = vmatpush1.bf16.msra.mxu0 0
    %1420 = vmatprep.subr.bf16.mxu0 0
    %1421 = vmatpush1.bf16.msra.mxu0 0
    %1422 = vmatprep.subr.bf16.mxu0 0
    %1423 = vmatpush1.bf16.msra.mxu0 0
    %1424 = vmatprep.subr.bf16.mxu0 0
    %1425 = vmatpush1.bf16.msra.mxu0 0
    %1426 = vmatprep.subr.bf16.mxu0 0
    %1427 = vmatpush1.bf16.msra.mxu0 0
    %1428 = vmatprep.subr.bf16.mxu0 0
    %1429 = vmatpush1.bf16.msra.mxu0 0
    %1430 = vmatprep.subr.bf16.mxu0 0
    %1431 = vmatpush1.bf16.msra.mxu0 0
    %1432 = vmatprep.mubr.bf16.mxu0 0
    %1433 = vmatmul.mubr.bf16.gmra.mrb[0].mxu0 %v1395
    %v1434 = vpop.f32.mrb[0].mxu0
    %v1435 = vadd.f32 0.0, %v1434
    %v1436 = vpop.f32.mrb[0].mxu0
    %v1437 = vpop.f32.mrb[0].mxu0
    %v1438 = vadd.f32 0.0, %v1437
    %v1439 = vpop.f32.mrb[0].mxu0
    %1440 = vdwg.mxu0
    %1443 = vrot.lane.b32.xlu0 %v1435, 48
    %v1444 = vpop.permute.xlu0 %1443
    %1445 = vrot.lane.b32.xlu0 %v1438, 48
    %v1446 = vpop.permute.xlu0 %1445
    %vm1449 = vcmask 523648
    %1450 = vst.msk [vmem:[#allocation2] sm:$0xff] %vm1449, %v1444
    %1451 = vst.msk [vmem:[#allocation2 + $0x8] sm:$0xff] %vm1449, %v1446
    %1452 = vrot.lane.b32.xlu0 %v562, 64
    %v1453 = vpop.permute.xlu0 %1452
    %1454 = vrot.lane.b32.xlu0 %v563, 64
    %v1455 = vpop.permute.xlu0 %1454
    %v1458 = vsel %vm1026, %v1207, 0
    %v1461 = vsel %vm1214, %v1455, 0
    %1463 = vmatprep.subr.bf16.mxu0 0
    %1464 = vmatpush1.bf16.msra.mxu0 %v1453
    %1465 = vmatprep.subr.bf16.mxu0 0
    %1466 = vmatpush1.bf16.msra.mxu0 %v1461
    %1467 = vmatprep.subr.bf16.mxu0 0
    %1468 = vmatpush1.bf16.msra.mxu0 0
    %1469 = vmatprep.subr.bf16.mxu0 0
    %1470 = vmatpush1.bf16.msra.mxu0 0
    %1471 = vmatprep.subr.bf16.mxu0 0
    %1472 = vmatpush1.bf16.msra.mxu0 0
    %1473 = vmatprep.subr.bf16.mxu0 0
    %1474 = vmatpush1.bf16.msra.mxu0 0
    %1475 = vmatprep.subr.bf16.mxu0 0
    %1476 = vmatpush1.bf16.msra.mxu0 0
    %1477 = vmatprep.subr.bf16.mxu0 0
    %1478 = vmatpush1.bf16.msra.mxu0 0
    %1479 = vmatprep.subr.bf16.mxu0 0
    %1480 = vmatpush1.bf16.msra.mxu0 0
    %1481 = vmatprep.subr.bf16.mxu0 0
    %1482 = vmatpush1.bf16.msra.mxu0 0
    %1483 = vmatprep.subr.bf16.mxu0 0
    %1484 = vmatpush1.bf16.msra.mxu0 0
    %1485 = vmatprep.subr.bf16.mxu0 0
    %1486 = vmatpush1.bf16.msra.mxu0 0
    %1487 = vmatprep.subr.bf16.mxu0 0
    %1488 = vmatpush1.bf16.msra.mxu0 0
    %1489 = vmatprep.subr.bf16.mxu0 0
    %1490 = vmatpush1.bf16.msra.mxu0 0
    %1491 = vmatprep.subr.bf16.mxu0 0
    %1492 = vmatpush1.bf16.msra.mxu0 0
    %1493 = vmatprep.subr.bf16.mxu0 0
    %1494 = vmatpush1.bf16.msra.mxu0 0
    %1495 = vmatprep.mubr.bf16.mxu0 0
    %1496 = vmatmul.mubr.bf16.gmra.mrb[0].mxu0 %v1458
    %v1497 = vpop.f32.mrb[0].mxu0
    %v1498 = vadd.f32 0.0, %v1497
    %v1499 = vpop.f32.mrb[0].mxu0
    %v1500 = vpop.f32.mrb[0].mxu0
    %v1501 = vadd.f32 0.0, %v1500
    %v1502 = vpop.f32.mrb[0].mxu0
    %1503 = vdwg.mxu0
    %1506 = vrot.lane.b32.xlu0 %v1498, 64
    %v1507 = vpop.permute.xlu0 %1506
    %1508 = vrot.lane.b32.xlu0 %v1501, 64
    %v1509 = vpop.permute.xlu0 %1508
    %vm1512 = vcmask 654848
    %1513 = vst.msk [vmem:[#allocation2] sm:$0xff] %vm1512, %v1507
    %1514 = vst.msk [vmem:[#allocation2 + $0x8] sm:$0xff] %vm1512, %v1509
    %1515 = vrot.lane.b32.xlu0 %v562, 48
    %v1516 = vpop.permute.xlu0 %1515
    %1517 = vrot.lane.b32.xlu0 %v563, 48
    %v1518 = vpop.permute.xlu0 %1517
    %v1521 = vsel %vm1026, %v1208, 0
    %v1524 = vsel %vm1214, %v1518, 0
    %1526 = vmatprep.subr.bf16.mxu0 0
    %1527 = vmatpush1.bf16.msra.mxu0 %v1516
    %1528 = vmatprep.subr.bf16.mxu0 0
    %1529 = vmatpush1.bf16.msra.mxu0 %v1524
    %1530 = vmatprep.subr.bf16.mxu0 0
    %1531 = vmatpush1.bf16.msra.mxu0 0
    %1532 = vmatprep.subr.bf16.mxu0 0
    %1533 = vmatpush1.bf16.msra.mxu0 0
    %1534 = vmatprep.subr.bf16.mxu0 0
    %1535 = vmatpush1.bf16.msra.mxu0 0
    %1536 = vmatprep.subr.bf16.mxu0 0
    %1537 = vmatpush1.bf16.msra.mxu0 0
    %1538 = vmatprep.subr.bf16.mxu0 0
    %1539 = vmatpush1.bf16.msra.mxu0 0
    %1540 = vmatprep.subr.bf16.mxu0 0
    %1541 = vmatpush1.bf16.msra.mxu0 0
    %1542 = vmatprep.subr.bf16.mxu0 0
    %1543 = vmatpush1.bf16.msra.mxu0 0
    %1544 = vmatprep.subr.bf16.mxu0 0
    %1545 = vmatpush1.bf16.msra.mxu0 0
    %1546 = vmatprep.subr.bf16.mxu0 0
    %1547 = vmatpush1.bf16.msra.mxu0 0
    %1548 = vmatprep.subr.bf16.mxu0 0
    %1549 = vmatpush1.bf16.msra.mxu0 0
    %1550 = vmatprep.subr.bf16.mxu0 0
    %1551 = vmatpush1.bf16.msra.mxu0 0
    %1552 = vmatprep.subr.bf16.mxu0 0
    %1553 = vmatpush1.bf16.msra.mxu0 0
    %1554 = vmatprep.subr.bf16.mxu0 0
    %1555 = vmatpush1.bf16.msra.mxu0 0
    %1556 = vmatprep.subr.bf16.mxu0 0
    %1557 = vmatpush1.bf16.msra.mxu0 0
    %1558 = vmatprep.mubr.bf16.mxu0 0
    %1559 = vmatmul.mubr.bf16.gmra.mrb[0].mxu0 %v1521
    %v1560 = vpop.f32.mrb[0].mxu0
    %v1561 = vadd.f32 0.0, %v1560
    %v1562 = vpop.f32.mrb[0].mxu0
    %v1563 = vpop.f32.mrb[0].mxu0
    %v1564 = vadd.f32 0.0, %v1563
    %v1565 = vpop.f32.mrb[0].mxu0
    %1566 = vdwg.mxu0
    %1569 = vrot.lane.b32.xlu0 %v1561, 80
    %v1570 = vpop.permute.xlu0 %1569
    %1571 = vrot.lane.b32.xlu0 %v1564, 80
    %v1572 = vpop.permute.xlu0 %1571
    %vm1575 = vcmask 786048
    %1576 = vst.msk [vmem:[#allocation2] sm:$0xff] %vm1575, %v1570
    %1577 = vst.msk [vmem:[#allocation2 + $0x8] sm:$0xff] %vm1575, %v1572
    %1578 = vrot.lane.b32.xlu0 %v562, 32
    %v1579 = vpop.permute.xlu0 %1578
    %1580 = vrot.lane.b32.xlu0 %v563, 32
    %v1581 = vpop.permute.xlu0 %1580
    %v1584 = vsel %vm1026, %v1209, 0
    %v1587 = vsel %vm1214, %v1581, 0
    %1589 = vmatprep.subr.bf16.mxu0 0
    %1590 = vmatpush1.bf16.msra.mxu0 %v1579
    %1591 = vmatprep.subr.bf16.mxu0 0
    %1592 = vmatpush1.bf16.msra.mxu0 %v1587
    %1593 = vmatprep.subr.bf16.mxu0 0
    %1594 = vmatpush1.bf16.msra.mxu0 0
    %1595 = vmatprep.subr.bf16.mxu0 0
    %1596 = vmatpush1.bf16.msra.mxu0 0
    %1597 = vmatprep.subr.bf16.mxu0 0
    %1598 = vmatpush1.bf16.msra.mxu0 0
    %1599 = vmatprep.subr.bf16.mxu0 0
    %1600 = vmatpush1.bf16.msra.mxu0 0
    %1601 = vmatprep.subr.bf16.mxu0 0
    %1602 = vmatpush1.bf16.msra.mxu0 0
    %1603 = vmatprep.subr.bf16.mxu0 0
    %1604 = vmatpush1.bf16.msra.mxu0 0
    %1605 = vmatprep.subr.bf16.mxu0 0
    %1606 = vmatpush1.bf16.msra.mxu0 0
    %1607 = vmatprep.subr.bf16.mxu0 0
    %1608 = vmatpush1.bf16.msra.mxu0 0
    %1609 = vmatprep.subr.bf16.mxu0 0
    %1610 = vmatpush1.bf16.msra.mxu0 0
    %1611 = vmatprep.subr.bf16.mxu0 0
    %1612 = vmatpush1.bf16.msra.mxu0 0
    %1613 = vmatprep.subr.bf16.mxu0 0
    %1614 = vmatpush1.bf16.msra.mxu0 0
    %1615 = vmatprep.subr.bf16.mxu0 0
    %1616 = vmatpush1.bf16.msra.mxu0 0
    %1617 = vmatprep.subr.bf16.mxu0 0
    %1618 = vmatpush1.bf16.msra.mxu0 0
    %1619 = vmatprep.subr.bf16.mxu0 0
    %1620 = vmatpush1.bf16.msra.mxu0 0
    %1621 = vmatprep.mubr.bf16.mxu0 0
    %1622 = vmatmul.mubr.bf16.gmra.mrb[0].mxu0 %v1584
    %v1623 = vpop.f32.mrb[0].mxu0
    %v1624 = vadd.f32 0.0, %v1623
    %v1625 = vpop.f32.mrb[0].mxu0
    %v1626 = vpop.f32.mrb[0].mxu0
    %v1627 = vadd.f32 0.0, %v1626
    %v1628 = vpop.f32.mrb[0].mxu0
    %1629 = vdwg.mxu0
    %1632 = vrot.lane.b32.xlu0 %v1624, 96
    %v1633 = vpop.permute.xlu0 %1632
    %1634 = vrot.lane.b32.xlu0 %v1627, 96
    %v1635 = vpop.permute.xlu0 %1634
    %vm1638 = vcmask 917248
    %1639 = vst.msk [vmem:[#allocation2] sm:$0xff] %vm1638, %v1633
    %1640 = vst.msk [vmem:[#allocation2 + $0x8] sm:$0xff] %vm1638, %v1635
    %1641 = vrot.lane.b32.xlu0 %v562, 16
    %v1642 = vpop.permute.xlu0 %1641
    %1643 = vrot.lane.b32.xlu0 %v563, 16
    %v1644 = vpop.permute.xlu0 %1643
    %v1647 = vsel %vm1026, %v1210, 0
    %v1650 = vsel %vm1214, %v1644, 0
    %1652 = vmatprep.subr.bf16.mxu0 0
    %1653 = vmatpush1.bf16.msra.mxu0 %v1642
    %1654 = vmatprep.subr.bf16.mxu0 0
    %1655 = vmatpush1.bf16.msra.mxu0 %v1650
    %1656 = vmatprep.subr.bf16.mxu0 0
    %1657 = vmatpush1.bf16.msra.mxu0 0
    %1658 = vmatprep.subr.bf16.mxu0 0
    %1659 = vmatpush1.bf16.msra.mxu0 0
    %1660 = vmatprep.subr.bf16.mxu0 0
    %1661 = vmatpush1.bf16.msra.mxu0 0
    %1662 = vmatprep.subr.bf16.mxu0 0
    %1663 = vmatpush1.bf16.msra.mxu0 0
    %1664 = vmatprep.subr.bf16.mxu0 0
    %1665 = vmatpush1.bf16.msra.mxu0 0
    %1666 = vmatprep.subr.bf16.mxu0 0
    %1667 = vmatpush1.bf16.msra.mxu0 0
    %1668 = vmatprep.subr.bf16.mxu0 0
    %1669 = vmatpush1.bf16.msra.mxu0 0
    %1670 = vmatprep.subr.bf16.mxu0 0
    %1671 = vmatpush1.bf16.msra.mxu0 0
    %1672 = vmatprep.subr.bf16.mxu0 0
    %1673 = vmatpush1.bf16.msra.mxu0 0
    %1674 = vmatprep.subr.bf16.mxu0 0
    %1675 = vmatpush1.bf16.msra.mxu0 0
    %1676 = vmatprep.subr.bf16.mxu0 0
    %1677 = vmatpush1.bf16.msra.mxu0 0
    %1678 = vmatprep.subr.bf16.mxu0 0
    %1679 = vmatpush1.bf16.msra.mxu0 0
    %1680 = vmatprep.subr.bf16.mxu0 0
    %1681 = vmatpush1.bf16.msra.mxu0 0
    %1682 = vmatprep.subr.bf16.mxu0 0
    %1683 = vmatpush1.bf16.msra.mxu0 0
    %1684 = vmatprep.mubr.bf16.mxu0 0
    %1685 = vmatmul.mubr.bf16.gmra.mrb[0].mxu0 %v1647
    %v1686 = vpop.f32.mrb[0].mxu0
    %v1687 = vadd.f32 0.0, %v1686
    %v1688 = vpop.f32.mrb[0].mxu0
    %v1689 = vpop.f32.mrb[0].mxu0
    %v1690 = vadd.f32 0.0, %v1689
    %v1691 = vpop.f32.mrb[0].mxu0
    %1692 = vdwg.mxu0
    %1695 = vrot.lane.b32.xlu0 %v1687, 112
    %v1696 = vpop.permute.xlu0 %1695
    %1697 = vrot.lane.b32.xlu0 %v1690, 112
    %v1698 = vpop.permute.xlu0 %1697
    %vm1701 = vcmask 1048448
    %1702 = vst.msk [vmem:[#allocation2] sm:$0xff] %vm1701, %v1696
    %1703 = vst.msk [vmem:[#allocation2 + $0x8] sm:$0xff] %vm1701, %v1698
    %v1704 = vld [vmem:[#allocation2] sm:$0xff]
    %v1705 = vld [vmem:[#allocation2 + $0x8] sm:$0xff]
    %v1706 = vld [vmem:[%s13] sm:$0x1]
    %v1708 = vlaneseq
    %v1709 = vshrl.u32 %v1708, 7
    %v1710 = vsub.s32 0, %v1709
    %v1711 = vrot.slane %v1706, %v1710
    %v1713 = vadd.f32 %v1704, %v1711
    %v1714 = vadd.f32 %v1705, %v1711
    %v1715 = vadd.f32 %v190, %v1713
    %v1716 = vadd.f32 %v191, %v1714
    %v1717 = vld [vmem:[%s2] sm:$0xff]
    %v1718 = vld [vmem:[%s2 + $0x8] sm:$0xff]
    %v1719 = vld [vmem:[%s2 + $0x10] sm:$0xff]
    %v1720 = vld [vmem:[%s2 + $0x18] sm:$0xff]
    %v1721 = vld [vmem:[%s2 + $0x20] sm:$0xff]
    %v1722 = vld [vmem:[%s2 + $0x28] sm:$0xff]
    %v1723 = vld [vmem:[%s2 + $0x30] sm:$0xff]
    %v1724 = vld [vmem:[%s2 + $0x38] sm:$0xff]
    %v1725 = vld [vmem:[%s2 + $0x40] sm:$0xff]
    %v1726 = vld [vmem:[%s2 + $0x48] sm:$0xff]
    %v1727 = vld [vmem:[%s2 + $0x50] sm:$0xff]
    %v1728 = vld [vmem:[%s2 + $0x58] sm:$0xff]
    %v1729 = vpack.c.bf16 %v196, %v195
    %s1730 = scalar_lea.vmem %s8, 64
    %v1731 = vld [vmem:[%s1730] sm:$0xf]
    %v1732 = vld [vmem:[%s1730 + $0x4] sm:$0xf]
    %v1733 = vld [vmem:[%s1730 + $0x8] sm:$0xf]
    %v1734 = vld [vmem:[%s1730 + $0xc] sm:$0xf]
    %v1735 = vld [vmem:[%s1730 + $0x10] sm:$0xf]
    %v1736 = vld [vmem:[%s1730 + $0x14] sm:$0xf]
    %v1737 = vld [vmem:[%s1730 + $0x18] sm:$0xf]
    %v1738 = vld [vmem:[%s1730 + $0x1c] sm:$0xf]
    %v1739 = vld [vmem:[%s1730 + $0x20] sm:$0xf]
    %v1740 = vld [vmem:[%s1730 + $0x24] sm:$0xf]
    %v1741 = vld [vmem:[%s1730 + $0x28] sm:$0xf]
    %v1742 = vld [vmem:[%s1730 + $0x2c] sm:$0xf]
    %v1743 = vld [vmem:[%s1730 + $0x30] sm:$0xf]
    %v1744 = vld [vmem:[%s1730 + $0x34] sm:$0xf]
    %v1745 = vld [vmem:[%s1730 + $0x38] sm:$0xf]
    %v1746 = vld [vmem:[%s1730 + $0x3c] sm:$0xf]
    %s1747 = scalar_lea.vmem %s9, 1
    %v1748 = vld [vmem:[%s1747] sm:$0x1]
    %v1750 = vlaneseq
    %v1751 = vshrl.u32 %v1750, 7
    %v1752 = vsub.s32 0, %v1751
    %v1753 = vrot.slane %v1748, %v1752
    %v1771 = vunpack.c.l.b16 %v1731
    %v1772 = vunpack.c.l.b16 %v1732
    %v1773 = vunpack.c.l.b16 %v1733
    %v1774 = vunpack.c.l.b16 %v1734
    %v1775 = vunpack.c.l.b16 %v1735
    %v1776 = vunpack.c.l.b16 %v1736
    %v1777 = vunpack.c.l.b16 %v1737
    %v1778 = vunpack.c.l.b16 %v1738
    %v1779 = vunpack.c.l.b16 %v1739
    %v1780 = vunpack.c.l.b16 %v1740
    %v1781 = vunpack.c.l.b16 %v1741
    %v1782 = vunpack.c.l.b16 %v1742
    %v1783 = vunpack.c.l.b16 %v1743
    %v1784 = vunpack.c.l.b16 %v1744
    %v1785 = vunpack.c.l.b16 %v1745
    %v1786 = vunpack.c.l.b16 %v1746
    %v1787 = vpack.c.b16 %v1772, %v1771
    %v1788 = vpack.c.b16 %v1774, %v1773
    %v1789 = vpack.c.b16 %v1776, %v1775
    %v1790 = vpack.c.b16 %v1778, %v1777
    %v1791 = vpack.c.b16 %v1780, %v1779
    %v1792 = vpack.c.b16 %v1782, %v1781
    %v1793 = vpack.c.b16 %v1784, %v1783
    %v1794 = vpack.c.b16 %v1786, %v1785
    %1803 = vmatprep.subr.bf16.mxu0 0
    %1804 = vmatpush1.bf16.msra.mxu0 %v1787
    %1805 = vmatprep.subr.bf16.mxu0 0
    %1806 = vmatpush1.bf16.msra.mxu0 %v1788
    %1807 = vmatprep.subr.bf16.mxu0 0
    %1808 = vmatpush1.bf16.msra.mxu0 %v1789
    %1809 = vmatprep.subr.bf16.mxu0 0
    %1810 = vmatpush1.bf16.msra.mxu0 %v1790
    %1811 = vmatprep.subr.bf16.mxu0 0
    %1812 = vmatpush1.bf16.msra.mxu0 %v1791
    %1813 = vmatprep.subr.bf16.mxu0 0
    %1814 = vmatpush1.bf16.msra.mxu0 %v1792
    %1815 = vmatprep.subr.bf16.mxu0 0
    %1816 = vmatpush1.bf16.msra.mxu0 %v1793
    %1817 = vmatprep.subr.bf16.mxu0 0
    %1818 = vmatpush1.bf16.msra.mxu0 %v1794
    %1819 = vmatprep.subr.bf16.mxu0 0
    %1820 = vmatpush1.bf16.msra.mxu0 0
    %1821 = vmatprep.subr.bf16.mxu0 0
    %1822 = vmatpush1.bf16.msra.mxu0 0
    %1823 = vmatprep.subr.bf16.mxu0 0
    %1824 = vmatpush1.bf16.msra.mxu0 0
    %1825 = vmatprep.subr.bf16.mxu0 0
    %1826 = vmatpush1.bf16.msra.mxu0 0
    %1827 = vmatprep.subr.bf16.mxu0 0
    %1828 = vmatpush1.bf16.msra.mxu0 0
    %1829 = vmatprep.subr.bf16.mxu0 0
    %1830 = vmatpush1.bf16.msra.mxu0 0
    %1831 = vmatprep.subr.bf16.mxu0 0
    %1832 = vmatpush1.bf16.msra.mxu0 0
    %1833 = vmatprep.subr.bf16.mxu0 0
    %1834 = vmatpush1.bf16.msra.mxu0 0
    %1835 = vmatprep.mubr.bf16.mxu0 0
    %1836 = vmatmul.mubr.bf16.gmra.mrb[0].mxu0 %v1729
    %v1837 = vpop.f32.mrb[0].mxu0
    %v1838 = vadd.f32 %v1753, %v1837
    %v1839 = vpop.f32.mrb[0].mxu0
    %v1840 = vpop.f32.mrb[0].mxu0
    %v1841 = vadd.f32 %v1753, %v1840
    %v1842 = vpop.f32.mrb[0].mxu0
    %1843 = vdwg.mxu0
    %v1844 = vpack.c.bf16 %v1841, %v1838
    %s1845 = scalar_lea.vmem %s10, 64
    %v1846 = vld [vmem:[%s1845] sm:$0xf]
    %v1847 = vld [vmem:[%s1845 + $0x4] sm:$0xf]
    %v1848 = vld [vmem:[%s1845 + $0x8] sm:$0xf]
    %v1849 = vld [vmem:[%s1845 + $0xc] sm:$0xf]
    %v1850 = vld [vmem:[%s1845 + $0x10] sm:$0xf]
    %v1851 = vld [vmem:[%s1845 + $0x14] sm:$0xf]
    %v1852 = vld [vmem:[%s1845 + $0x18] sm:$0xf]
    %v1853 = vld [vmem:[%s1845 + $0x1c] sm:$0xf]
    %v1854 = vld [vmem:[%s1845 + $0x20] sm:$0xf]
    %v1855 = vld [vmem:[%s1845 + $0x24] sm:$0xf]
    %v1856 = vld [vmem:[%s1845 + $0x28] sm:$0xf]
    %v1857 = vld [vmem:[%s1845 + $0x2c] sm:$0xf]
    %v1858 = vld [vmem:[%s1845 + $0x30] sm:$0xf]
    %v1859 = vld [vmem:[%s1845 + $0x34] sm:$0xf]
    %v1860 = vld [vmem:[%s1845 + $0x38] sm:$0xf]
    %v1861 = vld [vmem:[%s1845 + $0x3c] sm:$0xf]
    %s1862 = scalar_lea.vmem %s11, 1
    %v1863 = vld [vmem:[%s1862] sm:$0x1]
    %v1865 = vlaneseq
    %v1866 = vshrl.u32 %v1865, 7
    %v1867 = vsub.s32 0, %v1866
    %v1868 = vrot.slane %v1863, %v1867
    %v1886 = vunpack.c.l.b16 %v1846
    %v1887 = vunpack.c.l.b16 %v1847
    %v1888 = vunpack.c.l.b16 %v1848
    %v1889 = vunpack.c.l.b16 %v1849
    %v1890 = vunpack.c.l.b16 %v1850
    %v1891 = vunpack.c.l.b16 %v1851
    %v1892 = vunpack.c.l.b16 %v1852
    %v1893 = vunpack.c.l.b16 %v1853
    %v1894 = vunpack.c.l.b16 %v1854
    %v1895 = vunpack.c.l.b16 %v1855
    %v1896 = vunpack.c.l.b16 %v1856
    %v1897 = vunpack.c.l.b16 %v1857
    %v1898 = vunpack.c.l.b16 %v1858
    %v1899 = vunpack.c.l.b16 %v1859
    %v1900 = vunpack.c.l.b16 %v1860
    %v1901 = vunpack.c.l.b16 %v1861
    %v1902 = vpack.c.b16 %v1887, %v1886
    %v1903 = vpack.c.b16 %v1889, %v1888
    %v1904 = vpack.c.b16 %v1891, %v1890
    %v1905 = vpack.c.b16 %v1893, %v1892
    %v1906 = vpack.c.b16 %v1895, %v1894
    %v1907 = vpack.c.b16 %v1897, %v1896
    %v1908 = vpack.c.b16 %v1899, %v1898
    %v1909 = vpack.c.b16 %v1901, %v1900
    %1918 = vmatprep.subr.bf16.mxu0 0
    %1919 = vmatpush1.bf16.msra.mxu0 %v1902
    %1920 = vmatprep.subr.bf16.mxu0 0
    %1921 = vmatpush1.bf16.msra.mxu0 %v1903
    %1922 = vmatprep.subr.bf16.mxu0 0
    %1923 = vmatpush1.bf16.msra.mxu0 %v1904
    %1924 = vmatprep.subr.bf16.mxu0 0
    %1925 = vmatpush1.bf16.msra.mxu0 %v1905
    %1926 = vmatprep.subr.bf16.mxu0 0
    %1927 = vmatpush1.bf16.msra.mxu0 %v1906
    %1928 = vmatprep.subr.bf16.mxu0 0
    %1929 = vmatpush1.bf16.msra.mxu0 %v1907
    %1930 = vmatprep.subr.bf16.mxu0 0
    %1931 = vmatpush1.bf16.msra.mxu0 %v1908
    %1932 = vmatprep.subr.bf16.mxu0 0
    %1933 = vmatpush1.bf16.msra.mxu0 %v1909
    %1934 = vmatprep.subr.bf16.mxu0 0
    %1935 = vmatpush1.bf16.msra.mxu0 0
    %1936 = vmatprep.subr.bf16.mxu0 0
    %1937 = vmatpush1.bf16.msra.mxu0 0
    %1938 = vmatprep.subr.bf16.mxu0 0
    %1939 = vmatpush1.bf16.msra.mxu0 0
    %1940 = vmatprep.subr.bf16.mxu0 0
    %1941 = vmatpush1.bf16.msra.mxu0 0
    %1942 = vmatprep.subr.bf16.mxu0 0
    %1943 = vmatpush1.bf16.msra.mxu0 0
    %1944 = vmatprep.subr.bf16.mxu0 0
    %1945 = vmatpush1.bf16.msra.mxu0 0
    %1946 = vmatprep.subr.bf16.mxu0 0
    %1947 = vmatpush1.bf16.msra.mxu0 0
    %1948 = vmatprep.subr.bf16.mxu0 0
    %1949 = vmatpush1.bf16.msra.mxu0 0
    %1950 = vmatprep.mubr.bf16.mxu0 0
    %1951 = vmatmul.mubr.bf16.gmra.mrb[0].mxu0 %v214
    %v1952 = vpop.f32.mrb[0].mxu0
    %v1953 = vadd.f32 %v1868, %v1952
    %v1954 = vpop.f32.mrb[0].mxu0
    %v1955 = vpop.f32.mrb[0].mxu0
    %v1956 = vadd.f32 %v1868, %v1955
    %v1957 = vpop.f32.mrb[0].mxu0
    %1958 = vmatprep.mubr.bf16.mxu0 0
    %1959 = vmatmul.mubr.bf16.gmra.mrb[0].mxu0 %v215
    %v1960 = vpop.f32.mrb[0].mxu0
    %v1961 = vadd.f32 %v1868, %v1960
    %v1962 = vpop.f32.mrb[0].mxu0
    %v1963 = vpop.f32.mrb[0].mxu0
    %v1964 = vpop.f32.mrb[0].mxu0
    %1965 = vdwg.mxu0
    %v1966 = vpack.c.bf16 %v1956, %v1953
    %v1967 = vpack.c.bf16 %v1961, %v1961
    %s1968 = scalar_lea.vmem %s12, 64
    %v1969 = vld [vmem:[%s1968] sm:$0xf]
    %v1970 = vld [vmem:[%s1968 + $0x4] sm:$0xf]
    %v1971 = vld [vmem:[%s1968 + $0x8] sm:$0xf]
    %v1972 = vld [vmem:[%s1968 + $0xc] sm:$0xf]
    %v1973 = vld [vmem:[%s1968 + $0x10] sm:$0xf]
    %v1974 = vld [vmem:[%s1968 + $0x14] sm:$0xf]
    %v1975 = vld [vmem:[%s1968 + $0x18] sm:$0xf]
    %v1976 = vld [vmem:[%s1968 + $0x1c] sm:$0xf]
    %v1977 = vld [vmem:[%s1968 + $0x20] sm:$0xf]
    %v1978 = vld [vmem:[%s1968 + $0x24] sm:$0xf]
    %v1979 = vld [vmem:[%s1968 + $0x28] sm:$0xf]
    %v1980 = vld [vmem:[%s1968 + $0x2c] sm:$0xf]
    %v1981 = vld [vmem:[%s1968 + $0x30] sm:$0xf]
    %v1982 = vld [vmem:[%s1968 + $0x34] sm:$0xf]
    %v1983 = vld [vmem:[%s1968 + $0x38] sm:$0xf]
    %v1984 = vld [vmem:[%s1968 + $0x3c] sm:$0xf]
    %v2001 = vunpack.c.l.b16 %v1969
    %v2002 = vunpack.c.l.b16 %v1970
    %v2003 = vunpack.c.l.b16 %v1971
    %v2004 = vunpack.c.l.b16 %v1972
    %v2005 = vunpack.c.l.b16 %v1973
    %v2006 = vunpack.c.l.b16 %v1974
    %v2007 = vunpack.c.l.b16 %v1975
    %v2008 = vunpack.c.l.b16 %v1976
    %v2009 = vunpack.c.l.b16 %v1977
    %v2010 = vunpack.c.l.b16 %v1978
    %v2011 = vunpack.c.l.b16 %v1979
    %v2012 = vunpack.c.l.b16 %v1980
    %v2013 = vunpack.c.l.b16 %v1981
    %v2014 = vunpack.c.l.b16 %v1982
    %v2015 = vunpack.c.l.b16 %v1983
    %v2016 = vunpack.c.l.b16 %v1984
    %v2017 = vpack.c.b16 %v2002, %v2001
    %v2018 = vpack.c.b16 %v2004, %v2003
    %v2019 = vpack.c.b16 %v2006, %v2005
    %v2020 = vpack.c.b16 %v2008, %v2007
    %v2021 = vpack.c.b16 %v2010, %v2009
    %v2022 = vpack.c.b16 %v2012, %v2011
    %v2023 = vpack.c.b16 %v2014, %v2013
    %v2024 = vpack.c.b16 %v2016, %v2015
    %2033 = vmatprep.subr.bf16.mxu0 0
    %2034 = vmatpush1.bf16.msra.mxu0 %v2017
    %2035 = vmatprep.subr.bf16.mxu0 0
    %2036 = vmatpush1.bf16.msra.mxu0 %v2018
    %2037 = vmatprep.subr.bf16.mxu0 0
    %2038 = vmatpush1.bf16.msra.mxu0 %v2019
    %2039 = vmatprep.subr.bf16.mxu0 0
    %2040 = vmatpush1.bf16.msra.mxu0 %v2020
    %2041 = vmatprep.subr.bf16.mxu0 0
    %2042 = vmatpush1.bf16.msra.mxu0 %v2021
    %2043 = vmatprep.subr.bf16.mxu0 0
    %2044 = vmatpush1.bf16.msra.mxu0 %v2022
    %2045 = vmatprep.subr.bf16.mxu0 0
    %2046 = vmatpush1.bf16.msra.mxu0 %v2023
    %2047 = vmatprep.subr.bf16.mxu0 0
    %2048 = vmatpush1.bf16.msra.mxu0 %v2024
    %2049 = vmatprep.subr.bf16.mxu0 0
    %2050 = vmatpush1.bf16.msra.mxu0 0
    %2051 = vmatprep.subr.bf16.mxu0 0
    %2052 = vmatpush1.bf16.msra.mxu0 0
    %2053 = vmatprep.subr.bf16.mxu0 0
    %2054 = vmatpush1.bf16.msra.mxu0 0
    %2055 = vmatprep.subr.bf16.mxu0 0
    %2056 = vmatpush1.bf16.msra.mxu0 0
    %2057 = vmatprep.subr.bf16.mxu0 0
    %2058 = vmatpush1.bf16.msra.mxu0 0
    %2059 = vmatprep.subr.bf16.mxu0 0
    %2060 = vmatpush1.bf16.msra.mxu0 0
    %2061 = vmatprep.subr.bf16.mxu0 0
    %2062 = vmatpush1.bf16.msra.mxu0 0
    %2063 = vmatprep.subr.bf16.mxu0 0
    %2064 = vmatpush1.bf16.msra.mxu0 0
    %2065 = vmatprep.mubr.bf16.mxu0 0
    %2066 = vmatmul.mubr.bf16.gmra.mrb[0].mxu0 %v214
    %v2067 = vpop.f32.mrb[0].mxu0
    %v2068 = vadd.f32 0.0, %v2067
    %v2069 = vpop.f32.mrb[0].mxu0
    %v2070 = vpop.f32.mrb[0].mxu0
    %v2071 = vadd.f32 0.0, %v2070
    %v2072 = vpop.f32.mrb[0].mxu0
    %2073 = vmatprep.mubr.bf16.mxu0 0
    %2074 = vmatmul.mubr.bf16.gmra.mrb[0].mxu0 %v215
    %v2075 = vpop.f32.mrb[0].mxu0
    %v2076 = vadd.f32 0.0, %v2075
    %v2077 = vpop.f32.mrb[0].mxu0
    %v2078 = vpop.f32.mrb[0].mxu0
    %v2079 = vpop.f32.mrb[0].mxu0
    %2080 = vdwg.mxu0
    %v2081 = vpack.c.bf16 %v2071, %v2068
    %v2082 = vpack.c.bf16 %v2076, %v2076
    %v2084 = vsel %vm564, %v1844, 0
    %v2087 = vsel %vm564, %v1966, 0
    %v2090 = vsel %vm564, %v1967, 0
    %2092 = vmatprep.subr.bf16.mxu0 0
    %2093 = vmatpush1.bf16.xpose.msra.mxu0 %v2087
    %2094 = vmatprep.subr.bf16.mxu0 0
    %2095 = vmatpush1.bf16.xpose.msra.mxu0 %v2090
    %2096 = vmatprep.subr.bf16.mxu0 0
    %2097 = vmatpush1.bf16.xpose.msra.mxu0 0
    %2098 = vmatprep.subr.bf16.mxu0 0
    %2099 = vmatpush1.bf16.xpose.msra.mxu0 0
    %2100 = vmatprep.subr.bf16.mxu0 0
    %2101 = vmatpush1.bf16.xpose.msra.mxu0 0
    %2102 = vmatprep.subr.bf16.mxu0 0
    %2103 = vmatpush1.bf16.xpose.msra.mxu0 0
    %2104 = vmatprep.subr.bf16.mxu0 0
    %2105 = vmatpush1.bf16.xpose.msra.mxu0 0
    %2106 = vmatprep.subr.bf16.mxu0 0
    %2107 = vmatpush1.bf16.xpose.msra.mxu0 0
    %2108 = vmatprep.subr.bf16.mxu0 0
    %2109 = vmatpush1.bf16.xpose.msra.mxu0 0
    %2110 = vmatprep.subr.bf16.mxu0 0
    %2111 = vmatpush1.bf16.xpose.msra.mxu0 0
    %2112 = vmatprep.subr.bf16.mxu0 0
    %2113 = vmatpush1.bf16.xpose.msra.mxu0 0
    %2114 = vmatprep.subr.bf16.mxu0 0
    %2115 = vmatpush1.bf16.xpose.msra.mxu0 0
    %2116 = vmatprep.subr.bf16.mxu0 0
    %2117 = vmatpush1.bf16.xpose.msra.mxu0 0
    %2118 = vmatprep.subr.bf16.mxu0 0
    %2119 = vmatpush1.bf16.xpose.msra.mxu0 0
    %2120 = vmatprep.subr.bf16.mxu0 0
    %2121 = vmatpush1.bf16.xpose.msra.mxu0 0
    %2122 = vmatprep.subr.bf16.mxu0 0
    %2123 = vmatpush1.bf16.xpose.msra.mxu0 0
    %2124 = vmatprep.mubr.bf16.mxu0 0
    %2125 = vmatmul.mubr.bf16.gmra.mrb[0].mxu0 %v2084
    %v2126 = vpop.f32.mrb[0].mxu0
    %v2127 = vadd.f32 0.0, %v2126
    %v2128 = vpop.f32.mrb[0].mxu0
    %v2129 = vpop.f32.mrb[0].mxu0
    %v2130 = vadd.f32 0.0, %v2129
    %v2131 = vpop.f32.mrb[0].mxu0
    %2132 = vdwg.mxu0
    %2134 = vrot.lane.b32.xlu0 %v1844, 112
    %v2135 = vpop.permute.xlu0 %2134
    %2138 = vrot.lane.b32.xlu0 %v1966, 112
    %v2139 = vpop.permute.xlu0 %2138
    %2140 = vrot.lane.b32.xlu0 %v1967, 112
    %v2141 = vpop.permute.xlu0 %2140
    %v2143 = vsel %vm564, %v2135, 0
    %v2146 = vsel %vm564, %v2139, 0
    %v2149 = vsel %vm564, %v2141, 0
    %2151 = vmatprep.subr.bf16.mxu0 0
    %2152 = vmatpush1.bf16.xpose.msra.mxu0 %v2146
    %2153 = vmatprep.subr.bf16.mxu0 0
    %2154 = vmatpush1.bf16.xpose.msra.mxu0 %v2149
    %2155 = vmatprep.subr.bf16.mxu0 0
    %2156 = vmatpush1.bf16.xpose.msra.mxu0 0
    %2157 = vmatprep.subr.bf16.mxu0 0
    %2158 = vmatpush1.bf16.xpose.msra.mxu0 0
    %2159 = vmatprep.subr.bf16.mxu0 0
    %2160 = vmatpush1.bf16.xpose.msra.mxu0 0
    %2161 = vmatprep.subr.bf16.mxu0 0
    %2162 = vmatpush1.bf16.xpose.msra.mxu0 0
    %2163 = vmatprep.subr.bf16.mxu0 0
    %2164 = vmatpush1.bf16.xpose.msra.mxu0 0
    %2165 = vmatprep.subr.bf16.mxu0 0
    %2166 = vmatpush1.bf16.xpose.msra.mxu0 0
    %2167 = vmatprep.subr.bf16.mxu0 0
    %2168 = vmatpush1.bf16.xpose.msra.mxu0 0
    %2169 = vmatprep.subr.bf16.mxu0 0
    %2170 = vmatpush1.bf16.xpose.msra.mxu0 0
    %2171 = vmatprep.subr.bf16.mxu0 0
    %2172 = vmatpush1.bf16.xpose.msra.mxu0 0
    %2173 = vmatprep.subr.bf16.mxu0 0
    %2174 = vmatpush1.bf16.xpose.msra.mxu0 0
    %2175 = vmatprep.subr.bf16.mxu0 0
    %2176 = vmatpush1.bf16.xpose.msra.mxu0 0
    %2177 = vmatprep.subr.bf16.mxu0 0
    %2178 = vmatpush1.bf16.xpose.msra.mxu0 0
    %2179 = vmatprep.subr.bf16.mxu0 0
    %2180 = vmatpush1.bf16.xpose.msra.mxu0 0
    %2181 = vmatprep.subr.bf16.mxu0 0
    %2182 = vmatpush1.bf16.xpose.msra.mxu0 0
    %2183 = vmatprep.mubr.bf16.mxu0 0
    %2184 = vmatmul.mubr.bf16.gmra.mrb[0].mxu0 %v2143
    %v2185 = vpop.f32.mrb[0].mxu0
    %v2186 = vadd.f32 0.0, %v2185
    %v2187 = vpop.f32.mrb[0].mxu0
    %v2188 = vpop.f32.mrb[0].mxu0
    %v2189 = vadd.f32 0.0, %v2188
    %v2190 = vpop.f32.mrb[0].mxu0
    %2191 = vdwg.mxu0
    %2192 = vrot.lane.b32.xlu0 %v1844, 96
    %v2193 = vpop.permute.xlu0 %2192
    %2194 = vrot.lane.b32.xlu0 %v1966, 96
    %v2195 = vpop.permute.xlu0 %2194
    %2196 = vrot.lane.b32.xlu0 %v1967, 96
    %v2197 = vpop.permute.xlu0 %2196
    %v2199 = vsel %vm564, %v2193, 0
    %v2202 = vsel %vm564, %v2195, 0
    %v2205 = vsel %vm564, %v2197, 0
    %2207 = vmatprep.subr.bf16.mxu0 0
    %2208 = vmatpush1.bf16.xpose.msra.mxu0 %v2202
    %2209 = vmatprep.subr.bf16.mxu0 0
    %2210 = vmatpush1.bf16.xpose.msra.mxu0 %v2205
    %2211 = vmatprep.subr.bf16.mxu0 0
    %2212 = vmatpush1.bf16.xpose.msra.mxu0 0
    %2213 = vmatprep.subr.bf16.mxu0 0
    %2214 = vmatpush1.bf16.xpose.msra.mxu0 0
    %2215 = vmatprep.subr.bf16.mxu0 0
    %2216 = vmatpush1.bf16.xpose.msra.mxu0 0
    %2217 = vmatprep.subr.bf16.mxu0 0
    %2218 = vmatpush1.bf16.xpose.msra.mxu0 0
    %2219 = vmatprep.subr.bf16.mxu0 0
    %2220 = vmatpush1.bf16.xpose.msra.mxu0 0
    %2221 = vmatprep.subr.bf16.mxu0 0
    %2222 = vmatpush1.bf16.xpose.msra.mxu0 0
    %2223 = vmatprep.subr.bf16.mxu0 0
    %2224 = vmatpush1.bf16.xpose.msra.mxu0 0
    %2225 = vmatprep.subr.bf16.mxu0 0
    %2226 = vmatpush1.bf16.xpose.msra.mxu0 0
    %2227 = vmatprep.subr.bf16.mxu0 0
    %2228 = vmatpush1.bf16.xpose.msra.mxu0 0
    %2229 = vmatprep.subr.bf16.mxu0 0
    %2230 = vmatpush1.bf16.xpose.msra.mxu0 0
    %2231 = vmatprep.subr.bf16.mxu0 0
    %2232 = vmatpush1.bf16.xpose.msra.mxu0 0
    %2233 = vmatprep.subr.bf16.mxu0 0
    %2234 = vmatpush1.bf16.xpose.msra.mxu0 0
    %2235 = vmatprep.subr.bf16.mxu0 0
    %2236 = vmatpush1.bf16.xpose.msra.mxu0 0
    %2237 = vmatprep.subr.bf16.mxu0 0
    %2238 = vmatpush1.bf16.xpose.msra.mxu0 0
    %2239 = vmatprep.mubr.bf16.mxu0 0
    %2240 = vmatmul.mubr.bf16.gmra.mrb[0].mxu0 %v2199
    %v2241 = vpop.f32.mrb[0].mxu0
    %v2242 = vadd.f32 0.0, %v2241
    %v2243 = vpop.f32.mrb[0].mxu0
    %v2244 = vpop.f32.mrb[0].mxu0
    %v2245 = vadd.f32 0.0, %v2244
    %v2246 = vpop.f32.mrb[0].mxu0
    %2247 = vdwg.mxu0
    %2248 = vrot.lane.b32.xlu0 %v1844, 80
    %v2249 = vpop.permute.xlu0 %2248
    %2250 = vrot.lane.b32.xlu0 %v1966, 80
    %v2251 = vpop.permute.xlu0 %2250
    %2252 = vrot.lane.b32.xlu0 %v1967, 80
    %v2253 = vpop.permute.xlu0 %2252
    %v2255 = vsel %vm564, %v2249, 0
    %v2258 = vsel %vm564, %v2251, 0
    %v2261 = vsel %vm564, %v2253, 0
    %2263 = vmatprep.subr.bf16.mxu0 0
    %2264 = vmatpush1.bf16.xpose.msra.mxu0 %v2258
    %2265 = vmatprep.subr.bf16.mxu0 0
    %2266 = vmatpush1.bf16.xpose.msra.mxu0 %v2261
    %2267 = vmatprep.subr.bf16.mxu0 0
    %2268 = vmatpush1.bf16.xpose.msra.mxu0 0
    %2269 = vmatprep.subr.bf16.mxu0 0
    %2270 = vmatpush1.bf16.xpose.msra.mxu0 0
    %2271 = vmatprep.subr.bf16.mxu0 0
    %2272 = vmatpush1.bf16.xpose.msra.mxu0 0
    %2273 = vmatprep.subr.bf16.mxu0 0
    %2274 = vmatpush1.bf16.xpose.msra.mxu0 0
    %2275 = vmatprep.subr.bf16.mxu0 0
    %2276 = vmatpush1.bf16.xpose.msra.mxu0 0
    %2277 = vmatprep.subr.bf16.mxu0 0
    %2278 = vmatpush1.bf16.xpose.msra.mxu0 0
    %2279 = vmatprep.subr.bf16.mxu0 0
    %2280 = vmatpush1.bf16.xpose.msra.mxu0 0
    %2281 = vmatprep.subr.bf16.mxu0 0
    %2282 = vmatpush1.bf16.xpose.msra.mxu0 0
    %2283 = vmatprep.subr.bf16.mxu0 0
    %2284 = vmatpush1.bf16.xpose.msra.mxu0 0
    %2285 = vmatprep.subr.bf16.mxu0 0
    %2286 = vmatpush1.bf16.xpose.msra.mxu0 0
    %2287 = vmatprep.subr.bf16.mxu0 0
    %2288 = vmatpush1.bf16.xpose.msra.mxu0 0
    %2289 = vmatprep.subr.bf16.mxu0 0
    %2290 = vmatpush1.bf16.xpose.msra.mxu0 0
    %2291 = vmatprep.subr.bf16.mxu0 0
    %2292 = vmatpush1.bf16.xpose.msra.mxu0 0
    %2293 = vmatprep.subr.bf16.mxu0 0
    %2294 = vmatpush1.bf16.xpose.msra.mxu0 0
    %2295 = vmatprep.mubr.bf16.mxu0 0
    %2296 = vmatmul.mubr.bf16.gmra.mrb[0].mxu0 %v2255
    %v2297 = vpop.f32.mrb[0].mxu0
    %v2298 = vadd.f32 0.0, %v2297
    %v2299 = vpop.f32.mrb[0].mxu0
    %v2300 = vpop.f32.mrb[0].mxu0
    %v2301 = vadd.f32 0.0, %v2300
    %v2302 = vpop.f32.mrb[0].mxu0
    %2303 = vdwg.mxu0
    %2304 = vrot.lane.b32.xlu0 %v1844, 64
    %v2305 = vpop.permute.xlu0 %2304
    %2306 = vrot.lane.b32.xlu0 %v1966, 64
    %v2307 = vpop.permute.xlu0 %2306
    %2308 = vrot.lane.b32.xlu0 %v1967, 64
    %v2309 = vpop.permute.xlu0 %2308
    %v2311 = vsel %vm564, %v2305, 0
    %v2314 = vsel %vm564, %v2307, 0
    %v2317 = vsel %vm564, %v2309, 0
    %2319 = vmatprep.subr.bf16.mxu0 0
    %2320 = vmatpush1.bf16.xpose.msra.mxu0 %v2314
    %2321 = vmatprep.subr.bf16.mxu0 0
    %2322 = vmatpush1.bf16.xpose.msra.mxu0 %v2317
    %2323 = vmatprep.subr.bf16.mxu0 0
    %2324 = vmatpush1.bf16.xpose.msra.mxu0 0
    %2325 = vmatprep.subr.bf16.mxu0 0
    %2326 = vmatpush1.bf16.xpose.msra.mxu0 0
    %2327 = vmatprep.subr.bf16.mxu0 0
    %2328 = vmatpush1.bf16.xpose.msra.mxu0 0
    %2329 = vmatprep.subr.bf16.mxu0 0
    %2330 = vmatpush1.bf16.xpose.msra.mxu0 0
    %2331 = vmatprep.subr.bf16.mxu0 0
    %2332 = vmatpush1.bf16.xpose.msra.mxu0 0
    %2333 = vmatprep.subr.bf16.mxu0 0
    %2334 = vmatpush1.bf16.xpose.msra.mxu0 0
    %2335 = vmatprep.subr.bf16.mxu0 0
    %2336 = vmatpush1.bf16.xpose.msra.mxu0 0
    %2337 = vmatprep.subr.bf16.mxu0 0
    %2338 = vmatpush1.bf16.xpose.msra.mxu0 0
    %2339 = vmatprep.subr.bf16.mxu0 0
    %2340 = vmatpush1.bf16.xpose.msra.mxu0 0
    %2341 = vmatprep.subr.bf16.mxu0 0
    %2342 = vmatpush1.bf16.xpose.msra.mxu0 0
    %2343 = vmatprep.subr.bf16.mxu0 0
    %2344 = vmatpush1.bf16.xpose.msra.mxu0 0
    %2345 = vmatprep.subr.bf16.mxu0 0
    %2346 = vmatpush1.bf16.xpose.msra.mxu0 0
    %2347 = vmatprep.subr.bf16.mxu0 0
    %2348 = vmatpush1.bf16.xpose.msra.mxu0 0
    %2349 = vmatprep.subr.bf16.mxu0 0
    %2350 = vmatpush1.bf16.xpose.msra.mxu0 0
    %2351 = vmatprep.mubr.bf16.mxu0 0
    %2352 = vmatmul.mubr.bf16.gmra.mrb[0].mxu0 %v2311
    %v2353 = vpop.f32.mrb[0].mxu0
    %v2354 = vadd.f32 0.0, %v2353
    %v2355 = vpop.f32.mrb[0].mxu0
    %v2356 = vpop.f32.mrb[0].mxu0
    %v2357 = vadd.f32 0.0, %v2356
    %v2358 = vpop.f32.mrb[0].mxu0
    %2359 = vdwg.mxu0
    %2360 = vrot.lane.b32.xlu0 %v1844, 48
    %v2361 = vpop.permute.xlu0 %2360
    %2362 = vrot.lane.b32.xlu0 %v1966, 48
    %v2363 = vpop.permute.xlu0 %2362
    %2364 = vrot.lane.b32.xlu0 %v1967, 48
    %v2365 = vpop.permute.xlu0 %2364
    %v2367 = vsel %vm564, %v2361, 0
    %v2370 = vsel %vm564, %v2363, 0
    %v2373 = vsel %vm564, %v2365, 0
    %2375 = vmatprep.subr.bf16.mxu0 0
    %2376 = vmatpush1.bf16.xpose.msra.mxu0 %v2370
    %2377 = vmatprep.subr.bf16.mxu0 0
    %2378 = vmatpush1.bf16.xpose.msra.mxu0 %v2373
    %2379 = vmatprep.subr.bf16.mxu0 0
    %2380 = vmatpush1.bf16.xpose.msra.mxu0 0
    %2381 = vmatprep.subr.bf16.mxu0 0
    %2382 = vmatpush1.bf16.xpose.msra.mxu0 0
    %2383 = vmatprep.subr.bf16.mxu0 0
    %2384 = vmatpush1.bf16.xpose.msra.mxu0 0
    %2385 = vmatprep.subr.bf16.mxu0 0
    %2386 = vmatpush1.bf16.xpose.msra.mxu0 0
    %2387 = vmatprep.subr.bf16.mxu0 0
    %2388 = vmatpush1.bf16.xpose.msra.mxu0 0
    %2389 = vmatprep.subr.bf16.mxu0 0
    %2390 = vmatpush1.bf16.xpose.msra.mxu0 0
    %2391 = vmatprep.subr.bf16.mxu0 0
    %2392 = vmatpush1.bf16.xpose.msra.mxu0 0
    %2393 = vmatprep.subr.bf16.mxu0 0
    %2394 = vmatpush1.bf16.xpose.msra.mxu0 0
    %2395 = vmatprep.subr.bf16.mxu0 0
    %2396 = vmatpush1.bf16.xpose.msra.mxu0 0
    %2397 = vmatprep.subr.bf16.mxu0 0
    %2398 = vmatpush1.bf16.xpose.msra.mxu0 0
    %2399 = vmatprep.subr.bf16.mxu0 0
    %2400 = vmatpush1.bf16.xpose.msra.mxu0 0
    %2401 = vmatprep.subr.bf16.mxu0 0
    %2402 = vmatpush1.bf16.xpose.msra.mxu0 0
    %2403 = vmatprep.subr.bf16.mxu0 0
    %2404 = vmatpush1.bf16.xpose.msra.mxu0 0
    %2405 = vmatprep.subr.bf16.mxu0 0
    %2406 = vmatpush1.bf16.xpose.msra.mxu0 0
    %2407 = vmatprep.mubr.bf16.mxu0 0
    %2408 = vmatmul.mubr.bf16.gmra.mrb[0].mxu0 %v2367
    %v2409 = vpop.f32.mrb[0].mxu0
    %v2410 = vadd.f32 0.0, %v2409
    %v2411 = vpop.f32.mrb[0].mxu0
    %v2412 = vpop.f32.mrb[0].mxu0
    %v2413 = vadd.f32 0.0, %v2412
    %v2414 = vpop.f32.mrb[0].mxu0
    %2415 = vdwg.mxu0
    %2416 = vrot.lane.b32.xlu0 %v1844, 32
    %v2417 = vpop.permute.xlu0 %2416
    %2418 = vrot.lane.b32.xlu0 %v1966, 32
    %v2419 = vpop.permute.xlu0 %2418
    %2420 = vrot.lane.b32.xlu0 %v1967, 32
    %v2421 = vpop.permute.xlu0 %2420
    %v2423 = vsel %vm564, %v2417, 0
    %v2426 = vsel %vm564, %v2419, 0
    %v2429 = vsel %vm564, %v2421, 0
    %2431 = vmatprep.subr.bf16.mxu0 0
    %2432 = vmatpush1.bf16.xpose.msra.mxu0 %v2426
    %2433 = vmatprep.subr.bf16.mxu0 0
    %2434 = vmatpush1.bf16.xpose.msra.mxu0 %v2429
    %2435 = vmatprep.subr.bf16.mxu0 0
    %2436 = vmatpush1.bf16.xpose.msra.mxu0 0
    %2437 = vmatprep.subr.bf16.mxu0 0
    %2438 = vmatpush1.bf16.xpose.msra.mxu0 0
    %2439 = vmatprep.subr.bf16.mxu0 0
    %2440 = vmatpush1.bf16.xpose.msra.mxu0 0
    %2441 = vmatprep.subr.bf16.mxu0 0
    %2442 = vmatpush1.bf16.xpose.msra.mxu0 0
    %2443 = vmatprep.subr.bf16.mxu0 0
    %2444 = vmatpush1.bf16.xpose.msra.mxu0 0
    %2445 = vmatprep.subr.bf16.mxu0 0
    %2446 = vmatpush1.bf16.xpose.msra.mxu0 0
    %2447 = vmatprep.subr.bf16.mxu0 0
    %2448 = vmatpush1.bf16.xpose.msra.mxu0 0
    %2449 = vmatprep.subr.bf16.mxu0 0
    %2450 = vmatpush1.bf16.xpose.msra.mxu0 0
    %2451 = vmatprep.subr.bf16.mxu0 0
    %2452 = vmatpush1.bf16.xpose.msra.mxu0 0
    %2453 = vmatprep.subr.bf16.mxu0 0
    %2454 = vmatpush1.bf16.xpose.msra.mxu0 0
    %2455 = vmatprep.subr.bf16.mxu0 0
    %2456 = vmatpush1.bf16.xpose.msra.mxu0 0
    %2457 = vmatprep.subr.bf16.mxu0 0
    %2458 = vmatpush1.bf16.xpose.msra.mxu0 0
    %2459 = vmatprep.subr.bf16.mxu0 0
    %2460 = vmatpush1.bf16.xpose.msra.mxu0 0
    %2461 = vmatprep.subr.bf16.mxu0 0
    %2462 = vmatpush1.bf16.xpose.msra.mxu0 0
    %2463 = vmatprep.mubr.bf16.mxu0 0
    %2464 = vmatmul.mubr.bf16.gmra.mrb[0].mxu0 %v2423
    %v2465 = vpop.f32.mrb[0].mxu0
    %v2466 = vadd.f32 0.0, %v2465
    %v2467 = vpop.f32.mrb[0].mxu0
    %v2468 = vpop.f32.mrb[0].mxu0
    %v2469 = vadd.f32 0.0, %v2468
    %v2470 = vpop.f32.mrb[0].mxu0
    %2471 = vdwg.mxu0
    %2472 = vrot.lane.b32.xlu0 %v1844, 16
    %v2473 = vpop.permute.xlu0 %2472
    %2474 = vrot.lane.b32.xlu0 %v1966, 16
    %v2475 = vpop.permute.xlu0 %2474
    %2476 = vrot.lane.b32.xlu0 %v1967, 16
    %v2477 = vpop.permute.xlu0 %2476
    %v2479 = vsel %vm564, %v2473, 0
    %v2482 = vsel %vm564, %v2475, 0
    %v2485 = vsel %vm564, %v2477, 0
    %2487 = vmatprep.subr.bf16.mxu0 0
    %2488 = vmatpush1.bf16.xpose.msra.mxu0 %v2482
    %2489 = vmatprep.subr.bf16.mxu0 0
    %2490 = vmatpush1.bf16.xpose.msra.mxu0 %v2485
    %2491 = vmatprep.subr.bf16.mxu0 0
    %2492 = vmatpush1.bf16.xpose.msra.mxu0 0
    %2493 = vmatprep.subr.bf16.mxu0 0
    %2494 = vmatpush1.bf16.xpose.msra.mxu0 0
    %2495 = vmatprep.subr.bf16.mxu0 0
    %2496 = vmatpush1.bf16.xpose.msra.mxu0 0
    %2497 = vmatprep.subr.bf16.mxu0 0
    %2498 = vmatpush1.bf16.xpose.msra.mxu0 0
    %2499 = vmatprep.subr.bf16.mxu0 0
    %2500 = vmatpush1.bf16.xpose.msra.mxu0 0
    %2501 = vmatprep.subr.bf16.mxu0 0
    %2502 = vmatpush1.bf16.xpose.msra.mxu0 0
    %2503 = vmatprep.subr.bf16.mxu0 0
    %2504 = vmatpush1.bf16.xpose.msra.mxu0 0
    %2505 = vmatprep.subr.bf16.mxu0 0
    %2506 = vmatpush1.bf16.xpose.msra.mxu0 0
    %2507 = vmatprep.subr.bf16.mxu0 0
    %2508 = vmatpush1.bf16.xpose.msra.mxu0 0
    %2509 = vmatprep.subr.bf16.mxu0 0
    %2510 = vmatpush1.bf16.xpose.msra.mxu0 0
    %2511 = vmatprep.subr.bf16.mxu0 0
    %2512 = vmatpush1.bf16.xpose.msra.mxu0 0
    %2513 = vmatprep.subr.bf16.mxu0 0
    %2514 = vmatpush1.bf16.xpose.msra.mxu0 0
    %2515 = vmatprep.subr.bf16.mxu0 0
    %2516 = vmatpush1.bf16.xpose.msra.mxu0 0
    %2517 = vmatprep.subr.bf16.mxu0 0
    %2518 = vmatpush1.bf16.xpose.msra.mxu0 0
    %2519 = vmatprep.mubr.bf16.mxu0 0
    %2520 = vmatmul.mubr.bf16.gmra.mrb[0].mxu0 %v2479
    %v2521 = vpop.f32.mrb[0].mxu0
    %v2522 = vadd.f32 0.0, %v2521
    %v2523 = vpop.f32.mrb[0].mxu0
    %v2524 = vpop.f32.mrb[0].mxu0
    %v2525 = vadd.f32 0.0, %v2524
    %v2526 = vpop.f32.mrb[0].mxu0
    %2527 = vdwg.mxu0
    %v2530 = vrot.slane %v2186, 4
    %v2531 = vrot.slane %v2189, 4
    %v2532 = vsel %vm1214, %v2530, %v2531
    %v2537 = vrot.slane %v2298, 4
    %v2538 = vrot.slane %v2301, 4
    %v2539 = vsel %vm1214, %v2537, %v2538
    %v2544 = vrot.slane %v2410, 4
    %v2545 = vrot.slane %v2413, 4
    %v2546 = vsel %vm1214, %v2544, %v2545
    %v2551 = vrot.slane %v2522, 4
    %v2552 = vrot.slane %v2525, 4
    %v2553 = vsel %vm1214, %v2551, %v2552
    %v2556 = vsel %vm1214, %v2130, %v2530
    %v2557 = vsel %vm1214, %v2245, %v2537
    %v2558 = vsel %vm1214, %v2357, %v2544
    %v2559 = vsel %vm1214, %v2469, %v2551
    %v2560 = vadd.f32 %v1717, %v2127
    %v2561 = vadd.f32 %v1718, %v2556
    %v2562 = vadd.f32 %v1719, %v2532
    %v2563 = vadd.f32 %v1720, %v2242
    %v2564 = vadd.f32 %v1721, %v2557
    %v2565 = vadd.f32 %v1722, %v2539
    %v2566 = vadd.f32 %v1723, %v2354
    %v2567 = vadd.f32 %v1724, %v2558
    %v2568 = vadd.f32 %v1725, %v2546
    %v2569 = vadd.f32 %v1726, %v2466
    %v2570 = vadd.f32 %v1727, %v2559
    %v2571 = vadd.f32 %v1728, %v2553
    %v2572 = vsel %vm1026, %v2560, -inf
    %2573 = vmax.xlane.f32.xlu0 %v2572
    %v2574 = vpop.xlane.xlu0 %2573
    %v2575 = vsel %vm1026, %v2561, -inf
    %2576 = vmax.xlane.f32.xlu0 %v2575
    %v2577 = vpop.xlane.xlu0 %2576
    %v2578 = vsel %vm1026, %v2562, -inf
    %2579 = vmax.xlane.f32.xlu0 %v2578
    %v2580 = vpop.xlane.xlu0 %2579
    %v2581 = vsel %vm1026, %v2563, -inf
    %2582 = vmax.xlane.f32.xlu0 %v2581
    %v2583 = vpop.xlane.xlu0 %2582
    %v2584 = vsel %vm1026, %v2564, -inf
    %2585 = vmax.xlane.f32.xlu0 %v2584
    %v2586 = vpop.xlane.xlu0 %2585
    %v2587 = vsel %vm1026, %v2565, -inf
    %2588 = vmax.xlane.f32.xlu0 %v2587
    %v2589 = vpop.xlane.xlu0 %2588
    %v2590 = vsel %vm1026, %v2566, -inf
    %2591 = vmax.xlane.f32.xlu0 %v2590
    %v2592 = vpop.xlane.xlu0 %2591
    %v2593 = vsel %vm1026, %v2567, -inf
    %2594 = vmax.xlane.f32.xlu0 %v2593
    %v2595 = vpop.xlane.xlu0 %2594
    %v2596 = vsel %vm1026, %v2568, -inf
    %2597 = vmax.xlane.f32.xlu0 %v2596
    %v2598 = vpop.xlane.xlu0 %2597
    %v2599 = vsel %vm1026, %v2569, -inf
    %2600 = vmax.xlane.f32.xlu0 %v2599
    %v2601 = vpop.xlane.xlu0 %2600
    %v2602 = vsel %vm1026, %v2570, -inf
    %2603 = vmax.xlane.f32.xlu0 %v2602
    %v2604 = vpop.xlane.xlu0 %2603
    %v2605 = vsel %vm1026, %v2571, -inf
    %2606 = vmax.xlane.f32.xlu0 %v2605
    %v2607 = vpop.xlane.xlu0 %2606
    %v2608 = vsub.f32 %v2560, %v2574
    %v2609 = vsub.f32 %v2561, %v2577
    %v2610 = vsub.f32 %v2562, %v2580
    %v2611 = vsub.f32 %v2563, %v2583
    %v2612 = vsub.f32 %v2564, %v2586
    %v2613 = vsub.f32 %v2565, %v2589
    %v2614 = vsub.f32 %v2566, %v2592
    %v2615 = vsub.f32 %v2567, %v2595
    %v2616 = vsub.f32 %v2568, %v2598
    %v2617 = vsub.f32 %v2569, %v2601
    %v2618 = vsub.f32 %v2570, %v2604
    %v2619 = vsub.f32 %v2571, %v2607
    %v2620 = vmul.f32 %v2608, 1.442695
    %v2621 = vpow.pop %v2620
    %v2622 = vmul.f32 %v2609, 1.442695
    %v2623 = vpow.pop %v2622
    %v2624 = vmul.f32 %v2610, 1.442695
    %v2625 = vpow.pop %v2624
    %v2626 = vmul.f32 %v2611, 1.442695
    %v2627 = vpow.pop %v2626
    %v2628 = vmul.f32 %v2612, 1.442695
    %v2629 = vpow.pop %v2628
    %v2630 = vmul.f32 %v2613, 1.442695
    %v2631 = vpow.pop %v2630
    %v2632 = vmul.f32 %v2614, 1.442695
    %v2633 = vpow.pop %v2632
    %v2634 = vmul.f32 %v2615, 1.442695
    %v2635 = vpow.pop %v2634
    %v2636 = vmul.f32 %v2616, 1.442695
    %v2637 = vpow.pop %v2636
    %v2638 = vmul.f32 %v2617, 1.442695
    %v2639 = vpow.pop %v2638
    %v2640 = vmul.f32 %v2618, 1.442695
    %v2641 = vpow.pop %v2640
    %v2642 = vmul.f32 %v2619, 1.442695
    %v2643 = vpow.pop %v2642
    %v2644 = vsel %vm1026, %v2621, 0.0
    %2645 = vadd.xlane.f32.xlu0 %v2644
    %v2646 = vpop.xlane.xlu0 %2645
    %v2647 = vsel %vm1026, %v2623, 0.0
    %2648 = vadd.xlane.f32.xlu0 %v2647
    %v2649 = vpop.xlane.xlu0 %2648
    %v2650 = vsel %vm1026, %v2625, 0.0
    %2651 = vadd.xlane.f32.xlu0 %v2650
    %v2652 = vpop.xlane.xlu0 %2651
    %v2653 = vsel %vm1026, %v2627, 0.0
    %2654 = vadd.xlane.f32.xlu0 %v2653
    %v2655 = vpop.xlane.xlu0 %2654
    %v2656 = vsel %vm1026, %v2629, 0.0
    %2657 = vadd.xlane.f32.xlu0 %v2656
    %v2658 = vpop.xlane.xlu0 %2657
    %v2659 = vsel %vm1026, %v2631, 0.0
    %2660 = vadd.xlane.f32.xlu0 %v2659
    %v2661 = vpop.xlane.xlu0 %2660
    %v2662 = vsel %vm1026, %v2633, 0.0
    %2663 = vadd.xlane.f32.xlu0 %v2662
    %v2664 = vpop.xlane.xlu0 %2663
    %v2665 = vsel %vm1026, %v2635, 0.0
    %2666 = vadd.xlane.f32.xlu0 %v2665
    %v2667 = vpop.xlane.xlu0 %2666
    %v2668 = vsel %vm1026, %v2637, 0.0
    %2669 = vadd.xlane.f32.xlu0 %v2668
    %v2670 = vpop.xlane.xlu0 %2669
    %v2671 = vsel %vm1026, %v2639, 0.0
    %2672 = vadd.xlane.f32.xlu0 %v2671
    %v2673 = vpop.xlane.xlu0 %2672
    %v2674 = vsel %vm1026, %v2641, 0.0
    %2675 = vadd.xlane.f32.xlu0 %v2674
    %v2676 = vpop.xlane.xlu0 %2675
    %v2677 = vsel %vm1026, %v2643, 0.0
    %2678 = vadd.xlane.f32.xlu0 %v2677
    %v2679 = vpop.xlane.xlu0 %2678
    %v2680 = vrcp.pop %v2646
    %v2681 = vrcp.pop %v2649
    %v2682 = vrcp.pop %v2652
    %v2683 = vrcp.pop %v2655
    %v2684 = vrcp.pop %v2658
    %v2685 = vrcp.pop %v2661
    %v2686 = vrcp.pop %v2664
    %v2687 = vrcp.pop %v2667
    %v2688 = vrcp.pop %v2670
    %v2689 = vrcp.pop %v2673
    %v2690 = vrcp.pop %v2676
    %v2691 = vrcp.pop %v2679
    %v2692 = vmul.f32 %v2621, %v2680
    %v2693 = vmul.f32 %v2623, %v2681
    %v2694 = vmul.f32 %v2625, %v2682
    %v2695 = vmul.f32 %v2627, %v2683
    %v2696 = vmul.f32 %v2629, %v2684
    %v2697 = vmul.f32 %v2631, %v2685
    %v2698 = vmul.f32 %v2633, %v2686
    %v2699 = vmul.f32 %v2635, %v2687
    %v2700 = vmul.f32 %v2637, %v2688
    %v2701 = vmul.f32 %v2639, %v2689
    %v2702 = vmul.f32 %v2641, %v2690
    %v2703 = vmul.f32 %v2643, %v2691
    %v2704 = vpack.c.bf16 %v2693, %v2692
    %v2705 = vpack.c.bf16 %v2695, %v2694
    %v2706 = vpack.c.bf16 %v2697, %v2696
    %v2707 = vpack.c.bf16 %v2699, %v2698
    %v2708 = vpack.c.bf16 %v2701, %v2700
    %v2709 = vpack.c.bf16 %v2703, %v2702
    %v2711 = vsel %vm1026, %v2704, 0
    %v2714 = vsel %vm1214, %v2082, 0
    %2716 = vmatprep.subr.bf16.mxu0 0
    %2717 = vmatpush1.bf16.msra.mxu0 %v2081
    %2718 = vmatprep.subr.bf16.mxu0 0
    %2719 = vmatpush1.bf16.msra.mxu0 %v2714
    %2720 = vmatprep.subr.bf16.mxu0 0
    %2721 = vmatpush1.bf16.msra.mxu0 0
    %2722 = vmatprep.subr.bf16.mxu0 0
    %2723 = vmatpush1.bf16.msra.mxu0 0
    %2724 = vmatprep.subr.bf16.mxu0 0
    %2725 = vmatpush1.bf16.msra.mxu0 0
    %2726 = vmatprep.subr.bf16.mxu0 0
    %2727 = vmatpush1.bf16.msra.mxu0 0
    %2728 = vmatprep.subr.bf16.mxu0 0
    %2729 = vmatpush1.bf16.msra.mxu0 0
    %2730 = vmatprep.subr.bf16.mxu0 0
    %2731 = vmatpush1.bf16.msra.mxu0 0
    %2732 = vmatprep.subr.bf16.mxu0 0
    %2733 = vmatpush1.bf16.msra.mxu0 0
    %2734 = vmatprep.subr.bf16.mxu0 0
    %2735 = vmatpush1.bf16.msra.mxu0 0
    %2736 = vmatprep.subr.bf16.mxu0 0
    %2737 = vmatpush1.bf16.msra.mxu0 0
    %2738 = vmatprep.subr.bf16.mxu0 0
    %2739 = vmatpush1.bf16.msra.mxu0 0
    %2740 = vmatprep.subr.bf16.mxu0 0
    %2741 = vmatpush1.bf16.msra.mxu0 0
    %2742 = vmatprep.subr.bf16.mxu0 0
    %2743 = vmatpush1.bf16.msra.mxu0 0
    %2744 = vmatprep.subr.bf16.mxu0 0
    %2745 = vmatpush1.bf16.msra.mxu0 0
    %2746 = vmatprep.subr.bf16.mxu0 0
    %2747 = vmatpush1.bf16.msra.mxu0 0
    %2748 = vmatprep.mubr.bf16.mxu0 0
    %2749 = vmatmul.mubr.bf16.gmra.mrb[0].mxu0 %v2711
    %v2750 = vpop.f32.mrb[0].mxu0
    %v2751 = vadd.f32 0.0, %v2750
    %v2752 = vpop.f32.mrb[0].mxu0
    %v2753 = vpop.f32.mrb[0].mxu0
    %v2754 = vadd.f32 0.0, %v2753
    %v2755 = vpop.f32.mrb[0].mxu0
    %2756 = vdwg.mxu0
    %2757 = vst.msk [vmem:[#allocation2] sm:$0xff] %vm564, %v2751
    %vm2758 = vcmask 125952
    %2759 = vst.msk [vmem:[#allocation2 + $0x8] sm:$0xf] %vm2758, %v2754
    %vm2762 = vcmask 1041408
    %v2763 = vrot.slane %v2704, 6
    %v2764 = vrot.slane %v2705, 6
    %v2765 = vsel %vm2762, %v2763, %v2764
    %2768 = vrot.lane.b32.xlu0 %v2081, 112
    %v2769 = vpop.permute.xlu0 %2768
    %2770 = vrot.lane.b32.xlu0 %v2082, 112
    %v2771 = vpop.permute.xlu0 %2770
    %v2774 = vsel %vm1026, %v2765, 0
    %v2777 = vsel %vm1214, %v2771, 0
    %2779 = vmatprep.subr.bf16.mxu0 0
    %2780 = vmatpush1.bf16.msra.mxu0 %v2769
    %2781 = vmatprep.subr.bf16.mxu0 0
    %2782 = vmatpush1.bf16.msra.mxu0 %v2777
    %2783 = vmatprep.subr.bf16.mxu0 0
    %2784 = vmatpush1.bf16.msra.mxu0 0
    %2785 = vmatprep.subr.bf16.mxu0 0
    %2786 = vmatpush1.bf16.msra.mxu0 0
    %2787 = vmatprep.subr.bf16.mxu0 0
    %2788 = vmatpush1.bf16.msra.mxu0 0
    %2789 = vmatprep.subr.bf16.mxu0 0
    %2790 = vmatpush1.bf16.msra.mxu0 0
    %2791 = vmatprep.subr.bf16.mxu0 0
    %2792 = vmatpush1.bf16.msra.mxu0 0
    %2793 = vmatprep.subr.bf16.mxu0 0
    %2794 = vmatpush1.bf16.msra.mxu0 0
    %2795 = vmatprep.subr.bf16.mxu0 0
    %2796 = vmatpush1.bf16.msra.mxu0 0
    %2797 = vmatprep.subr.bf16.mxu0 0
    %2798 = vmatpush1.bf16.msra.mxu0 0
    %2799 = vmatprep.subr.bf16.mxu0 0
    %2800 = vmatpush1.bf16.msra.mxu0 0
    %2801 = vmatprep.subr.bf16.mxu0 0
    %2802 = vmatpush1.bf16.msra.mxu0 0
    %2803 = vmatprep.subr.bf16.mxu0 0
    %2804 = vmatpush1.bf16.msra.mxu0 0
    %2805 = vmatprep.subr.bf16.mxu0 0
    %2806 = vmatpush1.bf16.msra.mxu0 0
    %2807 = vmatprep.subr.bf16.mxu0 0
    %2808 = vmatpush1.bf16.msra.mxu0 0
    %2809 = vmatprep.subr.bf16.mxu0 0
    %2810 = vmatpush1.bf16.msra.mxu0 0
    %2811 = vmatprep.mubr.bf16.mxu0 0
    %2812 = vmatmul.mubr.bf16.gmra.mrb[0].mxu0 %v2774
    %v2813 = vpop.f32.mrb[0].mxu0
    %v2814 = vadd.f32 0.0, %v2813
    %v2815 = vpop.f32.mrb[0].mxu0
    %v2816 = vpop.f32.mrb[0].mxu0
    %v2817 = vadd.f32 0.0, %v2816
    %v2818 = vpop.f32.mrb[0].mxu0
    %2819 = vdwg.mxu0
    %2822 = vrot.lane.b32.xlu0 %v2814, 16
    %v2823 = vpop.permute.xlu0 %2822
    %2824 = vrot.lane.b32.xlu0 %v2817, 16
    %v2825 = vpop.permute.xlu0 %2824
    %2828 = vst.msk [vmem:[#allocation2] sm:$0xff] %vm1323, %v2823
    %vm2829 = vcmask 257152
    %2830 = vst.msk [vmem:[#allocation2 + $0x8] sm:$0xf] %vm2829, %v2825
    %vm2832 = vcmask 1043456
    %v2833 = vrot.slane %v2705, 4
    %v2834 = vrot.slane %v2706, 4
    %v2835 = vsel %vm2832, %v2833, %v2834
    %2836 = vrot.lane.b32.xlu0 %v2081, 96
    %v2837 = vpop.permute.xlu0 %2836
    %2838 = vrot.lane.b32.xlu0 %v2082, 96
    %v2839 = vpop.permute.xlu0 %2838
    %v2842 = vsel %vm1026, %v2835, 0
    %v2845 = vsel %vm1214, %v2839, 0
    %2847 = vmatprep.subr.bf16.mxu0 0
    %2848 = vmatpush1.bf16.msra.mxu0 %v2837
    %2849 = vmatprep.subr.bf16.mxu0 0
    %2850 = vmatpush1.bf16.msra.mxu0 %v2845
    %2851 = vmatprep.subr.bf16.mxu0 0
    %2852 = vmatpush1.bf16.msra.mxu0 0
    %2853 = vmatprep.subr.bf16.mxu0 0
    %2854 = vmatpush1.bf16.msra.mxu0 0
    %2855 = vmatprep.subr.bf16.mxu0 0
    %2856 = vmatpush1.bf16.msra.mxu0 0
    %2857 = vmatprep.subr.bf16.mxu0 0
    %2858 = vmatpush1.bf16.msra.mxu0 0
    %2859 = vmatprep.subr.bf16.mxu0 0
    %2860 = vmatpush1.bf16.msra.mxu0 0
    %2861 = vmatprep.subr.bf16.mxu0 0
    %2862 = vmatpush1.bf16.msra.mxu0 0
    %2863 = vmatprep.subr.bf16.mxu0 0
    %2864 = vmatpush1.bf16.msra.mxu0 0
    %2865 = vmatprep.subr.bf16.mxu0 0
    %2866 = vmatpush1.bf16.msra.mxu0 0
    %2867 = vmatprep.subr.bf16.mxu0 0
    %2868 = vmatpush1.bf16.msra.mxu0 0
    %2869 = vmatprep.subr.bf16.mxu0 0
    %2870 = vmatpush1.bf16.msra.mxu0 0
    %2871 = vmatprep.subr.bf16.mxu0 0
    %2872 = vmatpush1.bf16.msra.mxu0 0
    %2873 = vmatprep.subr.bf16.mxu0 0
    %2874 = vmatpush1.bf16.msra.mxu0 0
    %2875 = vmatprep.subr.bf16.mxu0 0
    %2876 = vmatpush1.bf16.msra.mxu0 0
    %2877 = vmatprep.subr.bf16.mxu0 0
    %2878 = vmatpush1.bf16.msra.mxu0 0
    %2879 = vmatprep.mubr.bf16.mxu0 0
    %2880 = vmatmul.mubr.bf16.gmra.mrb[0].mxu0 %v2842
    %v2881 = vpop.f32.mrb[0].mxu0
    %v2882 = vadd.f32 0.0, %v2881
    %v2883 = vpop.f32.mrb[0].mxu0
    %v2884 = vpop.f32.mrb[0].mxu0
    %v2885 = vadd.f32 0.0, %v2884
    %v2886 = vpop.f32.mrb[0].mxu0
    %2887 = vdwg.mxu0
    %2890 = vrot.lane.b32.xlu0 %v2882, 32
    %v2891 = vpop.permute.xlu0 %2890
    %2892 = vrot.lane.b32.xlu0 %v2885, 32
    %v2893 = vpop.permute.xlu0 %2892
    %2896 = vst.msk [vmem:[#allocation2] sm:$0xff] %vm1386, %v2891
    %vm2897 = vcmask 388352
    %2898 = vst.msk [vmem:[#allocation2 + $0x8] sm:$0xf] %vm2897, %v2893
    %v2899 = vrot.slane %v2706, 2
    %2900 = vrot.lane.b32.xlu0 %v2081, 80
    %v2901 = vpop.permute.xlu0 %2900
    %2902 = vrot.lane.b32.xlu0 %v2082, 80
    %v2903 = vpop.permute.xlu0 %2902
    %v2906 = vsel %vm1026, %v2899, 0
    %v2909 = vsel %vm1214, %v2903, 0
    %2911 = vmatprep.subr.bf16.mxu0 0
    %2912 = vmatpush1.bf16.msra.mxu0 %v2901
    %2913 = vmatprep.subr.bf16.mxu0 0
    %2914 = vmatpush1.bf16.msra.mxu0 %v2909
    %2915 = vmatprep.subr.bf16.mxu0 0
    %2916 = vmatpush1.bf16.msra.mxu0 0
    %2917 = vmatprep.subr.bf16.mxu0 0
    %2918 = vmatpush1.bf16.msra.mxu0 0
    %2919 = vmatprep.subr.bf16.mxu0 0
    %2920 = vmatpush1.bf16.msra.mxu0 0
    %2921 = vmatprep.subr.bf16.mxu0 0
    %2922 = vmatpush1.bf16.msra.mxu0 0
    %2923 = vmatprep.subr.bf16.mxu0 0
    %2924 = vmatpush1.bf16.msra.mxu0 0
    %2925 = vmatprep.subr.bf16.mxu0 0
    %2926 = vmatpush1.bf16.msra.mxu0 0
    %2927 = vmatprep.subr.bf16.mxu0 0
    %2928 = vmatpush1.bf16.msra.mxu0 0
    %2929 = vmatprep.subr.bf16.mxu0 0
    %2930 = vmatpush1.bf16.msra.mxu0 0
    %2931 = vmatprep.subr.bf16.mxu0 0
    %2932 = vmatpush1.bf16.msra.mxu0 0
    %2933 = vmatprep.subr.bf16.mxu0 0
    %2934 = vmatpush1.bf16.msra.mxu0 0
    %2935 = vmatprep.subr.bf16.mxu0 0
    %2936 = vmatpush1.bf16.msra.mxu0 0
    %2937 = vmatprep.subr.bf16.mxu0 0
    %2938 = vmatpush1.bf16.msra.mxu0 0
    %2939 = vmatprep.subr.bf16.mxu0 0
    %2940 = vmatpush1.bf16.msra.mxu0 0
    %2941 = vmatprep.subr.bf16.mxu0 0
    %2942 = vmatpush1.bf16.msra.mxu0 0
    %2943 = vmatprep.mubr.bf16.mxu0 0
    %2944 = vmatmul.mubr.bf16.gmra.mrb[0].mxu0 %v2906
    %v2945 = vpop.f32.mrb[0].mxu0
    %v2946 = vadd.f32 0.0, %v2945
    %v2947 = vpop.f32.mrb[0].mxu0
    %v2948 = vpop.f32.mrb[0].mxu0
    %v2949 = vadd.f32 0.0, %v2948
    %v2950 = vpop.f32.mrb[0].mxu0
    %2951 = vdwg.mxu0
    %2954 = vrot.lane.b32.xlu0 %v2946, 48
    %v2955 = vpop.permute.xlu0 %2954
    %2956 = vrot.lane.b32.xlu0 %v2949, 48
    %v2957 = vpop.permute.xlu0 %2956
    %2960 = vst.msk [vmem:[#allocation2] sm:$0xff] %vm1449, %v2955
    %vm2961 = vcmask 519552
    %2962 = vst.msk [vmem:[#allocation2 + $0x8] sm:$0xf] %vm2961, %v2957
    %2963 = vrot.lane.b32.xlu0 %v2081, 64
    %v2964 = vpop.permute.xlu0 %2963
    %2965 = vrot.lane.b32.xlu0 %v2082, 64
    %v2966 = vpop.permute.xlu0 %2965
    %v2969 = vsel %vm1026, %v2707, 0
    %v2972 = vsel %vm1214, %v2966, 0
    %2974 = vmatprep.subr.bf16.mxu0 0
    %2975 = vmatpush1.bf16.msra.mxu0 %v2964
    %2976 = vmatprep.subr.bf16.mxu0 0
    %2977 = vmatpush1.bf16.msra.mxu0 %v2972
    %2978 = vmatprep.subr.bf16.mxu0 0
    %2979 = vmatpush1.bf16.msra.mxu0 0
    %2980 = vmatprep.subr.bf16.mxu0 0
    %2981 = vmatpush1.bf16.msra.mxu0 0
    %2982 = vmatprep.subr.bf16.mxu0 0
    %2983 = vmatpush1.bf16.msra.mxu0 0
    %2984 = vmatprep.subr.bf16.mxu0 0
    %2985 = vmatpush1.bf16.msra.mxu0 0
    %2986 = vmatprep.subr.bf16.mxu0 0
    %2987 = vmatpush1.bf16.msra.mxu0 0
    %2988 = vmatprep.subr.bf16.mxu0 0
    %2989 = vmatpush1.bf16.msra.mxu0 0
    %2990 = vmatprep.subr.bf16.mxu0 0
    %2991 = vmatpush1.bf16.msra.mxu0 0
    %2992 = vmatprep.subr.bf16.mxu0 0
    %2993 = vmatpush1.bf16.msra.mxu0 0
    %2994 = vmatprep.subr.bf16.mxu0 0
    %2995 = vmatpush1.bf16.msra.mxu0 0
    %2996 = vmatprep.subr.bf16.mxu0 0
    %2997 = vmatpush1.bf16.msra.mxu0 0
    %2998 = vmatprep.subr.bf16.mxu0 0
    %2999 = vmatpush1.bf16.msra.mxu0 0
    %3000 = vmatprep.subr.bf16.mxu0 0
    %3001 = vmatpush1.bf16.msra.mxu0 0
    %3002 = vmatprep.subr.bf16.mxu0 0
    %3003 = vmatpush1.bf16.msra.mxu0 0
    %3004 = vmatprep.subr.bf16.mxu0 0
    %3005 = vmatpush1.bf16.msra.mxu0 0
    %3006 = vmatprep.mubr.bf16.mxu0 0
    %3007 = vmatmul.mubr.bf16.gmra.mrb[0].mxu0 %v2969
    %v3008 = vpop.f32.mrb[0].mxu0
    %v3009 = vadd.f32 0.0, %v3008
    %v3010 = vpop.f32.mrb[0].mxu0
    %v3011 = vpop.f32.mrb[0].mxu0
    %v3012 = vadd.f32 0.0, %v3011
    %v3013 = vpop.f32.mrb[0].mxu0
    %3014 = vdwg.mxu0
    %3017 = vrot.lane.b32.xlu0 %v3009, 64
    %v3018 = vpop.permute.xlu0 %3017
    %3019 = vrot.lane.b32.xlu0 %v3012, 64
    %v3020 = vpop.permute.xlu0 %3019
    %3023 = vst.msk [vmem:[#allocation2] sm:$0xff] %vm1512, %v3018
    %vm3024 = vcmask 650752
    %3025 = vst.msk [vmem:[#allocation2 + $0x8] sm:$0xf] %vm3024, %v3020
    %v3028 = vrot.slane %v2707, 6
    %v3029 = vrot.slane %v2708, 6
    %v3030 = vsel %vm2762, %v3028, %v3029
    %3031 = vrot.lane.b32.xlu0 %v2081, 48
    %v3032 = vpop.permute.xlu0 %3031
    %3033 = vrot.lane.b32.xlu0 %v2082, 48
    %v3034 = vpop.permute.xlu0 %3033
    %v3037 = vsel %vm1026, %v3030, 0
    %v3040 = vsel %vm1214, %v3034, 0
    %3042 = vmatprep.subr.bf16.mxu0 0
    %3043 = vmatpush1.bf16.msra.mxu0 %v3032
    %3044 = vmatprep.subr.bf16.mxu0 0
    %3045 = vmatpush1.bf16.msra.mxu0 %v3040
    %3046 = vmatprep.subr.bf16.mxu0 0
    %3047 = vmatpush1.bf16.msra.mxu0 0
    %3048 = vmatprep.subr.bf16.mxu0 0
    %3049 = vmatpush1.bf16.msra.mxu0 0
    %3050 = vmatprep.subr.bf16.mxu0 0
    %3051 = vmatpush1.bf16.msra.mxu0 0
    %3052 = vmatprep.subr.bf16.mxu0 0
    %3053 = vmatpush1.bf16.msra.mxu0 0
    %3054 = vmatprep.subr.bf16.mxu0 0
    %3055 = vmatpush1.bf16.msra.mxu0 0
    %3056 = vmatprep.subr.bf16.mxu0 0
    %3057 = vmatpush1.bf16.msra.mxu0 0
    %3058 = vmatprep.subr.bf16.mxu0 0
    %3059 = vmatpush1.bf16.msra.mxu0 0
    %3060 = vmatprep.subr.bf16.mxu0 0
    %3061 = vmatpush1.bf16.msra.mxu0 0
    %3062 = vmatprep.subr.bf16.mxu0 0
    %3063 = vmatpush1.bf16.msra.mxu0 0
    %3064 = vmatprep.subr.bf16.mxu0 0
    %3065 = vmatpush1.bf16.msra.mxu0 0
    %3066 = vmatprep.subr.bf16.mxu0 0
    %3067 = vmatpush1.bf16.msra.mxu0 0
    %3068 = vmatprep.subr.bf16.mxu0 0
    %3069 = vmatpush1.bf16.msra.mxu0 0
    %3070 = vmatprep.subr.bf16.mxu0 0
    %3071 = vmatpush1.bf16.msra.mxu0 0
    %3072 = vmatprep.subr.bf16.mxu0 0
    %3073 = vmatpush1.bf16.msra.mxu0 0
    %3074 = vmatprep.mubr.bf16.mxu0 0
    %3075 = vmatmul.mubr.bf16.gmra.mrb[0].mxu0 %v3037
    %v3076 = vpop.f32.mrb[0].mxu0
    %v3077 = vadd.f32 0.0, %v3076
    %v3078 = vpop.f32.mrb[0].mxu0
    %v3079 = vpop.f32.mrb[0].mxu0
    %v3080 = vadd.f32 0.0, %v3079
    %v3081 = vpop.f32.mrb[0].mxu0
    %3082 = vdwg.mxu0
    %3085 = vrot.lane.b32.xlu0 %v3077, 80
    %v3086 = vpop.permute.xlu0 %3085
    %3087 = vrot.lane.b32.xlu0 %v3080, 80
    %v3088 = vpop.permute.xlu0 %3087
    %3091 = vst.msk [vmem:[#allocation2] sm:$0xff] %vm1575, %v3086
    %vm3092 = vcmask 781952
    %3093 = vst.msk [vmem:[#allocation2 + $0x8] sm:$0xf] %vm3092, %v3088
    %v3095 = vrot.slane %v2708, 4
    %v3096 = vrot.slane %v2709, 4
    %v3097 = vsel %vm2832, %v3095, %v3096
    %3098 = vrot.lane.b32.xlu0 %v2081, 32
    %v3099 = vpop.permute.xlu0 %3098
    %3100 = vrot.lane.b32.xlu0 %v2082, 32
    %v3101 = vpop.permute.xlu0 %3100
    %v3104 = vsel %vm1026, %v3097, 0
    %v3107 = vsel %vm1214, %v3101, 0
    %3109 = vmatprep.subr.bf16.mxu0 0
    %3110 = vmatpush1.bf16.msra.mxu0 %v3099
    %3111 = vmatprep.subr.bf16.mxu0 0
    %3112 = vmatpush1.bf16.msra.mxu0 %v3107
    %3113 = vmatprep.subr.bf16.mxu0 0
    %3114 = vmatpush1.bf16.msra.mxu0 0
    %3115 = vmatprep.subr.bf16.mxu0 0
    %3116 = vmatpush1.bf16.msra.mxu0 0
    %3117 = vmatprep.subr.bf16.mxu0 0
    %3118 = vmatpush1.bf16.msra.mxu0 0
    %3119 = vmatprep.subr.bf16.mxu0 0
    %3120 = vmatpush1.bf16.msra.mxu0 0
    %3121 = vmatprep.subr.bf16.mxu0 0
    %3122 = vmatpush1.bf16.msra.mxu0 0
    %3123 = vmatprep.subr.bf16.mxu0 0
    %3124 = vmatpush1.bf16.msra.mxu0 0
    %3125 = vmatprep.subr.bf16.mxu0 0
    %3126 = vmatpush1.bf16.msra.mxu0 0
    %3127 = vmatprep.subr.bf16.mxu0 0
    %3128 = vmatpush1.bf16.msra.mxu0 0
    %3129 = vmatprep.subr.bf16.mxu0 0
    %3130 = vmatpush1.bf16.msra.mxu0 0
    %3131 = vmatprep.subr.bf16.mxu0 0
    %3132 = vmatpush1.bf16.msra.mxu0 0
    %3133 = vmatprep.subr.bf16.mxu0 0
    %3134 = vmatpush1.bf16.msra.mxu0 0
    %3135 = vmatprep.subr.bf16.mxu0 0
    %3136 = vmatpush1.bf16.msra.mxu0 0
    %3137 = vmatprep.subr.bf16.mxu0 0
    %3138 = vmatpush1.bf16.msra.mxu0 0
    %3139 = vmatprep.subr.bf16.mxu0 0
    %3140 = vmatpush1.bf16.msra.mxu0 0
    %3141 = vmatprep.mubr.bf16.mxu0 0
    %3142 = vmatmul.mubr.bf16.gmra.mrb[0].mxu0 %v3104
    %v3143 = vpop.f32.mrb[0].mxu0
    %v3144 = vadd.f32 0.0, %v3143
    %v3145 = vpop.f32.mrb[0].mxu0
    %v3146 = vpop.f32.mrb[0].mxu0
    %v3147 = vadd.f32 0.0, %v3146
    %v3148 = vpop.f32.mrb[0].mxu0
    %3149 = vdwg.mxu0
    %3152 = vrot.lane.b32.xlu0 %v3144, 96
    %v3153 = vpop.permute.xlu0 %3152
    %3154 = vrot.lane.b32.xlu0 %v3147, 96
    %v3155 = vpop.permute.xlu0 %3154
    %3158 = vst.msk [vmem:[#allocation2] sm:$0xff] %vm1638, %v3153
    %vm3159 = vcmask 913152
    %3160 = vst.msk [vmem:[#allocation2 + $0x8] sm:$0xf] %vm3159, %v3155
    %v3161 = vrot.slane %v2709, 2
    %3162 = vrot.lane.b32.xlu0 %v2081, 16
    %v3163 = vpop.permute.xlu0 %3162
    %3164 = vrot.lane.b32.xlu0 %v2082, 16
    %v3165 = vpop.permute.xlu0 %3164
    %v3168 = vsel %vm1026, %v3161, 0
    %v3171 = vsel %vm1214, %v3165, 0
    %3173 = vmatprep.subr.bf16.mxu0 0
    %3174 = vmatpush1.bf16.msra.mxu0 %v3163
    %3175 = vmatprep.subr.bf16.mxu0 0
    %3176 = vmatpush1.bf16.msra.mxu0 %v3171
    %3177 = vmatprep.subr.bf16.mxu0 0
    %3178 = vmatpush1.bf16.msra.mxu0 0
    %3179 = vmatprep.subr.bf16.mxu0 0
    %3180 = vmatpush1.bf16.msra.mxu0 0
    %3181 = vmatprep.subr.bf16.mxu0 0
    %3182 = vmatpush1.bf16.msra.mxu0 0
    %3183 = vmatprep.subr.bf16.mxu0 0
    %3184 = vmatpush1.bf16.msra.mxu0 0
    %3185 = vmatprep.subr.bf16.mxu0 0
    %3186 = vmatpush1.bf16.msra.mxu0 0
    %3187 = vmatprep.subr.bf16.mxu0 0
    %3188 = vmatpush1.bf16.msra.mxu0 0
    %3189 = vmatprep.subr.bf16.mxu0 0
    %3190 = vmatpush1.bf16.msra.mxu0 0
    %3191 = vmatprep.subr.bf16.mxu0 0
    %3192 = vmatpush1.bf16.msra.mxu0 0
    %3193 = vmatprep.subr.bf16.mxu0 0
    %3194 = vmatpush1.bf16.msra.mxu0 0
    %3195 = vmatprep.subr.bf16.mxu0 0
    %3196 = vmatpush1.bf16.msra.mxu0 0
    %3197 = vmatprep.subr.bf16.mxu0 0
    %3198 = vmatpush1.bf16.msra.mxu0 0
    %3199 = vmatprep.subr.bf16.mxu0 0
    %3200 = vmatpush1.bf16.msra.mxu0 0
    %3201 = vmatprep.subr.bf16.mxu0 0
    %3202 = vmatpush1.bf16.msra.mxu0 0
    %3203 = vmatprep.subr.bf16.mxu0 0
    %3204 = vmatpush1.bf16.msra.mxu0 0
    %3205 = vmatprep.mubr.bf16.mxu0 0
    %3206 = vmatmul.mubr.bf16.gmra.mrb[0].mxu0 %v3168
    %v3207 = vpop.f32.mrb[0].mxu0
    %v3208 = vadd.f32 0.0, %v3207
    %v3209 = vpop.f32.mrb[0].mxu0
    %v3210 = vpop.f32.mrb[0].mxu0
    %v3211 = vadd.f32 0.0, %v3210
    %v3212 = vpop.f32.mrb[0].mxu0
    %3213 = vdwg.mxu0
    %3216 = vrot.lane.b32.xlu0 %v3208, 112
    %v3217 = vpop.permute.xlu0 %3216
    %3218 = vrot.lane.b32.xlu0 %v3211, 112
    %v3219 = vpop.permute.xlu0 %3218
    %3222 = vst.msk [vmem:[#allocation2] sm:$0xff] %vm1701, %v3217
    %vm3223 = vcmask 1044352
    %3224 = vst.msk [vmem:[#allocation2 + $0x8] sm:$0xf] %vm3223, %v3219
    %v3225 = vld [vmem:[#allocation2] sm:$0xff]
    %v3226 = vld [vmem:[#allocation2 + $0x8] sm:$0xf]
    %s3227 = scalar_lea.vmem %s13, 1
    %v3228 = vld [vmem:[%s3227] sm:$0x1]
    %v3230 = vlaneseq
    %v3231 = vshrl.u32 %v3230, 7
    %v3232 = vsub.s32 0, %v3231
    %v3233 = vrot.slane %v3228, %v3232
    %v3235 = vadd.f32 %v3225, %v3233
    %v3236 = vadd.f32 %v3226, %v3233
    %v3237 = vadd.f32 %v195, %v3235
    %v3238 = vadd.f32 %v196, %v3236
    %v3239 = vpack.c.bf16 %v3238, %v3237
    %v3240 = vld [vmem:[%s6] sm:$0xf]
    %v3241 = vld [vmem:[%s6 + $0x4] sm:$0xf]
    %v3242 = vld [vmem:[%s6 + $0x8] sm:$0xf]
    %v3243 = vld [vmem:[%s6 + $0xc] sm:$0xf]
    %v3244 = vld [vmem:[%s6 + $0x10] sm:$0xf]
    %v3245 = vld [vmem:[%s6 + $0x14] sm:$0xf]
    %v3246 = vld [vmem:[%s6 + $0x18] sm:$0xf]
    %v3247 = vld [vmem:[%s6 + $0x1c] sm:$0xf]
    %v3248 = vld [vmem:[%s6 + $0x20] sm:$0xf]
    %v3249 = vld [vmem:[%s6 + $0x24] sm:$0xf]
    %v3250 = vld [vmem:[%s6 + $0x28] sm:$0xf]
    %v3251 = vld [vmem:[%s6 + $0x2c] sm:$0xf]
    %v3252 = vld [vmem:[%s6 + $0x30] sm:$0xf]
    %v3253 = vld [vmem:[%s6 + $0x34] sm:$0xf]
    %v3254 = vld [vmem:[%s6 + $0x38] sm:$0xf]
    %v3255 = vld [vmem:[%s6 + $0x3c] sm:$0xf]
    %v3256 = vld [vmem:[%s7] sm:$0x1]
    %v3258 = vlaneseq
    %v3259 = vshrl.u32 %v3258, 7
    %v3260 = vsub.s32 0, %v3259
    %v3261 = vrot.slane %v3256, %v3260
    %v3279 = vunpack.c.l.b16 %v3240
    %v3280 = vunpack.c.l.b16 %v3241
    %v3281 = vunpack.c.l.b16 %v3242
    %v3282 = vunpack.c.l.b16 %v3243
    %v3283 = vunpack.c.l.b16 %v3244
    %v3284 = vunpack.c.l.b16 %v3245
    %v3285 = vunpack.c.l.b16 %v3246
    %v3286 = vunpack.c.l.b16 %v3247
    %v3287 = vunpack.c.l.b16 %v3248
    %v3288 = vunpack.c.l.b16 %v3249
    %v3289 = vunpack.c.l.b16 %v3250
    %v3290 = vunpack.c.l.b16 %v3251
    %v3291 = vunpack.c.l.b16 %v3252
    %v3292 = vunpack.c.l.b16 %v3253
    %v3293 = vunpack.c.l.b16 %v3254
    %v3294 = vunpack.c.l.b16 %v3255
    %v3295 = vpack.c.b16 %v3280, %v3279
    %v3296 = vpack.c.b16 %v3282, %v3281
    %v3297 = vpack.c.b16 %v3284, %v3283
    %v3298 = vpack.c.b16 %v3286, %v3285
    %v3299 = vpack.c.b16 %v3288, %v3287
    %v3300 = vpack.c.b16 %v3290, %v3289
    %v3301 = vpack.c.b16 %v3292, %v3291
    %v3302 = vpack.c.b16 %v3294, %v3293
    %3311 = vmatprep.subr.bf16.mxu0 0
    %3312 = vmatpush1.bf16.msra.mxu0 %v3295
    %3313 = vmatprep.subr.bf16.mxu0 0
    %3314 = vmatpush1.bf16.msra.mxu0 %v3296
    %3315 = vmatprep.subr.bf16.mxu0 0
    %3316 = vmatpush1.bf16.msra.mxu0 %v3297
    %3317 = vmatprep.subr.bf16.mxu0 0
    %3318 = vmatpush1.bf16.msra.mxu0 %v3298
    %3319 = vmatprep.subr.bf16.mxu0 0
    %3320 = vmatpush1.bf16.msra.mxu0 %v3299
    %3321 = vmatprep.subr.bf16.mxu0 0
    %3322 = vmatpush1.bf16.msra.mxu0 %v3300
    %3323 = vmatprep.subr.bf16.mxu0 0
    %3324 = vmatpush1.bf16.msra.mxu0 %v3301
    %3325 = vmatprep.subr.bf16.mxu0 0
    %3326 = vmatpush1.bf16.msra.mxu0 %v3302
    %3327 = vmatprep.subr.bf16.mxu0 0
    %3328 = vmatpush1.bf16.msra.mxu0 0
    %3329 = vmatprep.subr.bf16.mxu0 0
    %3330 = vmatpush1.bf16.msra.mxu0 0
    %3331 = vmatprep.subr.bf16.mxu0 0
    %3332 = vmatpush1.bf16.msra.mxu0 0
    %3333 = vmatprep.subr.bf16.mxu0 0
    %3334 = vmatpush1.bf16.msra.mxu0 0
    %3335 = vmatprep.subr.bf16.mxu0 0
    %3336 = vmatpush1.bf16.msra.mxu0 0
    %3337 = vmatprep.subr.bf16.mxu0 0
    %3338 = vmatpush1.bf16.msra.mxu0 0
    %3339 = vmatprep.subr.bf16.mxu0 0
    %3340 = vmatpush1.bf16.msra.mxu0 0
    %3341 = vmatprep.subr.bf16.mxu0 0
    %3342 = vmatpush1.bf16.msra.mxu0 0
    %3343 = vmatprep.mubr.bf16.mxu0 0
    %3344 = vmatmul.mubr.bf16.gmra.mrb[0].mxu0 %v3239
    %v3345 = vpop.f32.mrb[0].mxu0
    %v3346 = vadd.f32 %v3261, %v3345
    %v3347 = vpop.f32.mrb[0].mxu0
    %v3348 = vpop.f32.mrb[0].mxu0
    %v3349 = vadd.f32 %v3261, %v3348
    %v3350 = vpop.f32.mrb[0].mxu0
    %3351 = vdwg.mxu0
    %v3352 = vmax.f32 %v3346, 0.0
    %v3353 = vmax.f32 %v3349, 0.0
    %v3354 = vld [vmem:[%s3] sm:$0xff]
    %v3355 = vld [vmem:[%s3 + $0x8] sm:$0xff]
    %v3356 = vld [vmem:[%s3 + $0x10] sm:$0xff]
    %v3357 = vld [vmem:[%s3 + $0x18] sm:$0xff]
    %v3358 = vld [vmem:[%s3 + $0x20] sm:$0xff]
    %v3359 = vld [vmem:[%s3 + $0x28] sm:$0xff]
    %v3360 = vld [vmem:[%s3 + $0x30] sm:$0xff]
    %v3361 = vld [vmem:[%s3 + $0x38] sm:$0xff]
    %v3362 = vld [vmem:[%s3 + $0x40] sm:$0xff]
    %v3363 = vld [vmem:[%s3 + $0x48] sm:$0xff]
    %v3364 = vld [vmem:[%s3 + $0x50] sm:$0xff]
    %v3365 = vld [vmem:[%s3 + $0x58] sm:$0xff]
    %v3366 = vld [vmem:[%s3 + $0x60] sm:$0xff]
    %v3367 = vld [vmem:[%s3 + $0x68] sm:$0xff]
    %v3368 = vld [vmem:[%s3 + $0x70] sm:$0xff]
    %v3369 = vld [vmem:[%s3 + $0x78] sm:$0xff]
    %v3370 = vpack.c.bf16 %v1716, %v1715
    %v3371 = vpack.c.bf16 %v3353, %v3352
    %s3372 = scalar_lea.vmem %s8, 128
    %v3373 = vld [vmem:[%s3372] sm:$0xf]
    %v3374 = vld [vmem:[%s3372 + $0x4] sm:$0xf]
    %v3375 = vld [vmem:[%s3372 + $0x8] sm:$0xf]
    %v3376 = vld [vmem:[%s3372 + $0xc] sm:$0xf]
    %v3377 = vld [vmem:[%s3372 + $0x10] sm:$0xf]
    %v3378 = vld [vmem:[%s3372 + $0x14] sm:$0xf]
    %v3379 = vld [vmem:[%s3372 + $0x18] sm:$0xf]
    %v3380 = vld [vmem:[%s3372 + $0x1c] sm:$0xf]
    %v3381 = vld [vmem:[%s3372 + $0x20] sm:$0xf]
    %v3382 = vld [vmem:[%s3372 + $0x24] sm:$0xf]
    %v3383 = vld [vmem:[%s3372 + $0x28] sm:$0xf]
    %v3384 = vld [vmem:[%s3372 + $0x2c] sm:$0xf]
    %v3385 = vld [vmem:[%s3372 + $0x30] sm:$0xf]
    %v3386 = vld [vmem:[%s3372 + $0x34] sm:$0xf]
    %v3387 = vld [vmem:[%s3372 + $0x38] sm:$0xf]
    %v3388 = vld [vmem:[%s3372 + $0x3c] sm:$0xf]
    %s3389 = scalar_lea.vmem %s9, 2
    %v3390 = vld [vmem:[%s3389] sm:$0x1]
    %v3392 = vlaneseq
    %v3393 = vshrl.u32 %v3392, 7
    %v3394 = vsub.s32 0, %v3393
    %v3395 = vrot.slane %v3390, %v3394
    %v3413 = vunpack.c.l.b16 %v3373
    %v3414 = vunpack.c.l.b16 %v3374
    %v3415 = vunpack.c.l.b16 %v3375
    %v3416 = vunpack.c.l.b16 %v3376
    %v3417 = vunpack.c.l.b16 %v3377
    %v3418 = vunpack.c.l.b16 %v3378
    %v3419 = vunpack.c.l.b16 %v3379
    %v3420 = vunpack.c.l.b16 %v3380
    %v3421 = vunpack.c.l.b16 %v3381
    %v3422 = vunpack.c.l.b16 %v3382
    %v3423 = vunpack.c.l.b16 %v3383
    %v3424 = vunpack.c.l.b16 %v3384
    %v3425 = vunpack.c.l.b16 %v3385
    %v3426 = vunpack.c.l.b16 %v3386
    %v3427 = vunpack.c.l.b16 %v3387
    %v3428 = vunpack.c.l.b16 %v3388
    %v3429 = vpack.c.b16 %v3414, %v3413
    %v3430 = vpack.c.b16 %v3416, %v3415
    %v3431 = vpack.c.b16 %v3418, %v3417
    %v3432 = vpack.c.b16 %v3420, %v3419
    %v3433 = vpack.c.b16 %v3422, %v3421
    %v3434 = vpack.c.b16 %v3424, %v3423
    %v3435 = vpack.c.b16 %v3426, %v3425
    %v3436 = vpack.c.b16 %v3428, %v3427
    %3445 = vmatprep.subr.bf16.mxu0 0
    %3446 = vmatpush1.bf16.msra.mxu0 %v3429
    %3447 = vmatprep.subr.bf16.mxu0 0
    %3448 = vmatpush1.bf16.msra.mxu0 %v3430
    %3449 = vmatprep.subr.bf16.mxu0 0
    %3450 = vmatpush1.bf16.msra.mxu0 %v3431
    %3451 = vmatprep.subr.bf16.mxu0 0
    %3452 = vmatpush1.bf16.msra.mxu0 %v3432
    %3453 = vmatprep.subr.bf16.mxu0 0
    %3454 = vmatpush1.bf16.msra.mxu0 %v3433
    %3455 = vmatprep.subr.bf16.mxu0 0
    %3456 = vmatpush1.bf16.msra.mxu0 %v3434
    %3457 = vmatprep.subr.bf16.mxu0 0
    %3458 = vmatpush1.bf16.msra.mxu0 %v3435
    %3459 = vmatprep.subr.bf16.mxu0 0
    %3460 = vmatpush1.bf16.msra.mxu0 %v3436
    %3461 = vmatprep.subr.bf16.mxu0 0
    %3462 = vmatpush1.bf16.msra.mxu0 0
    %3463 = vmatprep.subr.bf16.mxu0 0
    %3464 = vmatpush1.bf16.msra.mxu0 0
    %3465 = vmatprep.subr.bf16.mxu0 0
    %3466 = vmatpush1.bf16.msra.mxu0 0
    %3467 = vmatprep.subr.bf16.mxu0 0
    %3468 = vmatpush1.bf16.msra.mxu0 0
    %3469 = vmatprep.subr.bf16.mxu0 0
    %3470 = vmatpush1.bf16.msra.mxu0 0
    %3471 = vmatprep.subr.bf16.mxu0 0
    %3472 = vmatpush1.bf16.msra.mxu0 0
    %3473 = vmatprep.subr.bf16.mxu0 0
    %3474 = vmatpush1.bf16.msra.mxu0 0
    %3475 = vmatprep.subr.bf16.mxu0 0
    %3476 = vmatpush1.bf16.msra.mxu0 0
    %3477 = vmatprep.mubr.bf16.mxu0 0
    %3478 = vmatmul.mubr.bf16.gmra.mrb[0].mxu0 %v3370
    %v3479 = vpop.f32.mrb[0].mxu0
    %v3480 = vadd.f32 %v3395, %v3479
    %v3481 = vpop.f32.mrb[0].mxu0
    %v3482 = vpop.f32.mrb[0].mxu0
    %v3483 = vadd.f32 %v3395, %v3482
    %v3484 = vpop.f32.mrb[0].mxu0
    %3485 = vdwg.mxu0
    %v3486 = vpack.c.bf16 %v3483, %v3480
    %s3487 = scalar_lea.vmem %s10, 128
    %v3488 = vld [vmem:[%s3487] sm:$0xf]
    %v3489 = vld [vmem:[%s3487 + $0x4] sm:$0xf]
    %v3490 = vld [vmem:[%s3487 + $0x8] sm:$0xf]
    %v3491 = vld [vmem:[%s3487 + $0xc] sm:$0xf]
    %v3492 = vld [vmem:[%s3487 + $0x10] sm:$0xf]
    %v3493 = vld [vmem:[%s3487 + $0x14] sm:$0xf]
    %v3494 = vld [vmem:[%s3487 + $0x18] sm:$0xf]
    %v3495 = vld [vmem:[%s3487 + $0x1c] sm:$0xf]
    %v3496 = vld [vmem:[%s3487 + $0x20] sm:$0xf]
    %v3497 = vld [vmem:[%s3487 + $0x24] sm:$0xf]
    %v3498 = vld [vmem:[%s3487 + $0x28] sm:$0xf]
    %v3499 = vld [vmem:[%s3487 + $0x2c] sm:$0xf]
    %v3500 = vld [vmem:[%s3487 + $0x30] sm:$0xf]
    %v3501 = vld [vmem:[%s3487 + $0x34] sm:$0xf]
    %v3502 = vld [vmem:[%s3487 + $0x38] sm:$0xf]
    %v3503 = vld [vmem:[%s3487 + $0x3c] sm:$0xf]
    %s3504 = scalar_lea.vmem %s11, 2
    %v3505 = vld [vmem:[%s3504] sm:$0x1]
    %v3507 = vlaneseq
    %v3508 = vshrl.u32 %v3507, 7
    %v3509 = vsub.s32 0, %v3508
    %v3510 = vrot.slane %v3505, %v3509
    %v3528 = vunpack.c.l.b16 %v3488
    %v3529 = vunpack.c.l.b16 %v3489
    %v3530 = vunpack.c.l.b16 %v3490
    %v3531 = vunpack.c.l.b16 %v3491
    %v3532 = vunpack.c.l.b16 %v3492
    %v3533 = vunpack.c.l.b16 %v3493
    %v3534 = vunpack.c.l.b16 %v3494
    %v3535 = vunpack.c.l.b16 %v3495
    %v3536 = vunpack.c.l.b16 %v3496
    %v3537 = vunpack.c.l.b16 %v3497
    %v3538 = vunpack.c.l.b16 %v3498
    %v3539 = vunpack.c.l.b16 %v3499
    %v3540 = vunpack.c.l.b16 %v3500
    %v3541 = vunpack.c.l.b16 %v3501
    %v3542 = vunpack.c.l.b16 %v3502
    %v3543 = vunpack.c.l.b16 %v3503
    %v3544 = vpack.c.b16 %v3529, %v3528
    %v3545 = vpack.c.b16 %v3531, %v3530
    %v3546 = vpack.c.b16 %v3533, %v3532
    %v3547 = vpack.c.b16 %v3535, %v3534
    %v3548 = vpack.c.b16 %v3537, %v3536
    %v3549 = vpack.c.b16 %v3539, %v3538
    %v3550 = vpack.c.b16 %v3541, %v3540
    %v3551 = vpack.c.b16 %v3543, %v3542
    %3560 = vmatprep.subr.bf16.mxu0 0
    %3561 = vmatpush1.bf16.msra.mxu0 %v3544
    %3562 = vmatprep.subr.bf16.mxu0 0
    %3563 = vmatpush1.bf16.msra.mxu0 %v3545
    %3564 = vmatprep.subr.bf16.mxu0 0
    %3565 = vmatpush1.bf16.msra.mxu0 %v3546
    %3566 = vmatprep.subr.bf16.mxu0 0
    %3567 = vmatpush1.bf16.msra.mxu0 %v3547
    %3568 = vmatprep.subr.bf16.mxu0 0
    %3569 = vmatpush1.bf16.msra.mxu0 %v3548
    %3570 = vmatprep.subr.bf16.mxu0 0
    %3571 = vmatpush1.bf16.msra.mxu0 %v3549
    %3572 = vmatprep.subr.bf16.mxu0 0
    %3573 = vmatpush1.bf16.msra.mxu0 %v3550
    %3574 = vmatprep.subr.bf16.mxu0 0
    %3575 = vmatpush1.bf16.msra.mxu0 %v3551
    %3576 = vmatprep.subr.bf16.mxu0 0
    %3577 = vmatpush1.bf16.msra.mxu0 0
    %3578 = vmatprep.subr.bf16.mxu0 0
    %3579 = vmatpush1.bf16.msra.mxu0 0
    %3580 = vmatprep.subr.bf16.mxu0 0
    %3581 = vmatpush1.bf16.msra.mxu0 0
    %3582 = vmatprep.subr.bf16.mxu0 0
    %3583 = vmatpush1.bf16.msra.mxu0 0
    %3584 = vmatprep.subr.bf16.mxu0 0
    %3585 = vmatpush1.bf16.msra.mxu0 0
    %3586 = vmatprep.subr.bf16.mxu0 0
    %3587 = vmatpush1.bf16.msra.mxu0 0
    %3588 = vmatprep.subr.bf16.mxu0 0
    %3589 = vmatpush1.bf16.msra.mxu0 0
    %3590 = vmatprep.subr.bf16.mxu0 0
    %3591 = vmatpush1.bf16.msra.mxu0 0
    %3592 = vmatprep.mubr.bf16.mxu0 0
    %3593 = vmatmul.mubr.bf16.gmra.mrb[0].mxu0 %v3371
    %v3594 = vpop.f32.mrb[0].mxu0
    %v3595 = vadd.f32 %v3510, %v3594
    %v3596 = vpop.f32.mrb[0].mxu0
    %v3597 = vpop.f32.mrb[0].mxu0
    %v3598 = vadd.f32 %v3510, %v3597
    %v3599 = vpop.f32.mrb[0].mxu0
    %3600 = vdwg.mxu0
    %v3601 = vpack.c.bf16 %v3598, %v3595
    %s3602 = scalar_lea.vmem %s12, 128
    %v3603 = vld [vmem:[%s3602] sm:$0xf]
    %v3604 = vld [vmem:[%s3602 + $0x4] sm:$0xf]
    %v3605 = vld [vmem:[%s3602 + $0x8] sm:$0xf]
    %v3606 = vld [vmem:[%s3602 + $0xc] sm:$0xf]
    %v3607 = vld [vmem:[%s3602 + $0x10] sm:$0xf]
    %v3608 = vld [vmem:[%s3602 + $0x14] sm:$0xf]
    %v3609 = vld [vmem:[%s3602 + $0x18] sm:$0xf]
    %v3610 = vld [vmem:[%s3602 + $0x1c] sm:$0xf]
    %v3611 = vld [vmem:[%s3602 + $0x20] sm:$0xf]
    %v3612 = vld [vmem:[%s3602 + $0x24] sm:$0xf]
    %v3613 = vld [vmem:[%s3602 + $0x28] sm:$0xf]
    %v3614 = vld [vmem:[%s3602 + $0x2c] sm:$0xf]
    %v3615 = vld [vmem:[%s3602 + $0x30] sm:$0xf]
    %v3616 = vld [vmem:[%s3602 + $0x34] sm:$0xf]
    %v3617 = vld [vmem:[%s3602 + $0x38] sm:$0xf]
    %v3618 = vld [vmem:[%s3602 + $0x3c] sm:$0xf]
    %v3635 = vunpack.c.l.b16 %v3603
    %v3636 = vunpack.c.l.b16 %v3604
    %v3637 = vunpack.c.l.b16 %v3605
    %v3638 = vunpack.c.l.b16 %v3606
    %v3639 = vunpack.c.l.b16 %v3607
    %v3640 = vunpack.c.l.b16 %v3608
    %v3641 = vunpack.c.l.b16 %v3609
    %v3642 = vunpack.c.l.b16 %v3610
    %v3643 = vunpack.c.l.b16 %v3611
    %v3644 = vunpack.c.l.b16 %v3612
    %v3645 = vunpack.c.l.b16 %v3613
    %v3646 = vunpack.c.l.b16 %v3614
    %v3647 = vunpack.c.l.b16 %v3615
    %v3648 = vunpack.c.l.b16 %v3616
    %v3649 = vunpack.c.l.b16 %v3617
    %v3650 = vunpack.c.l.b16 %v3618
    %v3651 = vpack.c.b16 %v3636, %v3635
    %v3652 = vpack.c.b16 %v3638, %v3637
    %v3653 = vpack.c.b16 %v3640, %v3639
    %v3654 = vpack.c.b16 %v3642, %v3641
    %v3655 = vpack.c.b16 %v3644, %v3643
    %v3656 = vpack.c.b16 %v3646, %v3645
    %v3657 = vpack.c.b16 %v3648, %v3647
    %v3658 = vpack.c.b16 %v3650, %v3649
    %3667 = vmatprep.subr.bf16.mxu0 0
    %3668 = vmatpush1.bf16.msra.mxu0 %v3651
    %3669 = vmatprep.subr.bf16.mxu0 0
    %3670 = vmatpush1.bf16.msra.mxu0 %v3652
    %3671 = vmatprep.subr.bf16.mxu0 0
    %3672 = vmatpush1.bf16.msra.mxu0 %v3653
    %3673 = vmatprep.subr.bf16.mxu0 0
    %3674 = vmatpush1.bf16.msra.mxu0 %v3654
    %3675 = vmatprep.subr.bf16.mxu0 0
    %3676 = vmatpush1.bf16.msra.mxu0 %v3655
    %3677 = vmatprep.subr.bf16.mxu0 0
    %3678 = vmatpush1.bf16.msra.mxu0 %v3656
    %3679 = vmatprep.subr.bf16.mxu0 0
    %3680 = vmatpush1.bf16.msra.mxu0 %v3657
    %3681 = vmatprep.subr.bf16.mxu0 0
    %3682 = vmatpush1.bf16.msra.mxu0 %v3658
    %3683 = vmatprep.subr.bf16.mxu0 0
    %3684 = vmatpush1.bf16.msra.mxu0 0
    %3685 = vmatprep.subr.bf16.mxu0 0
    %3686 = vmatpush1.bf16.msra.mxu0 0
    %3687 = vmatprep.subr.bf16.mxu0 0
    %3688 = vmatpush1.bf16.msra.mxu0 0
    %3689 = vmatprep.subr.bf16.mxu0 0
    %3690 = vmatpush1.bf16.msra.mxu0 0
    %3691 = vmatprep.subr.bf16.mxu0 0
    %3692 = vmatpush1.bf16.msra.mxu0 0
    %3693 = vmatprep.subr.bf16.mxu0 0
    %3694 = vmatpush1.bf16.msra.mxu0 0
    %3695 = vmatprep.subr.bf16.mxu0 0
    %3696 = vmatpush1.bf16.msra.mxu0 0
    %3697 = vmatprep.subr.bf16.mxu0 0
    %3698 = vmatpush1.bf16.msra.mxu0 0
    %3699 = vmatprep.mubr.bf16.mxu0 0
    %3700 = vmatmul.mubr.bf16.gmra.mrb[0].mxu0 %v3371
    %v3701 = vpop.f32.mrb[0].mxu0
    %v3702 = vadd.f32 0.0, %v3701
    %v3703 = vpop.f32.mrb[0].mxu0
    %v3704 = vpop.f32.mrb[0].mxu0
    %v3705 = vadd.f32 0.0, %v3704
    %v3706 = vpop.f32.mrb[0].mxu0
    %3707 = vdwg.mxu0
    %v3708 = vpack.c.bf16 %v3705, %v3702
    %v3710 = vsel %vm564, %v3486, 0
    %v3713 = vsel %vm564, %v3601, 0
    %3715 = vmatprep.subr.bf16.mxu0 0
    %3716 = vmatpush1.bf16.xpose.msra.mxu0 %v3713
    %3717 = vmatprep.subr.bf16.mxu0 0
    %3718 = vmatpush1.bf16.xpose.msra.mxu0 0
    %3719 = vmatprep.subr.bf16.mxu0 0
    %3720 = vmatpush1.bf16.xpose.msra.mxu0 0
    %3721 = vmatprep.subr.bf16.mxu0 0
    %3722 = vmatpush1.bf16.xpose.msra.mxu0 0
    %3723 = vmatprep.subr.bf16.mxu0 0
    %3724 = vmatpush1.bf16.xpose.msra.mxu0 0
    %3725 = vmatprep.subr.bf16.mxu0 0
    %3726 = vmatpush1.bf16.xpose.msra.mxu0 0
    %3727 = vmatprep.subr.bf16.mxu0 0
    %3728 = vmatpush1.bf16.xpose.msra.mxu0 0
    %3729 = vmatprep.subr.bf16.mxu0 0
    %3730 = vmatpush1.bf16.xpose.msra.mxu0 0
    %3731 = vmatprep.subr.bf16.mxu0 0
    %3732 = vmatpush1.bf16.xpose.msra.mxu0 0
    %3733 = vmatprep.subr.bf16.mxu0 0
    %3734 = vmatpush1.bf16.xpose.msra.mxu0 0
    %3735 = vmatprep.subr.bf16.mxu0 0
    %3736 = vmatpush1.bf16.xpose.msra.mxu0 0
    %3737 = vmatprep.subr.bf16.mxu0 0
    %3738 = vmatpush1.bf16.xpose.msra.mxu0 0
    %3739 = vmatprep.subr.bf16.mxu0 0
    %3740 = vmatpush1.bf16.xpose.msra.mxu0 0
    %3741 = vmatprep.subr.bf16.mxu0 0
    %3742 = vmatpush1.bf16.xpose.msra.mxu0 0
    %3743 = vmatprep.subr.bf16.mxu0 0
    %3744 = vmatpush1.bf16.xpose.msra.mxu0 0
    %3745 = vmatprep.subr.bf16.mxu0 0
    %3746 = vmatpush1.bf16.xpose.msra.mxu0 0
    %3747 = vmatprep.mubr.bf16.mxu0 0
    %3748 = vmatmul.mubr.bf16.gmra.mrb[0].mxu0 %v3710
    %v3749 = vpop.f32.mrb[0].mxu0
    %v3750 = vadd.f32 0.0, %v3749
    %v3751 = vpop.f32.mrb[0].mxu0
    %v3752 = vpop.f32.mrb[0].mxu0
    %v3753 = vadd.f32 0.0, %v3752
    %v3754 = vpop.f32.mrb[0].mxu0
    %3755 = vdwg.mxu0
    %3757 = vrot.lane.b32.xlu0 %v3486, 112
    %v3758 = vpop.permute.xlu0 %3757
    %3760 = vrot.lane.b32.xlu0 %v3601, 112
    %v3761 = vpop.permute.xlu0 %3760
    %v3763 = vsel %vm564, %v3758, 0
    %v3766 = vsel %vm564, %v3761, 0
    %3768 = vmatprep.subr.bf16.mxu0 0
    %3769 = vmatpush1.bf16.xpose.msra.mxu0 %v3766
    %3770 = vmatprep.subr.bf16.mxu0 0
    %3771 = vmatpush1.bf16.xpose.msra.mxu0 0
    %3772 = vmatprep.subr.bf16.mxu0 0
    %3773 = vmatpush1.bf16.xpose.msra.mxu0 0
    %3774 = vmatprep.subr.bf16.mxu0 0
    %3775 = vmatpush1.bf16.xpose.msra.mxu0 0
    %3776 = vmatprep.subr.bf16.mxu0 0
    %3777 = vmatpush1.bf16.xpose.msra.mxu0 0
    %3778 = vmatprep.subr.bf16.mxu0 0
    %3779 = vmatpush1.bf16.xpose.msra.mxu0 0
    %3780 = vmatprep.subr.bf16.mxu0 0
    %3781 = vmatpush1.bf16.xpose.msra.mxu0 0
    %3782 = vmatprep.subr.bf16.mxu0 0
    %3783 = vmatpush1.bf16.xpose.msra.mxu0 0
    %3784 = vmatprep.subr.bf16.mxu0 0
    %3785 = vmatpush1.bf16.xpose.msra.mxu0 0
    %3786 = vmatprep.subr.bf16.mxu0 0
    %3787 = vmatpush1.bf16.xpose.msra.mxu0 0
    %3788 = vmatprep.subr.bf16.mxu0 0
    %3789 = vmatpush1.bf16.xpose.msra.mxu0 0
    %3790 = vmatprep.subr.bf16.mxu0 0
    %3791 = vmatpush1.bf16.xpose.msra.mxu0 0
    %3792 = vmatprep.subr.bf16.mxu0 0
    %3793 = vmatpush1.bf16.xpose.msra.mxu0 0
    %3794 = vmatprep.subr.bf16.mxu0 0
    %3795 = vmatpush1.bf16.xpose.msra.mxu0 0
    %3796 = vmatprep.subr.bf16.mxu0 0
    %3797 = vmatpush1.bf16.xpose.msra.mxu0 0
    %3798 = vmatprep.subr.bf16.mxu0 0
    %3799 = vmatpush1.bf16.xpose.msra.mxu0 0
    %3800 = vmatprep.mubr.bf16.mxu0 0
    %3801 = vmatmul.mubr.bf16.gmra.mrb[0].mxu0 %v3763
    %v3802 = vpop.f32.mrb[0].mxu0
    %v3803 = vadd.f32 0.0, %v3802
    %v3804 = vpop.f32.mrb[0].mxu0
    %v3805 = vpop.f32.mrb[0].mxu0
    %v3806 = vadd.f32 0.0, %v3805
    %v3807 = vpop.f32.mrb[0].mxu0
    %3808 = vdwg.mxu0
    %3809 = vrot.lane.b32.xlu0 %v3486, 96
    %v3810 = vpop.permute.xlu0 %3809
    %3811 = vrot.lane.b32.xlu0 %v3601, 96
    %v3812 = vpop.permute.xlu0 %3811
    %v3814 = vsel %vm564, %v3810, 0
    %v3817 = vsel %vm564, %v3812, 0
    %3819 = vmatprep.subr.bf16.mxu0 0
    %3820 = vmatpush1.bf16.xpose.msra.mxu0 %v3817
    %3821 = vmatprep.subr.bf16.mxu0 0
    %3822 = vmatpush1.bf16.xpose.msra.mxu0 0
    %3823 = vmatprep.subr.bf16.mxu0 0
    %3824 = vmatpush1.bf16.xpose.msra.mxu0 0
    %3825 = vmatprep.subr.bf16.mxu0 0
    %3826 = vmatpush1.bf16.xpose.msra.mxu0 0
    %3827 = vmatprep.subr.bf16.mxu0 0
    %3828 = vmatpush1.bf16.xpose.msra.mxu0 0
    %3829 = vmatprep.subr.bf16.mxu0 0
    %3830 = vmatpush1.bf16.xpose.msra.mxu0 0
    %3831 = vmatprep.subr.bf16.mxu0 0
    %3832 = vmatpush1.bf16.xpose.msra.mxu0 0
    %3833 = vmatprep.subr.bf16.mxu0 0
    %3834 = vmatpush1.bf16.xpose.msra.mxu0 0
    %3835 = vmatprep.subr.bf16.mxu0 0
    %3836 = vmatpush1.bf16.xpose.msra.mxu0 0
    %3837 = vmatprep.subr.bf16.mxu0 0
    %3838 = vmatpush1.bf16.xpose.msra.mxu0 0
    %3839 = vmatprep.subr.bf16.mxu0 0
    %3840 = vmatpush1.bf16.xpose.msra.mxu0 0
    %3841 = vmatprep.subr.bf16.mxu0 0
    %3842 = vmatpush1.bf16.xpose.msra.mxu0 0
    %3843 = vmatprep.subr.bf16.mxu0 0
    %3844 = vmatpush1.bf16.xpose.msra.mxu0 0
    %3845 = vmatprep.subr.bf16.mxu0 0
    %3846 = vmatpush1.bf16.xpose.msra.mxu0 0
    %3847 = vmatprep.subr.bf16.mxu0 0
    %3848 = vmatpush1.bf16.xpose.msra.mxu0 0
    %3849 = vmatprep.subr.bf16.mxu0 0
    %3850 = vmatpush1.bf16.xpose.msra.mxu0 0
    %3851 = vmatprep.mubr.bf16.mxu0 0
    %3852 = vmatmul.mubr.bf16.gmra.mrb[0].mxu0 %v3814
    %v3853 = vpop.f32.mrb[0].mxu0
    %v3854 = vadd.f32 0.0, %v3853
    %v3855 = vpop.f32.mrb[0].mxu0
    %v3856 = vpop.f32.mrb[0].mxu0
    %v3857 = vadd.f32 0.0, %v3856
    %v3858 = vpop.f32.mrb[0].mxu0
    %3859 = vdwg.mxu0
    %3860 = vrot.lane.b32.xlu0 %v3486, 80
    %v3861 = vpop.permute.xlu0 %3860
    %3862 = vrot.lane.b32.xlu0 %v3601, 80
    %v3863 = vpop.permute.xlu0 %3862
    %v3865 = vsel %vm564, %v3861, 0
    %v3868 = vsel %vm564, %v3863, 0
    %3870 = vmatprep.subr.bf16.mxu0 0
    %3871 = vmatpush1.bf16.xpose.msra.mxu0 %v3868
    %3872 = vmatprep.subr.bf16.mxu0 0
    %3873 = vmatpush1.bf16.xpose.msra.mxu0 0
    %3874 = vmatprep.subr.bf16.mxu0 0
    %3875 = vmatpush1.bf16.xpose.msra.mxu0 0
    %3876 = vmatprep.subr.bf16.mxu0 0
    %3877 = vmatpush1.bf16.xpose.msra.mxu0 0
    %3878 = vmatprep.subr.bf16.mxu0 0
    %3879 = vmatpush1.bf16.xpose.msra.mxu0 0
    %3880 = vmatprep.subr.bf16.mxu0 0
    %3881 = vmatpush1.bf16.xpose.msra.mxu0 0
    %3882 = vmatprep.subr.bf16.mxu0 0
    %3883 = vmatpush1.bf16.xpose.msra.mxu0 0
    %3884 = vmatprep.subr.bf16.mxu0 0
    %3885 = vmatpush1.bf16.xpose.msra.mxu0 0
    %3886 = vmatprep.subr.bf16.mxu0 0
    %3887 = vmatpush1.bf16.xpose.msra.mxu0 0
    %3888 = vmatprep.subr.bf16.mxu0 0
    %3889 = vmatpush1.bf16.xpose.msra.mxu0 0
    %3890 = vmatprep.subr.bf16.mxu0 0
    %3891 = vmatpush1.bf16.xpose.msra.mxu0 0
    %3892 = vmatprep.subr.bf16.mxu0 0
    %3893 = vmatpush1.bf16.xpose.msra.mxu0 0
    %3894 = vmatprep.subr.bf16.mxu0 0
    %3895 = vmatpush1.bf16.xpose.msra.mxu0 0
    %3896 = vmatprep.subr.bf16.mxu0 0
    %3897 = vmatpush1.bf16.xpose.msra.mxu0 0
    %3898 = vmatprep.subr.bf16.mxu0 0
    %3899 = vmatpush1.bf16.xpose.msra.mxu0 0
    %3900 = vmatprep.subr.bf16.mxu0 0
    %3901 = vmatpush1.bf16.xpose.msra.mxu0 0
    %3902 = vmatprep.mubr.bf16.mxu0 0
    %3903 = vmatmul.mubr.bf16.gmra.mrb[0].mxu0 %v3865
    %v3904 = vpop.f32.mrb[0].mxu0
    %v3905 = vadd.f32 0.0, %v3904
    %v3906 = vpop.f32.mrb[0].mxu0
    %v3907 = vpop.f32.mrb[0].mxu0
    %v3908 = vadd.f32 0.0, %v3907
    %v3909 = vpop.f32.mrb[0].mxu0
    %3910 = vdwg.mxu0
    %3911 = vrot.lane.b32.xlu0 %v3486, 64
    %v3912 = vpop.permute.xlu0 %3911
    %3913 = vrot.lane.b32.xlu0 %v3601, 64
    %v3914 = vpop.permute.xlu0 %3913
    %v3916 = vsel %vm564, %v3912, 0
    %v3919 = vsel %vm564, %v3914, 0
    %3921 = vmatprep.subr.bf16.mxu0 0
    %3922 = vmatpush1.bf16.xpose.msra.mxu0 %v3919
    %3923 = vmatprep.subr.bf16.mxu0 0
    %3924 = vmatpush1.bf16.xpose.msra.mxu0 0
    %3925 = vmatprep.subr.bf16.mxu0 0
    %3926 = vmatpush1.bf16.xpose.msra.mxu0 0
    %3927 = vmatprep.subr.bf16.mxu0 0
    %3928 = vmatpush1.bf16.xpose.msra.mxu0 0
    %3929 = vmatprep.subr.bf16.mxu0 0
    %3930 = vmatpush1.bf16.xpose.msra.mxu0 0
    %3931 = vmatprep.subr.bf16.mxu0 0
    %3932 = vmatpush1.bf16.xpose.msra.mxu0 0
    %3933 = vmatprep.subr.bf16.mxu0 0
    %3934 = vmatpush1.bf16.xpose.msra.mxu0 0
    %3935 = vmatprep.subr.bf16.mxu0 0
    %3936 = vmatpush1.bf16.xpose.msra.mxu0 0
    %3937 = vmatprep.subr.bf16.mxu0 0
    %3938 = vmatpush1.bf16.xpose.msra.mxu0 0
    %3939 = vmatprep.subr.bf16.mxu0 0
    %3940 = vmatpush1.bf16.xpose.msra.mxu0 0
    %3941 = vmatprep.subr.bf16.mxu0 0
    %3942 = vmatpush1.bf16.xpose.msra.mxu0 0
    %3943 = vmatprep.subr.bf16.mxu0 0
    %3944 = vmatpush1.bf16.xpose.msra.mxu0 0
    %3945 = vmatprep.subr.bf16.mxu0 0
    %3946 = vmatpush1.bf16.xpose.msra.mxu0 0
    %3947 = vmatprep.subr.bf16.mxu0 0
    %3948 = vmatpush1.bf16.xpose.msra.mxu0 0
    %3949 = vmatprep.subr.bf16.mxu0 0
    %3950 = vmatpush1.bf16.xpose.msra.mxu0 0
    %3951 = vmatprep.subr.bf16.mxu0 0
    %3952 = vmatpush1.bf16.xpose.msra.mxu0 0
    %3953 = vmatprep.mubr.bf16.mxu0 0
    %3954 = vmatmul.mubr.bf16.gmra.mrb[0].mxu0 %v3916
    %v3955 = vpop.f32.mrb[0].mxu0
    %v3956 = vadd.f32 0.0, %v3955
    %v3957 = vpop.f32.mrb[0].mxu0
    %v3958 = vpop.f32.mrb[0].mxu0
    %v3959 = vadd.f32 0.0, %v3958
    %v3960 = vpop.f32.mrb[0].mxu0
    %3961 = vdwg.mxu0
    %3962 = vrot.lane.b32.xlu0 %v3486, 48
    %v3963 = vpop.permute.xlu0 %3962
    %3964 = vrot.lane.b32.xlu0 %v3601, 48
    %v3965 = vpop.permute.xlu0 %3964
    %v3967 = vsel %vm564, %v3963, 0
    %v3970 = vsel %vm564, %v3965, 0
    %3972 = vmatprep.subr.bf16.mxu0 0
    %3973 = vmatpush1.bf16.xpose.msra.mxu0 %v3970
    %3974 = vmatprep.subr.bf16.mxu0 0
    %3975 = vmatpush1.bf16.xpose.msra.mxu0 0
    %3976 = vmatprep.subr.bf16.mxu0 0
    %3977 = vmatpush1.bf16.xpose.msra.mxu0 0
    %3978 = vmatprep.subr.bf16.mxu0 0
    %3979 = vmatpush1.bf16.xpose.msra.mxu0 0
    %3980 = vmatprep.subr.bf16.mxu0 0
    %3981 = vmatpush1.bf16.xpose.msra.mxu0 0
    %3982 = vmatprep.subr.bf16.mxu0 0
    %3983 = vmatpush1.bf16.xpose.msra.mxu0 0
    %3984 = vmatprep.subr.bf16.mxu0 0
    %3985 = vmatpush1.bf16.xpose.msra.mxu0 0
    %3986 = vmatprep.subr.bf16.mxu0 0
    %3987 = vmatpush1.bf16.xpose.msra.mxu0 0
    %3988 = vmatprep.subr.bf16.mxu0 0
    %3989 = vmatpush1.bf16.xpose.msra.mxu0 0
    %3990 = vmatprep.subr.bf16.mxu0 0
    %3991 = vmatpush1.bf16.xpose.msra.mxu0 0
    %3992 = vmatprep.subr.bf16.mxu0 0
    %3993 = vmatpush1.bf16.xpose.msra.mxu0 0
    %3994 = vmatprep.subr.bf16.mxu0 0
    %3995 = vmatpush1.bf16.xpose.msra.mxu0 0
    %3996 = vmatprep.subr.bf16.mxu0 0
    %3997 = vmatpush1.bf16.xpose.msra.mxu0 0
    %3998 = vmatprep.subr.bf16.mxu0 0
    %3999 = vmatpush1.bf16.xpose.msra.mxu0 0
    %4000 = vmatprep.subr.bf16.mxu0 0
    %4001 = vmatpush1.bf16.xpose.msra.mxu0 0
    %4002 = vmatprep.subr.bf16.mxu0 0
    %4003 = vmatpush1.bf16.xpose.msra.mxu0 0
    %4004 = vmatprep.mubr.bf16.mxu0 0
    %4005 = vmatmul.mubr.bf16.gmra.mrb[0].mxu0 %v3967
    %v4006 = vpop.f32.mrb[0].mxu0
    %v4007 = vadd.f32 0.0, %v4006
    %v4008 = vpop.f32.mrb[0].mxu0
    %v4009 = vpop.f32.mrb[0].mxu0
    %v4010 = vadd.f32 0.0, %v4009
    %v4011 = vpop.f32.mrb[0].mxu0
    %4012 = vdwg.mxu0
    %4013 = vrot.lane.b32.xlu0 %v3486, 32
    %v4014 = vpop.permute.xlu0 %4013
    %4015 = vrot.lane.b32.xlu0 %v3601, 32
    %v4016 = vpop.permute.xlu0 %4015
    %v4018 = vsel %vm564, %v4014, 0
    %v4021 = vsel %vm564, %v4016, 0
    %4023 = vmatprep.subr.bf16.mxu0 0
    %4024 = vmatpush1.bf16.xpose.msra.mxu0 %v4021
    %4025 = vmatprep.subr.bf16.mxu0 0
    %4026 = vmatpush1.bf16.xpose.msra.mxu0 0
    %4027 = vmatprep.subr.bf16.mxu0 0
    %4028 = vmatpush1.bf16.xpose.msra.mxu0 0
    %4029 = vmatprep.subr.bf16.mxu0 0
    %4030 = vmatpush1.bf16.xpose.msra.mxu0 0
    %4031 = vmatprep.subr.bf16.mxu0 0
    %4032 = vmatpush1.bf16.xpose.msra.mxu0 0
    %4033 = vmatprep.subr.bf16.mxu0 0
    %4034 = vmatpush1.bf16.xpose.msra.mxu0 0
    %4035 = vmatprep.subr.bf16.mxu0 0
    %4036 = vmatpush1.bf16.xpose.msra.mxu0 0
    %4037 = vmatprep.subr.bf16.mxu0 0
    %4038 = vmatpush1.bf16.xpose.msra.mxu0 0
    %4039 = vmatprep.subr.bf16.mxu0 0
    %4040 = vmatpush1.bf16.xpose.msra.mxu0 0
    %4041 = vmatprep.subr.bf16.mxu0 0
    %4042 = vmatpush1.bf16.xpose.msra.mxu0 0
    %4043 = vmatprep.subr.bf16.mxu0 0
    %4044 = vmatpush1.bf16.xpose.msra.mxu0 0
    %4045 = vmatprep.subr.bf16.mxu0 0
    %4046 = vmatpush1.bf16.xpose.msra.mxu0 0
    %4047 = vmatprep.subr.bf16.mxu0 0
    %4048 = vmatpush1.bf16.xpose.msra.mxu0 0
    %4049 = vmatprep.subr.bf16.mxu0 0
    %4050 = vmatpush1.bf16.xpose.msra.mxu0 0
    %4051 = vmatprep.subr.bf16.mxu0 0
    %4052 = vmatpush1.bf16.xpose.msra.mxu0 0
    %4053 = vmatprep.subr.bf16.mxu0 0
    %4054 = vmatpush1.bf16.xpose.msra.mxu0 0
    %4055 = vmatprep.mubr.bf16.mxu0 0
    %4056 = vmatmul.mubr.bf16.gmra.mrb[0].mxu0 %v4018
    %v4057 = vpop.f32.mrb[0].mxu0
    %v4058 = vadd.f32 0.0, %v4057
    %v4059 = vpop.f32.mrb[0].mxu0
    %v4060 = vpop.f32.mrb[0].mxu0
    %v4061 = vadd.f32 0.0, %v4060
    %v4062 = vpop.f32.mrb[0].mxu0
    %4063 = vdwg.mxu0
    %4064 = vrot.lane.b32.xlu0 %v3486, 16
    %v4065 = vpop.permute.xlu0 %4064
    %4066 = vrot.lane.b32.xlu0 %v3601, 16
    %v4067 = vpop.permute.xlu0 %4066
    %v4069 = vsel %vm564, %v4065, 0
    %v4072 = vsel %vm564, %v4067, 0
    %4074 = vmatprep.subr.bf16.mxu0 0
    %4075 = vmatpush1.bf16.xpose.msra.mxu0 %v4072
    %4076 = vmatprep.subr.bf16.mxu0 0
    %4077 = vmatpush1.bf16.xpose.msra.mxu0 0
    %4078 = vmatprep.subr.bf16.mxu0 0
    %4079 = vmatpush1.bf16.xpose.msra.mxu0 0
    %4080 = vmatprep.subr.bf16.mxu0 0
    %4081 = vmatpush1.bf16.xpose.msra.mxu0 0
    %4082 = vmatprep.subr.bf16.mxu0 0
    %4083 = vmatpush1.bf16.xpose.msra.mxu0 0
    %4084 = vmatprep.subr.bf16.mxu0 0
    %4085 = vmatpush1.bf16.xpose.msra.mxu0 0
    %4086 = vmatprep.subr.bf16.mxu0 0
    %4087 = vmatpush1.bf16.xpose.msra.mxu0 0
    %4088 = vmatprep.subr.bf16.mxu0 0
    %4089 = vmatpush1.bf16.xpose.msra.mxu0 0
    %4090 = vmatprep.subr.bf16.mxu0 0
    %4091 = vmatpush1.bf16.xpose.msra.mxu0 0
    %4092 = vmatprep.subr.bf16.mxu0 0
    %4093 = vmatpush1.bf16.xpose.msra.mxu0 0
    %4094 = vmatprep.subr.bf16.mxu0 0
    %4095 = vmatpush1.bf16.xpose.msra.mxu0 0
    %4096 = vmatprep.subr.bf16.mxu0 0
    %4097 = vmatpush1.bf16.xpose.msra.mxu0 0
    %4098 = vmatprep.subr.bf16.mxu0 0
    %4099 = vmatpush1.bf16.xpose.msra.mxu0 0
    %4100 = vmatprep.subr.bf16.mxu0 0
    %4101 = vmatpush1.bf16.xpose.msra.mxu0 0
    %4102 = vmatprep.subr.bf16.mxu0 0
    %4103 = vmatpush1.bf16.xpose.msra.mxu0 0
    %4104 = vmatprep.subr.bf16.mxu0 0
    %4105 = vmatpush1.bf16.xpose.msra.mxu0 0
    %4106 = vmatprep.mubr.bf16.mxu0 0
    %4107 = vmatmul.mubr.bf16.gmra.mrb[0].mxu0 %v4069
    %v4108 = vpop.f32.mrb[0].mxu0
    %v4109 = vadd.f32 0.0, %v4108
    %v4110 = vpop.f32.mrb[0].mxu0
    %v4111 = vpop.f32.mrb[0].mxu0
    %v4112 = vadd.f32 0.0, %v4111
    %v4113 = vpop.f32.mrb[0].mxu0
    %4114 = vdwg.mxu0
    %v4115 = vadd.f32 %v3354, %v3750
    %v4116 = vadd.f32 %v3355, %v3753
    %v4117 = vadd.f32 %v3356, %v3803
    %v4118 = vadd.f32 %v3357, %v3806
    %v4119 = vadd.f32 %v3358, %v3854
    %v4120 = vadd.f32 %v3359, %v3857
    %v4121 = vadd.f32 %v3360, %v3905
    %v4122 = vadd.f32 %v3361, %v3908
    %v4123 = vadd.f32 %v3362, %v3956
    %v4124 = vadd.f32 %v3363, %v3959
    %v4125 = vadd.f32 %v3364, %v4007
    %v4126 = vadd.f32 %v3365, %v4010
    %v4127 = vadd.f32 %v3366, %v4058
    %v4128 = vadd.f32 %v3367, %v4061
    %v4129 = vadd.f32 %v3368, %v4109
    %v4130 = vadd.f32 %v3369, %v4112
    %vm4131 = vcmask 97280
    %v4132 = vsel %vm4131, %v4115, -inf
    %4133 = vmax.xlane.f32.xlu0 %v4132
    %v4134 = vpop.xlane.xlu0 %4133
    %v4135 = vsel %vm4131, %v4116, -inf
    %4136 = vmax.xlane.f32.xlu0 %v4135
    %v4137 = vpop.xlane.xlu0 %4136
    %v4138 = vsel %vm4131, %v4117, -inf
    %4139 = vmax.xlane.f32.xlu0 %v4138
    %v4140 = vpop.xlane.xlu0 %4139
    %v4141 = vsel %vm4131, %v4118, -inf
    %4142 = vmax.xlane.f32.xlu0 %v4141
    %v4143 = vpop.xlane.xlu0 %4142
    %v4144 = vsel %vm4131, %v4119, -inf
    %4145 = vmax.xlane.f32.xlu0 %v4144
    %v4146 = vpop.xlane.xlu0 %4145
    %v4147 = vsel %vm4131, %v4120, -inf
    %4148 = vmax.xlane.f32.xlu0 %v4147
    %v4149 = vpop.xlane.xlu0 %4148
    %v4150 = vsel %vm4131, %v4121, -inf
    %4151 = vmax.xlane.f32.xlu0 %v4150
    %v4152 = vpop.xlane.xlu0 %4151
    %v4153 = vsel %vm4131, %v4122, -inf
    %4154 = vmax.xlane.f32.xlu0 %v4153
    %v4155 = vpop.xlane.xlu0 %4154
    %v4156 = vsel %vm4131, %v4123, -inf
    %4157 = vmax.xlane.f32.xlu0 %v4156
    %v4158 = vpop.xlane.xlu0 %4157
    %v4159 = vsel %vm4131, %v4124, -inf
    %4160 = vmax.xlane.f32.xlu0 %v4159
    %v4161 = vpop.xlane.xlu0 %4160
    %v4162 = vsel %vm4131, %v4125, -inf
    %4163 = vmax.xlane.f32.xlu0 %v4162
    %v4164 = vpop.xlane.xlu0 %4163
    %v4165 = vsel %vm4131, %v4126, -inf
    %4166 = vmax.xlane.f32.xlu0 %v4165
    %v4167 = vpop.xlane.xlu0 %4166
    %v4168 = vsel %vm4131, %v4127, -inf
    %4169 = vmax.xlane.f32.xlu0 %v4168
    %v4170 = vpop.xlane.xlu0 %4169
    %v4171 = vsel %vm4131, %v4128, -inf
    %4172 = vmax.xlane.f32.xlu0 %v4171
    %v4173 = vpop.xlane.xlu0 %4172
    %v4174 = vsel %vm4131, %v4129, -inf
    %4175 = vmax.xlane.f32.xlu0 %v4174
    %v4176 = vpop.xlane.xlu0 %4175
    %v4177 = vsel %vm4131, %v4130, -inf
    %4178 = vmax.xlane.f32.xlu0 %v4177
    %v4179 = vpop.xlane.xlu0 %4178
    %v4180 = vsub.f32 %v4115, %v4134
    %v4181 = vsub.f32 %v4116, %v4137
    %v4182 = vsub.f32 %v4117, %v4140
    %v4183 = vsub.f32 %v4118, %v4143
    %v4184 = vsub.f32 %v4119, %v4146
    %v4185 = vsub.f32 %v4120, %v4149
    %v4186 = vsub.f32 %v4121, %v4152
    %v4187 = vsub.f32 %v4122, %v4155
    %v4188 = vsub.f32 %v4123, %v4158
    %v4189 = vsub.f32 %v4124, %v4161
    %v4190 = vsub.f32 %v4125, %v4164
    %v4191 = vsub.f32 %v4126, %v4167
    %v4192 = vsub.f32 %v4127, %v4170
    %v4193 = vsub.f32 %v4128, %v4173
    %v4194 = vsub.f32 %v4129, %v4176
    %v4195 = vsub.f32 %v4130, %v4179
    %v4196 = vmul.f32 %v4180, 1.442695
    %v4197 = vpow.pop %v4196
    %v4198 = vmul.f32 %v4181, 1.442695
    %v4199 = vpow.pop %v4198
    %v4200 = vmul.f32 %v4182, 1.442695
    %v4201 = vpow.pop %v4200
    %v4202 = vmul.f32 %v4183, 1.442695
    %v4203 = vpow.pop %v4202
    %v4204 = vmul.f32 %v4184, 1.442695
    %v4205 = vpow.pop %v4204
    %v4206 = vmul.f32 %v4185, 1.442695
    %v4207 = vpow.pop %v4206
    %v4208 = vmul.f32 %v4186, 1.442695
    %v4209 = vpow.pop %v4208
    %v4210 = vmul.f32 %v4187, 1.442695
    %v4211 = vpow.pop %v4210
    %v4212 = vmul.f32 %v4188, 1.442695
    %v4213 = vpow.pop %v4212
    %v4214 = vmul.f32 %v4189, 1.442695
    %v4215 = vpow.pop %v4214
    %v4216 = vmul.f32 %v4190, 1.442695
    %v4217 = vpow.pop %v4216
    %v4218 = vmul.f32 %v4191, 1.442695
    %v4219 = vpow.pop %v4218
    %v4220 = vmul.f32 %v4192, 1.442695
    %v4221 = vpow.pop %v4220
    %v4222 = vmul.f32 %v4193, 1.442695
    %v4223 = vpow.pop %v4222
    %v4224 = vmul.f32 %v4194, 1.442695
    %v4225 = vpow.pop %v4224
    %v4226 = vmul.f32 %v4195, 1.442695
    %v4227 = vpow.pop %v4226
    %v4228 = vsel %vm4131, %v4197, 0.0
    %4229 = vadd.xlane.f32.xlu0 %v4228
    %v4230 = vpop.xlane.xlu0 %4229
    %v4231 = vsel %vm4131, %v4199, 0.0
    %4232 = vadd.xlane.f32.xlu0 %v4231
    %v4233 = vpop.xlane.xlu0 %4232
    %v4234 = vsel %vm4131, %v4201, 0.0
    %4235 = vadd.xlane.f32.xlu0 %v4234
    %v4236 = vpop.xlane.xlu0 %4235
    %v4237 = vsel %vm4131, %v4203, 0.0
    %4238 = vadd.xlane.f32.xlu0 %v4237
    %v4239 = vpop.xlane.xlu0 %4238
    %v4240 = vsel %vm4131, %v4205, 0.0
    %4241 = vadd.xlane.f32.xlu0 %v4240
    %v4242 = vpop.xlane.xlu0 %4241
    %v4243 = vsel %vm4131, %v4207, 0.0
    %4244 = vadd.xlane.f32.xlu0 %v4243
    %v4245 = vpop.xlane.xlu0 %4244
    %v4246 = vsel %vm4131, %v4209, 0.0
    %4247 = vadd.xlane.f32.xlu0 %v4246
    %v4248 = vpop.xlane.xlu0 %4247
    %v4249 = vsel %vm4131, %v4211, 0.0
    %4250 = vadd.xlane.f32.xlu0 %v4249
    %v4251 = vpop.xlane.xlu0 %4250
    %v4252 = vsel %vm4131, %v4213, 0.0
    %4253 = vadd.xlane.f32.xlu0 %v4252
    %v4254 = vpop.xlane.xlu0 %4253
    %v4255 = vsel %vm4131, %v4215, 0.0
    %4256 = vadd.xlane.f32.xlu0 %v4255
    %v4257 = vpop.xlane.xlu0 %4256
    %v4258 = vsel %vm4131, %v4217, 0.0
    %4259 = vadd.xlane.f32.xlu0 %v4258
    %v4260 = vpop.xlane.xlu0 %4259
    %v4261 = vsel %vm4131, %v4219, 0.0
    %4262 = vadd.xlane.f32.xlu0 %v4261
    %v4263 = vpop.xlane.xlu0 %4262
    %v4264 = vsel %vm4131, %v4221, 0.0
    %4265 = vadd.xlane.f32.xlu0 %v4264
    %v4266 = vpop.xlane.xlu0 %4265
    %v4267 = vsel %vm4131, %v4223, 0.0
    %4268 = vadd.xlane.f32.xlu0 %v4267
    %v4269 = vpop.xlane.xlu0 %4268
    %v4270 = vsel %vm4131, %v4225, 0.0
    %4271 = vadd.xlane.f32.xlu0 %v4270
    %v4272 = vpop.xlane.xlu0 %4271
    %v4273 = vsel %vm4131, %v4227, 0.0
    %4274 = vadd.xlane.f32.xlu0 %v4273
    %v4275 = vpop.xlane.xlu0 %4274
    %v4276 = vrcp.pop %v4230
    %v4277 = vrcp.pop %v4233
    %v4278 = vrcp.pop %v4236
    %v4279 = vrcp.pop %v4239
    %v4280 = vrcp.pop %v4242
    %v4281 = vrcp.pop %v4245
    %v4282 = vrcp.pop %v4248
    %v4283 = vrcp.pop %v4251
    %v4284 = vrcp.pop %v4254
    %v4285 = vrcp.pop %v4257
    %v4286 = vrcp.pop %v4260
    %v4287 = vrcp.pop %v4263
    %v4288 = vrcp.pop %v4266
    %v4289 = vrcp.pop %v4269
    %v4290 = vrcp.pop %v4272
    %v4291 = vrcp.pop %v4275
    %v4292 = vmul.f32 %v4197, %v4276
    %v4293 = vmul.f32 %v4199, %v4277
    %v4294 = vmul.f32 %v4201, %v4278
    %v4295 = vmul.f32 %v4203, %v4279
    %v4296 = vmul.f32 %v4205, %v4280
    %v4297 = vmul.f32 %v4207, %v4281
    %v4298 = vmul.f32 %v4209, %v4282
    %v4299 = vmul.f32 %v4211, %v4283
    %v4300 = vmul.f32 %v4213, %v4284
    %v4301 = vmul.f32 %v4215, %v4285
    %v4302 = vmul.f32 %v4217, %v4286
    %v4303 = vmul.f32 %v4219, %v4287
    %v4304 = vmul.f32 %v4221, %v4288
    %v4305 = vmul.f32 %v4223, %v4289
    %v4306 = vmul.f32 %v4225, %v4290
    %v4307 = vmul.f32 %v4227, %v4291
    %v4308 = vpack.c.bf16 %v4293, %v4292
    %v4309 = vpack.c.bf16 %v4295, %v4294
    %v4310 = vpack.c.bf16 %v4297, %v4296
    %v4311 = vpack.c.bf16 %v4299, %v4298
    %v4312 = vpack.c.bf16 %v4301, %v4300
    %v4313 = vpack.c.bf16 %v4303, %v4302
    %v4314 = vpack.c.bf16 %v4305, %v4304
    %v4315 = vpack.c.bf16 %v4307, %v4306
    %v4317 = vsel %vm4131, %v4308, 0
    %vm4319 = vcmask 1045504
    %v4321 = vsel %vm4319, %v3708, 0
    %4323 = vmatprep.subr.bf16.mxu0 0
    %4324 = vmatpush1.bf16.msra.mxu0 %v4321
    %4325 = vmatprep.subr.bf16.mxu0 0
    %4326 = vmatpush1.bf16.msra.mxu0 0
    %4327 = vmatprep.subr.bf16.mxu0 0
    %4328 = vmatpush1.bf16.msra.mxu0 0
    %4329 = vmatprep.subr.bf16.mxu0 0
    %4330 = vmatpush1.bf16.msra.mxu0 0
    %4331 = vmatprep.subr.bf16.mxu0 0
    %4332 = vmatpush1.bf16.msra.mxu0 0
    %4333 = vmatprep.subr.bf16.mxu0 0
    %4334 = vmatpush1.bf16.msra.mxu0 0
    %4335 = vmatprep.subr.bf16.mxu0 0
    %4336 = vmatpush1.bf16.msra.mxu0 0
    %4337 = vmatprep.subr.bf16.mxu0 0
    %4338 = vmatpush1.bf16.msra.mxu0 0
    %4339 = vmatprep.subr.bf16.mxu0 0
    %4340 = vmatpush1.bf16.msra.mxu0 0
    %4341 = vmatprep.subr.bf16.mxu0 0
    %4342 = vmatpush1.bf16.msra.mxu0 0
    %4343 = vmatprep.subr.bf16.mxu0 0
    %4344 = vmatpush1.bf16.msra.mxu0 0
    %4345 = vmatprep.subr.bf16.mxu0 0
    %4346 = vmatpush1.bf16.msra.mxu0 0
    %4347 = vmatprep.subr.bf16.mxu0 0
    %4348 = vmatpush1.bf16.msra.mxu0 0
    %4349 = vmatprep.subr.bf16.mxu0 0
    %4350 = vmatpush1.bf16.msra.mxu0 0
    %4351 = vmatprep.subr.bf16.mxu0 0
    %4352 = vmatpush1.bf16.msra.mxu0 0
    %4353 = vmatprep.subr.bf16.mxu0 0
    %4354 = vmatpush1.bf16.msra.mxu0 0
    %4355 = vmatprep.mubr.bf16.mxu0 0
    %4356 = vmatmul.mubr.bf16.gmra.mrb[0].mxu0 %v4317
    %v4357 = vpop.f32.mrb[0].mxu0
    %v4358 = vadd.f32 0.0, %v4357
    %v4359 = vpop.f32.mrb[0].mxu0
    %v4360 = vpop.f32.mrb[0].mxu0
    %v4361 = vadd.f32 0.0, %v4360
    %v4362 = vpop.f32.mrb[0].mxu0
    %4363 = vdwg.mxu0
    %4364 = vst.msk [vmem:[#allocation2] sm:$0xff] %vm564, %v4358
    %4365 = vst.msk [vmem:[#allocation2 + $0x8] sm:$0xff] %vm564, %v4361
    %4367 = vrot.lane.b32.xlu0 %v3708, 112
    %v4368 = vpop.permute.xlu0 %4367
    %v4370 = vsel %vm4131, %v4309, 0
    %v4373 = vsel %vm4319, %v4368, 0
    %4375 = vmatprep.subr.bf16.mxu0 0
    %4376 = vmatpush1.bf16.msra.mxu0 %v4373
    %4377 = vmatprep.subr.bf16.mxu0 0
    %4378 = vmatpush1.bf16.msra.mxu0 0
    %4379 = vmatprep.subr.bf16.mxu0 0
    %4380 = vmatpush1.bf16.msra.mxu0 0
    %4381 = vmatprep.subr.bf16.mxu0 0
    %4382 = vmatpush1.bf16.msra.mxu0 0
    %4383 = vmatprep.subr.bf16.mxu0 0
    %4384 = vmatpush1.bf16.msra.mxu0 0
    %4385 = vmatprep.subr.bf16.mxu0 0
    %4386 = vmatpush1.bf16.msra.mxu0 0
    %4387 = vmatprep.subr.bf16.mxu0 0
    %4388 = vmatpush1.bf16.msra.mxu0 0
    %4389 = vmatprep.subr.bf16.mxu0 0
    %4390 = vmatpush1.bf16.msra.mxu0 0
    %4391 = vmatprep.subr.bf16.mxu0 0
    %4392 = vmatpush1.bf16.msra.mxu0 0
    %4393 = vmatprep.subr.bf16.mxu0 0
    %4394 = vmatpush1.bf16.msra.mxu0 0
    %4395 = vmatprep.subr.bf16.mxu0 0
    %4396 = vmatpush1.bf16.msra.mxu0 0
    %4397 = vmatprep.subr.bf16.mxu0 0
    %4398 = vmatpush1.bf16.msra.mxu0 0
    %4399 = vmatprep.subr.bf16.mxu0 0
    %4400 = vmatpush1.bf16.msra.mxu0 0
    %4401 = vmatprep.subr.bf16.mxu0 0
    %4402 = vmatpush1.bf16.msra.mxu0 0
    %4403 = vmatprep.subr.bf16.mxu0 0
    %4404 = vmatpush1.bf16.msra.mxu0 0
    %4405 = vmatprep.subr.bf16.mxu0 0
    %4406 = vmatpush1.bf16.msra.mxu0 0
    %4407 = vmatprep.mubr.bf16.mxu0 0
    %4408 = vmatmul.mubr.bf16.gmra.mrb[0].mxu0 %v4370
    %v4409 = vpop.f32.mrb[0].mxu0
    %v4410 = vadd.f32 0.0, %v4409
    %v4411 = vpop.f32.mrb[0].mxu0
    %v4412 = vpop.f32.mrb[0].mxu0
    %v4413 = vadd.f32 0.0, %v4412
    %v4414 = vpop.f32.mrb[0].mxu0
    %4415 = vdwg.mxu0
    %4418 = vrot.lane.b32.xlu0 %v4410, 16
    %v4419 = vpop.permute.xlu0 %4418
    %4420 = vrot.lane.b32.xlu0 %v4413, 16
    %v4421 = vpop.permute.xlu0 %4420
    %4424 = vst.msk [vmem:[#allocation2] sm:$0xff] %vm1323, %v4419
    %4425 = vst.msk [vmem:[#allocation2 + $0x8] sm:$0xff] %vm1323, %v4421
    %4426 = vrot.lane.b32.xlu0 %v3708, 96
    %v4427 = vpop.permute.xlu0 %4426
    %v4429 = vsel %vm4131, %v4310, 0
    %v4432 = vsel %vm4319, %v4427, 0
    %4434 = vmatprep.subr.bf16.mxu0 0
    %4435 = vmatpush1.bf16.msra.mxu0 %v4432
    %4436 = vmatprep.subr.bf16.mxu0 0
    %4437 = vmatpush1.bf16.msra.mxu0 0
    %4438 = vmatprep.subr.bf16.mxu0 0
    %4439 = vmatpush1.bf16.msra.mxu0 0
    %4440 = vmatprep.subr.bf16.mxu0 0
    %4441 = vmatpush1.bf16.msra.mxu0 0
    %4442 = vmatprep.subr.bf16.mxu0 0
    %4443 = vmatpush1.bf16.msra.mxu0 0
    %4444 = vmatprep.subr.bf16.mxu0 0
    %4445 = vmatpush1.bf16.msra.mxu0 0
    %4446 = vmatprep.subr.bf16.mxu0 0
    %4447 = vmatpush1.bf16.msra.mxu0 0
    %4448 = vmatprep.subr.bf16.mxu0 0
    %4449 = vmatpush1.bf16.msra.mxu0 0
    %4450 = vmatprep.subr.bf16.mxu0 0
    %4451 = vmatpush1.bf16.msra.mxu0 0
    %4452 = vmatprep.subr.bf16.mxu0 0
    %4453 = vmatpush1.bf16.msra.mxu0 0
    %4454 = vmatprep.subr.bf16.mxu0 0
    %4455 = vmatpush1.bf16.msra.mxu0 0
    %4456 = vmatprep.subr.bf16.mxu0 0
    %4457 = vmatpush1.bf16.msra.mxu0 0
    %4458 = vmatprep.subr.bf16.mxu0 0
    %4459 = vmatpush1.bf16.msra.mxu0 0
    %4460 = vmatprep.subr.bf16.mxu0 0
    %4461 = vmatpush1.bf16.msra.mxu0 0
    %4462 = vmatprep.subr.bf16.mxu0 0
    %4463 = vmatpush1.bf16.msra.mxu0 0
    %4464 = vmatprep.subr.bf16.mxu0 0
    %4465 = vmatpush1.bf16.msra.mxu0 0
    %4466 = vmatprep.mubr.bf16.mxu0 0
    %4467 = vmatmul.mubr.bf16.gmra.mrb[0].mxu0 %v4429
    %v4468 = vpop.f32.mrb[0].mxu0
    %v4469 = vadd.f32 0.0, %v4468
    %v4470 = vpop.f32.mrb[0].mxu0
    %v4471 = vpop.f32.mrb[0].mxu0
    %v4472 = vadd.f32 0.0, %v4471
    %v4473 = vpop.f32.mrb[0].mxu0
    %4474 = vdwg.mxu0
    %4477 = vrot.lane.b32.xlu0 %v4469, 32
    %v4478 = vpop.permute.xlu0 %4477
    %4479 = vrot.lane.b32.xlu0 %v4472, 32
    %v4480 = vpop.permute.xlu0 %4479
    %4483 = vst.msk [vmem:[#allocation2] sm:$0xff] %vm1386, %v4478
    %4484 = vst.msk [vmem:[#allocation2 + $0x8] sm:$0xff] %vm1386, %v4480
    %4485 = vrot.lane.b32.xlu0 %v3708, 80
    %v4486 = vpop.permute.xlu0 %4485
    %v4488 = vsel %vm4131, %v4311, 0
    %v4491 = vsel %vm4319, %v4486, 0
    %4493 = vmatprep.subr.bf16.mxu0 0
    %4494 = vmatpush1.bf16.msra.mxu0 %v4491
    %4495 = vmatprep.subr.bf16.mxu0 0
    %4496 = vmatpush1.bf16.msra.mxu0 0
    %4497 = vmatprep.subr.bf16.mxu0 0
    %4498 = vmatpush1.bf16.msra.mxu0 0
    %4499 = vmatprep.subr.bf16.mxu0 0
    %4500 = vmatpush1.bf16.msra.mxu0 0
    %4501 = vmatprep.subr.bf16.mxu0 0
    %4502 = vmatpush1.bf16.msra.mxu0 0
    %4503 = vmatprep.subr.bf16.mxu0 0
    %4504 = vmatpush1.bf16.msra.mxu0 0
    %4505 = vmatprep.subr.bf16.mxu0 0
    %4506 = vmatpush1.bf16.msra.mxu0 0
    %4507 = vmatprep.subr.bf16.mxu0 0
    %4508 = vmatpush1.bf16.msra.mxu0 0
    %4509 = vmatprep.subr.bf16.mxu0 0
    %4510 = vmatpush1.bf16.msra.mxu0 0
    %4511 = vmatprep.subr.bf16.mxu0 0
    %4512 = vmatpush1.bf16.msra.mxu0 0
    %4513 = vmatprep.subr.bf16.mxu0 0
    %4514 = vmatpush1.bf16.msra.mxu0 0
    %4515 = vmatprep.subr.bf16.mxu0 0
    %4516 = vmatpush1.bf16.msra.mxu0 0
    %4517 = vmatprep.subr.bf16.mxu0 0
    %4518 = vmatpush1.bf16.msra.mxu0 0
    %4519 = vmatprep.subr.bf16.mxu0 0
    %4520 = vmatpush1.bf16.msra.mxu0 0
    %4521 = vmatprep.subr.bf16.mxu0 0
    %4522 = vmatpush1.bf16.msra.mxu0 0
    %4523 = vmatprep.subr.bf16.mxu0 0
    %4524 = vmatpush1.bf16.msra.mxu0 0
    %4525 = vmatprep.mubr.bf16.mxu0 0
    %4526 = vmatmul.mubr.bf16.gmra.mrb[0].mxu0 %v4488
    %v4527 = vpop.f32.mrb[0].mxu0
    %v4528 = vadd.f32 0.0, %v4527
    %v4529 = vpop.f32.mrb[0].mxu0
    %v4530 = vpop.f32.mrb[0].mxu0
    %v4531 = vadd.f32 0.0, %v4530
    %v4532 = vpop.f32.mrb[0].mxu0
    %4533 = vdwg.mxu0
    %4536 = vrot.lane.b32.xlu0 %v4528, 48
    %v4537 = vpop.permute.xlu0 %4536
    %4538 = vrot.lane.b32.xlu0 %v4531, 48
    %v4539 = vpop.permute.xlu0 %4538
    %4542 = vst.msk [vmem:[#allocation2] sm:$0xff] %vm1449, %v4537
    %4543 = vst.msk [vmem:[#allocation2 + $0x8] sm:$0xff] %vm1449, %v4539
    %4544 = vrot.lane.b32.xlu0 %v3708, 64
    %v4545 = vpop.permute.xlu0 %4544
    %v4547 = vsel %vm4131, %v4312, 0
    %v4550 = vsel %vm4319, %v4545, 0
    %4552 = vmatprep.subr.bf16.mxu0 0
    %4553 = vmatpush1.bf16.msra.mxu0 %v4550
    %4554 = vmatprep.subr.bf16.mxu0 0
    %4555 = vmatpush1.bf16.msra.mxu0 0
    %4556 = vmatprep.subr.bf16.mxu0 0
    %4557 = vmatpush1.bf16.msra.mxu0 0
    %4558 = vmatprep.subr.bf16.mxu0 0
    %4559 = vmatpush1.bf16.msra.mxu0 0
    %4560 = vmatprep.subr.bf16.mxu0 0
    %4561 = vmatpush1.bf16.msra.mxu0 0
    %4562 = vmatprep.subr.bf16.mxu0 0
    %4563 = vmatpush1.bf16.msra.mxu0 0
    %4564 = vmatprep.subr.bf16.mxu0 0
    %4565 = vmatpush1.bf16.msra.mxu0 0
    %4566 = vmatprep.subr.bf16.mxu0 0
    %4567 = vmatpush1.bf16.msra.mxu0 0
    %4568 = vmatprep.subr.bf16.mxu0 0
    %4569 = vmatpush1.bf16.msra.mxu0 0
    %4570 = vmatprep.subr.bf16.mxu0 0
    %4571 = vmatpush1.bf16.msra.mxu0 0
    %4572 = vmatprep.subr.bf16.mxu0 0
    %4573 = vmatpush1.bf16.msra.mxu0 0
    %4574 = vmatprep.subr.bf16.mxu0 0
    %4575 = vmatpush1.bf16.msra.mxu0 0
    %4576 = vmatprep.subr.bf16.mxu0 0
    %4577 = vmatpush1.bf16.msra.mxu0 0
    %4578 = vmatprep.subr.bf16.mxu0 0
    %4579 = vmatpush1.bf16.msra.mxu0 0
    %4580 = vmatprep.subr.bf16.mxu0 0
    %4581 = vmatpush1.bf16.msra.mxu0 0
    %4582 = vmatprep.subr.bf16.mxu0 0
    %4583 = vmatpush1.bf16.msra.mxu0 0
    %4584 = vmatprep.mubr.bf16.mxu0 0
    %4585 = vmatmul.mubr.bf16.gmra.mrb[0].mxu0 %v4547
    %v4586 = vpop.f32.mrb[0].mxu0
    %v4587 = vadd.f32 0.0, %v4586
    %v4588 = vpop.f32.mrb[0].mxu0
    %v4589 = vpop.f32.mrb[0].mxu0
    %v4590 = vadd.f32 0.0, %v4589
    %v4591 = vpop.f32.mrb[0].mxu0
    %4592 = vdwg.mxu0
    %4595 = vrot.lane.b32.xlu0 %v4587, 64
    %v4596 = vpop.permute.xlu0 %4595
    %4597 = vrot.lane.b32.xlu0 %v4590, 64
    %v4598 = vpop.permute.xlu0 %4597
    %4601 = vst.msk [vmem:[#allocation2] sm:$0xff] %vm1512, %v4596
    %4602 = vst.msk [vmem:[#allocation2 + $0x8] sm:$0xff] %vm1512, %v4598
    %4603 = vrot.lane.b32.xlu0 %v3708, 48
    %v4604 = vpop.permute.xlu0 %4603
    %v4606 = vsel %vm4131, %v4313, 0
    %v4609 = vsel %vm4319, %v4604, 0
    %4611 = vmatprep.subr.bf16.mxu0 0
    %4612 = vmatpush1.bf16.msra.mxu0 %v4609
    %4613 = vmatprep.subr.bf16.mxu0 0
    %4614 = vmatpush1.bf16.msra.mxu0 0
    %4615 = vmatprep.subr.bf16.mxu0 0
    %4616 = vmatpush1.bf16.msra.mxu0 0
    %4617 = vmatprep.subr.bf16.mxu0 0
    %4618 = vmatpush1.bf16.msra.mxu0 0
    %4619 = vmatprep.subr.bf16.mxu0 0
    %4620 = vmatpush1.bf16.msra.mxu0 0
    %4621 = vmatprep.subr.bf16.mxu0 0
    %4622 = vmatpush1.bf16.msra.mxu0 0
    %4623 = vmatprep.subr.bf16.mxu0 0
    %4624 = vmatpush1.bf16.msra.mxu0 0
    %4625 = vmatprep.subr.bf16.mxu0 0
    %4626 = vmatpush1.bf16.msra.mxu0 0
    %4627 = vmatprep.subr.bf16.mxu0 0
    %4628 = vmatpush1.bf16.msra.mxu0 0
    %4629 = vmatprep.subr.bf16.mxu0 0
    %4630 = vmatpush1.bf16.msra.mxu0 0
    %4631 = vmatprep.subr.bf16.mxu0 0
    %4632 = vmatpush1.bf16.msra.mxu0 0
    %4633 = vmatprep.subr.bf16.mxu0 0
    %4634 = vmatpush1.bf16.msra.mxu0 0
    %4635 = vmatprep.subr.bf16.mxu0 0
    %4636 = vmatpush1.bf16.msra.mxu0 0
    %4637 = vmatprep.subr.bf16.mxu0 0
    %4638 = vmatpush1.bf16.msra.mxu0 0
    %4639 = vmatprep.subr.bf16.mxu0 0
    %4640 = vmatpush1.bf16.msra.mxu0 0
    %4641 = vmatprep.subr.bf16.mxu0 0
    %4642 = vmatpush1.bf16.msra.mxu0 0
    %4643 = vmatprep.mubr.bf16.mxu0 0
    %4644 = vmatmul.mubr.bf16.gmra.mrb[0].mxu0 %v4606
    %v4645 = vpop.f32.mrb[0].mxu0
    %v4646 = vadd.f32 0.0, %v4645
    %v4647 = vpop.f32.mrb[0].mxu0
    %v4648 = vpop.f32.mrb[0].mxu0
    %v4649 = vadd.f32 0.0, %v4648
    %v4650 = vpop.f32.mrb[0].mxu0
    %4651 = vdwg.mxu0
    %4654 = vrot.lane.b32.xlu0 %v4646, 80
    %v4655 = vpop.permute.xlu0 %4654
    %4656 = vrot.lane.b32.xlu0 %v4649, 80
    %v4657 = vpop.permute.xlu0 %4656
    %4660 = vst.msk [vmem:[#allocation2] sm:$0xff] %vm1575, %v4655
    %4661 = vst.msk [vmem:[#allocation2 + $0x8] sm:$0xff] %vm1575, %v4657
    %4662 = vrot.lane.b32.xlu0 %v3708, 32
    %v4663 = vpop.permute.xlu0 %4662
    %v4665 = vsel %vm4131, %v4314, 0
    %v4668 = vsel %vm4319, %v4663, 0
    %4670 = vmatprep.subr.bf16.mxu0 0
    %4671 = vmatpush1.bf16.msra.mxu0 %v4668
    %4672 = vmatprep.subr.bf16.mxu0 0
    %4673 = vmatpush1.bf16.msra.mxu0 0
    %4674 = vmatprep.subr.bf16.mxu0 0
    %4675 = vmatpush1.bf16.msra.mxu0 0
    %4676 = vmatprep.subr.bf16.mxu0 0
    %4677 = vmatpush1.bf16.msra.mxu0 0
    %4678 = vmatprep.subr.bf16.mxu0 0
    %4679 = vmatpush1.bf16.msra.mxu0 0
    %4680 = vmatprep.subr.bf16.mxu0 0
    %4681 = vmatpush1.bf16.msra.mxu0 0
    %4682 = vmatprep.subr.bf16.mxu0 0
    %4683 = vmatpush1.bf16.msra.mxu0 0
    %4684 = vmatprep.subr.bf16.mxu0 0
    %4685 = vmatpush1.bf16.msra.mxu0 0
    %4686 = vmatprep.subr.bf16.mxu0 0
    %4687 = vmatpush1.bf16.msra.mxu0 0
    %4688 = vmatprep.subr.bf16.mxu0 0
    %4689 = vmatpush1.bf16.msra.mxu0 0
    %4690 = vmatprep.subr.bf16.mxu0 0
    %4691 = vmatpush1.bf16.msra.mxu0 0
    %4692 = vmatprep.subr.bf16.mxu0 0
    %4693 = vmatpush1.bf16.msra.mxu0 0
    %4694 = vmatprep.subr.bf16.mxu0 0
    %4695 = vmatpush1.bf16.msra.mxu0 0
    %4696 = vmatprep.subr.bf16.mxu0 0
    %4697 = vmatpush1.bf16.msra.mxu0 0
    %4698 = vmatprep.subr.bf16.mxu0 0
    %4699 = vmatpush1.bf16.msra.mxu0 0
    %4700 = vmatprep.subr.bf16.mxu0 0
    %4701 = vmatpush1.bf16.msra.mxu0 0
    %4702 = vmatprep.mubr.bf16.mxu0 0
    %4703 = vmatmul.mubr.bf16.gmra.mrb[0].mxu0 %v4665
    %v4704 = vpop.f32.mrb[0].mxu0
    %v4705 = vadd.f32 0.0, %v4704
    %v4706 = vpop.f32.mrb[0].mxu0
    %v4707 = vpop.f32.mrb[0].mxu0
    %v4708 = vadd.f32 0.0, %v4707
    %v4709 = vpop.f32.mrb[0].mxu0
    %4710 = vdwg.mxu0
    %4713 = vrot.lane.b32.xlu0 %v4705, 96
    %v4714 = vpop.permute.xlu0 %4713
    %4715 = vrot.lane.b32.xlu0 %v4708, 96
    %v4716 = vpop.permute.xlu0 %4715
    %4719 = vst.msk [vmem:[#allocation2] sm:$0xff] %vm1638, %v4714
    %4720 = vst.msk [vmem:[#allocation2 + $0x8] sm:$0xff] %vm1638, %v4716
    %4721 = vrot.lane.b32.xlu0 %v3708, 16
    %v4722 = vpop.permute.xlu0 %4721
    %v4724 = vsel %vm4131, %v4315, 0
    %v4727 = vsel %vm4319, %v4722, 0
    %4729 = vmatprep.subr.bf16.mxu0 0
    %4730 = vmatpush1.bf16.msra.mxu0 %v4727
    %4731 = vmatprep.subr.bf16.mxu0 0
    %4732 = vmatpush1.bf16.msra.mxu0 0
    %4733 = vmatprep.subr.bf16.mxu0 0
    %4734 = vmatpush1.bf16.msra.mxu0 0
    %4735 = vmatprep.subr.bf16.mxu0 0
    %4736 = vmatpush1.bf16.msra.mxu0 0
    %4737 = vmatprep.subr.bf16.mxu0 0
    %4738 = vmatpush1.bf16.msra.mxu0 0
    %4739 = vmatprep.subr.bf16.mxu0 0
    %4740 = vmatpush1.bf16.msra.mxu0 0
    %4741 = vmatprep.subr.bf16.mxu0 0
    %4742 = vmatpush1.bf16.msra.mxu0 0
    %4743 = vmatprep.subr.bf16.mxu0 0
    %4744 = vmatpush1.bf16.msra.mxu0 0
    %4745 = vmatprep.subr.bf16.mxu0 0
    %4746 = vmatpush1.bf16.msra.mxu0 0
    %4747 = vmatprep.subr.bf16.mxu0 0
    %4748 = vmatpush1.bf16.msra.mxu0 0
    %4749 = vmatprep.subr.bf16.mxu0 0
    %4750 = vmatpush1.bf16.msra.mxu0 0
    %4751 = vmatprep.subr.bf16.mxu0 0
    %4752 = vmatpush1.bf16.msra.mxu0 0
    %4753 = vmatprep.subr.bf16.mxu0 0
    %4754 = vmatpush1.bf16.msra.mxu0 0
    %4755 = vmatprep.subr.bf16.mxu0 0
    %4756 = vmatpush1.bf16.msra.mxu0 0
    %4757 = vmatprep.subr.bf16.mxu0 0
    %4758 = vmatpush1.bf16.msra.mxu0 0
    %4759 = vmatprep.subr.bf16.mxu0 0
    %4760 = vmatpush1.bf16.msra.mxu0 0
    %4761 = vmatprep.mubr.bf16.mxu0 0
    %4762 = vmatmul.mubr.bf16.gmra.mrb[0].mxu0 %v4724
    %v4763 = vpop.f32.mrb[0].mxu0
    %v4764 = vadd.f32 0.0, %v4763
    %v4765 = vpop.f32.mrb[0].mxu0
    %v4766 = vpop.f32.mrb[0].mxu0
    %v4767 = vadd.f32 0.0, %v4766
    %v4768 = vpop.f32.mrb[0].mxu0
    %4769 = vdwg.mxu0
    %4772 = vrot.lane.b32.xlu0 %v4764, 112
    %v4773 = vpop.permute.xlu0 %4772
    %4774 = vrot.lane.b32.xlu0 %v4767, 112
    %v4775 = vpop.permute.xlu0 %4774
    %4778 = vst.msk [vmem:[#allocation2] sm:$0xff] %vm1701, %v4773
    %4779 = vst.msk [vmem:[#allocation2 + $0x8] sm:$0xff] %vm1701, %v4775
    %v4780 = vld [vmem:[#allocation2] sm:$0xff]
    %v4781 = vld [vmem:[#allocation2 + $0x8] sm:$0xff]
    %s4782 = scalar_lea.vmem %s13, 2
    %v4783 = vld [vmem:[%s4782] sm:$0x1]
    %v4785 = vlaneseq
    %v4786 = vshrl.u32 %v4785, 7
    %v4787 = vsub.s32 0, %v4786
    %v4788 = vrot.slane %v4783, %v4787
    %v4790 = vadd.f32 %v4780, %v4788
    %v4791 = vadd.f32 %v4781, %v4788
    %v4792 = vadd.f32 %v1715, %v4790
    %v4793 = vadd.f32 %v1716, %v4791
    %4794 = vst [vmem:[#allocation3] sm:$0xff] %v4792
    %4795 = vst [vmem:[#allocation3 + $0x8] sm:$0xff] %v4793
    // Predicated region
    $region58: #{rdn_forward.1} parent=1 // pred_check
      _
    $region59: #{rdn_forward.1} parent=1 // pred_check_branch
      %4797 = sbr.rel (0) target = $region61
    $region60: #{rdn_forward.1} parent=1 // pred_region
      %s4799 = ssub.s32 256, 256
      %4800 = vsyncadd [#allocation4], %s4799
      %s4801 = sshll.u32 [#allocation3], 4
      %s4802 = int_to_ptr.vmem [resolvable:$true] %s4801
      %4807 = dma.vmem_to_hbm [thread:$0]  %s4802, 256, %s14, [#allocation4], 128, 128, 8
    $region61: #{rdn_forward.1} parent=1 // pred_fallthru
      _
    // Predicated region
    $region62: #{rdn_forward.1} parent=1 // pred_check
      _
    $region63: #{rdn_forward.1} parent=1 // pred_check_branch
      %4809 = sbr.rel (0) target = $region65
    $region64: #{rdn_forward.1} parent=1 // pred_region
      %4810 = dma.done [#allocation4], 256
    $region65: #{rdn_forward.1} parent=1 // pred_fallthru
      _
    %4811 = vsyncpa [#allocation4], 1

</llo_original>
